<compile_context>
chip_gen: v6e
topology: v6e:2x2x1
jax: 0.10.0
libtpu: 0.0.40
codegen_flags: <defaults>
</compile_context>

<pallas_src>
import functools

import jax
import jax.numpy as jnp
from jax.experimental import pallas as pl
from jax.experimental.pallas import tpu as pltpu

LANES = 128


def _round_up(n, m):
    return ((n + m - 1) // m) * m


def _row_blocks(m, max_tile):
    """Pick a row tile TM and padded row count Mp with Mp % TM == 0.

    Prefers TM == m (single full block) for small m, otherwise an exact
    8-aligned divisor of m (no padding / slicing needed); falls back to padding
    m up to a multiple of max_tile.
    """
    if m <= max_tile:
        return m, m
    n_min = -(-m // max_tile)
    for n in range(n_min, min(n_min + 64, m) + 1):
        if m % n == 0 and (m // n) % 8 == 0:
            return m // n, m
    return max_tile, _round_up(m, max_tile)


# ----------------------------------------------------------------------------
# Pallas kernels
# ----------------------------------------------------------------------------
def _matmul_bias_kernel(x_ref, w_ref, b_ref, o_ref, *, relu):
    acc = jnp.dot(x_ref[...], w_ref[...], preferred_element_type=jnp.float32)
    acc = acc + b_ref[...]
    if relu:
        acc = jnp.maximum(acc, 0.0)
    o_ref[...] = acc


def _fc_fused_kernel(x_ref, w1_ref, b1_ref, w2_ref, b2_ref, w3_ref, b3_ref, o_ref):
    h = jnp.dot(x_ref[...], w1_ref[...], preferred_element_type=jnp.float32) + b1_ref[...]
    h = jnp.maximum(h, 0.0)
    h = jnp.dot(h, w2_ref[...], preferred_element_type=jnp.float32) + b2_ref[...]
    h = jnp.maximum(h, 0.0)
    o_ref[...] = jnp.dot(h, w3_ref[...], preferred_element_type=jnp.float32) + b3_ref[...]


def _maxpool_kernel(x_ref, o_ref):
    # x_ref block: (TR, 2, W2, 2*C)  rows = (batch * H/2), H-pair, W/2, W-pair
    # interleaved on lanes (channel padded to 128).
    c = o_ref.shape[-1]
    x = x_ref[...]
    w = jnp.maximum(x[..., :c], x[..., c:])        # max over the W pair (lane-aligned)
    o_ref[...] = jnp.maximum(w[:, 0], w[:, 1])     # max over the H pair


# ----------------------------------------------------------------------------
# Pallas wrappers
# ----------------------------------------------------------------------------
def matmul_bias_pallas(x, w, b, relu=False, max_rows=1024):
    """y = x @ w + b (optional ReLU). x: (M, K); w: (K, Np) pre-padded; b: (1, Np)."""
    m, k = x.shape
    kw_, n = w.shape
    assert k == kw_ and n % LANES == 0 and b.shape == (1, n)
    tm, mp = _row_blocks(m, max_rows)
    if mp != m:
        x = jnp.pad(x, ((0, mp - m), (0, 0)))
    out = pl.pallas_call(
        functools.partial(_matmul_bias_kernel, relu=relu),
        grid=(mp // tm,),
        in_specs=[
            pl.BlockSpec((tm, k), lambda i: (i, 0)),
            pl.BlockSpec((k, n), lambda i: (0, 0)),
            pl.BlockSpec((1, n), lambda i: (0, 0)),
        ],
        out_specs=pl.BlockSpec((tm, n), lambda i: (i, 0)),
        out_shape=jax.ShapeDtypeStruct((mp, n), jnp.float32),
        compiler_params=pltpu.CompilerParams(dimension_semantics=("parallel",)),
    )(x, w, b)
    return out[:m] if mp != m else out


def conv2d_pallas(x, w_mat, b_vec, kh, kw, padding=0, relu=False):
    """NHWC conv (stride 1) via im2col + M-tiled Pallas matmul+bias+ReLU.

    x: (B, H, W, C); w_mat: (kh*kw*C, 128) pre-permuted/padded; b_vec: (1, 128).
    Returns (B, Ho, Wo, 128) with real output channels in the low lanes (rest 0).
    """
    # TODO(synk): lower the kh*kw tap loop directly inside one Pallas kernel with
    # a VMEM accumulator to avoid materializing the im2col matrix in HBM.
    b, h, w, c = x.shape
    if padding:
        x = jnp.pad(x, ((0, 0), (padding, padding), (padding, padding), (0, 0)))
    ho = h + 2 * padding - kh + 1
    wo = w + 2 * padding - kw + 1
    patches = [x[:, di:di + ho, dj:dj + wo, :] for di in range(kh) for dj in range(kw)]
    cols = jnp.concatenate(patches, axis=-1).reshape(b * ho * wo, kh * kw * c)
    y = matmul_bias_pallas(cols, w_mat, b_vec, relu=relu)     # (B*Ho*Wo, 128)
    return y.reshape(b, ho, wo, -1)


def maxpool2x2_pallas(x, max_rows=512):
    """2x2 max pool, stride 2, on NHWC input whose channel dim is a 128 multiple."""
    b, h, w, c = x.shape
    assert h % 2 == 0 and w % 2 == 0 and c % LANES == 0
    h2, w2 = h // 2, w // 2
    xr = x.reshape(b * h2, 2, w2, 2 * c)          # contiguous reshape (free view)
    r = b * h2
    tr, rp = _row_blocks(r, max_rows)
    if rp != r:
        xr = jnp.pad(xr, ((0, rp - r), (0, 0), (0, 0), (0, 0)))
    out = pl.pallas_call(
        _maxpool_kernel,
        grid=(rp // tr,),
        in_specs=[pl.BlockSpec((tr, 2, w2, 2 * c), lambda i: (i, 0, 0, 0))],
        out_specs=pl.BlockSpec((tr, w2, c), lambda i: (i, 0, 0)),
        out_shape=jax.ShapeDtypeStruct((rp, w2, c), jnp.float32),
        compiler_params=pltpu.CompilerParams(dimension_semantics=("parallel",)),
    )(xr)
    out = out[:r] if rp != r else out
    return out.reshape(b, h2, w2, c)


def fc_fused_pallas(x, w1, b1, w2, b2, w3, b3, max_rows=256):
    """fc1 -> ReLU -> fc2 -> ReLU -> fc3 in one kernel; weights resident in VMEM."""
    m, k = x.shape
    tm, mp = _row_blocks(m, max_rows)
    if mp != m:
        x = jnp.pad(x, ((0, mp - m), (0, 0)))
    n1, n2, n3 = w1.shape[1], w2.shape[1], w3.shape[1]
    out = pl.pallas_call(
        _fc_fused_kernel,
        grid=(mp // tm,),
        in_specs=[
            pl.BlockSpec((tm, k), lambda i: (i, 0)),
            pl.BlockSpec(w1.shape, lambda i: (0, 0)),
            pl.BlockSpec((1, n1), lambda i: (0, 0)),
            pl.BlockSpec(w2.shape, lambda i: (0, 0)),
            pl.BlockSpec((1, n2), lambda i: (0, 0)),
            pl.BlockSpec(w3.shape, lambda i: (0, 0)),
            pl.BlockSpec((1, n3), lambda i: (0, 0)),
        ],
        out_specs=pl.BlockSpec((tm, n3), lambda i: (i, 0)),
        out_shape=jax.ShapeDtypeStruct((mp, n3), jnp.float32),
        compiler_params=pltpu.CompilerParams(dimension_semantics=("parallel",)),
    )(x, w1, b1, w2, b2, w3, b3)
    return out[:m] if mp != m else out


# ----------------------------------------------------------------------------
# LeNet parameters (torch layout) + one-time weight preparation
# ----------------------------------------------------------------------------
def init_lenet_params(key, ch=1, num_classes=10):
    def uniform(k, shape, fan_in):
        bound = 1.0 / jnp.sqrt(jnp.float32(fan_in))
        return jax.random.uniform(k, shape, jnp.float32, -bound, bound)

    ks = jax.random.split(key, 10)
    return {
        "conv1_w": uniform(ks[0], (6, ch, 5, 5), ch * 5 * 5),
        "conv1_b": uniform(ks[1], (6,), ch * 5 * 5),
        "conv2_w": uniform(ks[2], (16, 6, 5, 5), 6 * 5 * 5),
        "conv2_b": uniform(ks[3], (16,), 6 * 5 * 5),
        "fc1_w": uniform(ks[4], (120, 16 * 5 * 5), 16 * 5 * 5),
        "fc1_b": uniform(ks[5], (120,), 16 * 5 * 5),
        "fc2_w": uniform(ks[6], (84, 120), 120),
        "fc2_b": uniform(ks[7], (84,), 120),
        "fc3_w": uniform(ks[8], (num_classes, 84), 84),
        "fc3_b": uniform(ks[9], (num_classes,), 84),
    }


def _prep_conv(w, b, n_pad=LANES):
    o, c, kh, kw = w.shape
    w_mat = w.transpose(2, 3, 1, 0).reshape(kh * kw * c, o)   # row order = (di, dj, c)
    w_pad = jnp.zeros((kh * kw * c, n_pad), jnp.float32).at[:, :o].set(w_mat)
    b_pad = jnp.zeros((1, n_pad), jnp.float32).at[0, :o].set(b)
    return w_pad, b_pad


def _prep_fc(w, b, k_pad, n_pad=LANES):
    o, k = w.shape
    w_pad = jnp.zeros((k_pad, n_pad), jnp.float32).at[:k, :o].set(w.T)
    b_pad = jnp.zeros((1, n_pad), jnp.float32).at[0, :o].set(b)
    return w_pad, b_pad


def _prep_fc1(w, b, c_real, hs, ws, c_pad=LANES, n_pad=LANES):
    # fc1 consumes the padded (hs, ws, c_pad) activation flattened directly:
    # permute the torch (c, h, w) feature order to (h, w, c) and insert zero
    # rows for the padded channels, so the forward needs no slice/transpose.
    o = w.shape[0]
    w_t = w.reshape(o, c_real, hs, ws).transpose(2, 3, 1, 0)        # (hs, ws, c, o)
    w_pad = jnp.zeros((hs, ws, c_pad, n_pad), jnp.float32).at[:, :, :c_real, :o].set(w_t)
    b_pad = jnp.zeros((1, n_pad), jnp.float32).at[0, :o].set(b)
    return w_pad.reshape(hs * ws * c_pad, n_pad), b_pad


def prepare_lenet_weights(params):
    """One-time padding / permutation of all weights into kernel-ready layouts."""
    c1_w, c1_b = _prep_conv(params["conv1_w"], params["conv1_b"])
    c2_w, c2_b = _prep_conv(params["conv2_w"], params["conv2_b"])
    f1_w, f1_b = _prep_fc1(params["fc1_w"], params["fc1_b"], c_real=16, hs=5, ws=5)
    f2_w, f2_b = _prep_fc(params["fc2_w"], params["fc2_b"], k_pad=LANES)
    f3_w, f3_b = _prep_fc(params["fc3_w"], params["fc3_b"], k_pad=LANES)
    return {
        "c1_w": c1_w, "c1_b": c1_b, "c2_w": c2_w, "c2_b": c2_b,
        "f1_w": f1_w, "f1_b": f1_b, "f2_w": f2_w, "f2_b": f2_b,
        "f3_w": f3_w, "f3_b": f3_b,
    }


# ----------------------------------------------------------------------------
# Forward pass (matches torch LeNet.forward)
# ----------------------------------------------------------------------------
def lenet_forward(prep, x, *, num_classes=10, conv2_in_ch=6):
    b = x.shape[0]
    x = jnp.transpose(x, (0, 2, 3, 1))                 # NCHW -> NHWC (boundary only)
    out = conv2d_pallas(x, prep["c1_w"], prep["c1_b"], 5, 5, padding=2, relu=True)
    out = maxpool2x2_pallas(out)                       # (B, 14, 14, 128)
    out = out[..., :conv2_in_ch]                       # drop lane padding before im2col
    out = conv2d_pallas(out, prep["c2_w"], prep["c2_b"], 5, 5, padding=0, relu=True)
    out = maxpool2x2_pallas(out)                       # (B, 5, 5, 128)
    out = out.reshape(b, -1)                           # (B, 3200); padded rows of fc1_w are 0
    out = fc_fused_pallas(out, prep["f1_w"], prep["f1_b"], prep["f2_w"], prep["f2_b"],
                          prep["f3_w"], prep["f3_b"])  # (B, 128)
    return out[:, :num_classes]


if __name__ == "__main__":
    key = jax.random.PRNGKey(0)
    pkey, xkey = jax.random.split(key)
    params = init_lenet_params(pkey, ch=1, num_classes=10)
    prep = prepare_lenet_weights(params)               # one-time, outside the jitted forward
    x = jax.random.normal(xkey, (2, 1, 28, 28), jnp.float32)

    fwd = jax.jit(functools.partial(lenet_forward, num_classes=10))
    logits = fwd(prep, x)
    jax.block_until_ready(logits)
    assert logits.shape == (2, 10) and logits.dtype == jnp.float32
    print("KERNEL_OK")
</pallas_src>

<mosaic_0001>
module attributes {stable_mosaic.version = 11 : i64} {
  func.func @_matmul_bias_kernel(%arg0: i32, %arg1: memref<784x25xf32, #tpu.memory_space<vmem>>, %arg2: memref<25x128xf32, #tpu.memory_space<vmem>>, %arg3: memref<1x128xf32, #tpu.memory_space<vmem>>, %arg4: memref<784x128xf32, #tpu.memory_space<vmem>>) attributes {dimension_semantics = [#tpu.dimension_semantics<parallel>], iteration_bounds = array<i64: 2>, scalar_prefetch = 0 : i64, scratch_operands = 0 : i64, tpu.core_type = #tpu.core_type<tc>, window_params = [{transform_indices = @transform_0, window_bounds = array<i64: 784, 25>}, {pipeline_mode = #tpu.pipeline_mode<synchronous>, transform_indices = @transform_1, window_bounds = array<i64: 25, 128>}, {pipeline_mode = #tpu.pipeline_mode<synchronous>, transform_indices = @transform_2, window_bounds = array<i64: 1, 128>}, {transform_indices = @transform_3, window_bounds = array<i64: 784, 128>}]} {
    %c0 = arith.constant 0 : index
    %c0_0 = arith.constant 0 : index
    %0 = vector.load %arg1[%c0, %c0_0] : memref<784x25xf32, #tpu.memory_space<vmem>>, vector<784x25xf32>
    %c0_1 = arith.constant 0 : index
    %c0_2 = arith.constant 0 : index
    %1 = vector.load %arg2[%c0_1, %c0_2] : memref<25x128xf32, #tpu.memory_space<vmem>>, vector<25x128xf32>
    %cst = arith.constant dense<0.000000e+00> : vector<784x128xf32>
    %2 = tpu.matmul %0, %1, %cst {dimension_numbers = #tpu.dot_dimension_numbers<[1], [0], [0], [1], [0, 0, 1, 1], [], []>} : vector<784x25xf32>, vector<25x128xf32>, vector<784x128xf32> -> vector<784x128xf32>
    %c0_3 = arith.constant 0 : index
    %c0_4 = arith.constant 0 : index
    %3 = vector.load %arg3[%c0_3, %c0_4] : memref<1x128xf32, #tpu.memory_space<vmem>>, vector<1x128xf32>
    %4 = vector.broadcast %3 : vector<1x128xf32> to vector<784x128xf32>
    %5 = arith.addf %2, %4 : vector<784x128xf32>
    %cst_5 = arith.constant 0.000000e+00 : f32
    %6 = vector.broadcast %cst_5 : f32 to vector<784x128xf32>
    %7 = arith.maximumf %5, %6 : vector<784x128xf32>
    %c0_6 = arith.constant 0 : index
    %c0_7 = arith.constant 0 : index
    %8 = vector.load %arg4[%c0_6, %c0_7] : memref<784x128xf32, #tpu.memory_space<vmem>>, vector<784x128xf32>
    tpu.vector_store %arg4[%c0_6, %c0_7], %7 {strides = array<i32>} : memref<784x128xf32, #tpu.memory_space<vmem>>, vector<784x128xf32>,
    return
  }
  func.func @transform_0(%arg0: i32) -> (i32, i32) {
    %c0_i32 = arith.constant 0 : i32
    %c0_i32_0 = arith.constant 0 : i32
    return %arg0, %c0_i32 : i32, i32
  }
  func.func @transform_1(%arg0: i32) -> (i32, i32) {
    %c0_i32 = arith.constant 0 : i32
    %c0_i32_0 = arith.constant 0 : i32
    %c0_i32_1 = arith.constant 0 : i32
    return %c0_i32, %c0_i32_0 : i32, i32
  }
  func.func @transform_2(%arg0: i32) -> (i32, i32) {
    %c0_i32 = arith.constant 0 : i32
    %c0_i32_0 = arith.constant 0 : i32
    %c0_i32_1 = arith.constant 0 : i32
    return %c0_i32, %c0_i32_0 : i32, i32
  }
  func.func @transform_3(%arg0: i32) -> (i32, i32) {
    %c0_i32 = arith.constant 0 : i32
    %c0_i32_0 = arith.constant 0 : i32
    return %arg0, %c0_i32 : i32, i32
  }
}

module attributes {stable_mosaic.version = 11 : i64} {
  func.func @_maxpool_kernel(%arg0: i32, %arg1: memref<28x2x14x256xf32, #tpu.memory_space<vmem>>, %arg2: memref<28x14x128xf32, #tpu.memory_space<vmem>>) attributes {dimension_semantics = [#tpu.dimension_semantics<parallel>], iteration_bounds = array<i64: 1>, scalar_prefetch = 0 : i64, scratch_operands = 0 : i64, tpu.core_type = #tpu.core_type<tc>, window_params = [{transform_indices = @transform_0, window_bounds = array<i64: 28, 2, 14, 256>}, {transform_indices = @transform_1, window_bounds = array<i64: 28, 14, 128>}]} {
    %c0 = arith.constant 0 : index
    %c0_0 = arith.constant 0 : index
    %c0_1 = arith.constant 0 : index
    %c0_2 = arith.constant 0 : index
    %0 = vector.load %arg1[%c0, %c0_0, %c0_1, %c0_2] : memref<28x2x14x256xf32, #tpu.memory_space<vmem>>, vector<28x2x14x256xf32>
    %1 = vector.extract_strided_slice %0 {offsets = [0, 0, 0, 0], sizes = [28, 2, 14, 128], strides = [1, 1, 1, 1]} : vector<28x2x14x256xf32> to vector<28x2x14x128xf32>
    %2 = vector.extract_strided_slice %0 {offsets = [0, 0, 0, 128], sizes = [28, 2, 14, 128], strides = [1, 1, 1, 1]} : vector<28x2x14x256xf32> to vector<28x2x14x128xf32>
    %3 = arith.maximumf %1, %2 : vector<28x2x14x128xf32>
    %4 = vector.extract_strided_slice %3 {offsets = [0, 0, 0, 0], sizes = [28, 1, 14, 128], strides = [1, 1, 1, 1]} : vector<28x2x14x128xf32> to vector<28x1x14x128xf32>
    %5 = vector.shape_cast %4 : vector<28x1x14x128xf32> to vector<28x14x128xf32>
    %6 = vector.extract_strided_slice %3 {offsets = [0, 1, 0, 0], sizes = [28, 1, 14, 128], strides = [1, 1, 1, 1]} : vector<28x2x14x128xf32> to vector<28x1x14x128xf32>
    %7 = vector.shape_cast %6 : vector<28x1x14x128xf32> to vector<28x14x128xf32>
    %8 = arith.maximumf %5, %7 : vector<28x14x128xf32>
    %c0_3 = arith.constant 0 : index
    %c0_4 = arith.constant 0 : index
    %c0_5 = arith.constant 0 : index
    %9 = vector.load %arg2[%c0_3, %c0_4, %c0_5] : memref<28x14x128xf32, #tpu.memory_space<vmem>>, vector<28x14x128xf32>
    tpu.vector_store %arg2[%c0_3, %c0_4, %c0_5], %8 {strides = array<i32>} : memref<28x14x128xf32, #tpu.memory_space<vmem>>, vector<28x14x128xf32>,
    return
  }
  func.func @transform_0(%arg0: i32) -> (i32, i32, i32, i32) {
    %c0_i32 = arith.constant 0 : i32
    %c0_i32_0 = arith.constant 0 : i32
    %c0_i32_1 = arith.constant 0 : i32
    %c0_i32_2 = arith.constant 0 : i32
    return %arg0, %c0_i32, %c0_i32_0, %c0_i32_1 : i32, i32, i32, i32
  }
  func.func @transform_1(%arg0: i32) -> (i32, i32, i32) {
    %c0_i32 = arith.constant 0 : i32
    %c0_i32_0 = arith.constant 0 : i32
    %c0_i32_1 = arith.constant 0 : i32
    return %arg0, %c0_i32, %c0_i32_0 : i32, i32, i32
  }
}

module attributes {stable_mosaic.version = 11 : i64} {
  func.func @_matmul_bias_kernel(%arg0: i32, %arg1: memref<200x150xf32, #tpu.memory_space<vmem>>, %arg2: memref<150x128xf32, #tpu.memory_space<vmem>>, %arg3: memref<1x128xf32, #tpu.memory_space<vmem>>, %arg4: memref<200x128xf32, #tpu.memory_space<vmem>>) attributes {dimension_semantics = [#tpu.dimension_semantics<parallel>], iteration_bounds = array<i64: 1>, scalar_prefetch = 0 : i64, scratch_operands = 0 : i64, tpu.core_type = #tpu.core_type<tc>, window_params = [{transform_indices = @transform_0, window_bounds = array<i64: 200, 150>}, {pipeline_mode = #tpu.pipeline_mode<synchronous>, transform_indices = @transform_1, window_bounds = array<i64: 150, 128>}, {pipeline_mode = #tpu.pipeline_mode<synchronous>, transform_indices = @transform_2, window_bounds = array<i64: 1, 128>}, {transform_indices = @transform_3, window_bounds = array<i64: 200, 128>}]} {
    %c0 = arith.constant 0 : index
    %c0_0 = arith.constant 0 : index
    %0 = vector.load %arg1[%c0, %c0_0] : memref<200x150xf32, #tpu.memory_space<vmem>>, vector<200x150xf32>
    %c0_1 = arith.constant 0 : index
    %c0_2 = arith.constant 0 : index
    %1 = vector.load %arg2[%c0_1, %c0_2] : memref<150x128xf32, #tpu.memory_space<vmem>>, vector<150x128xf32>
    %cst = arith.constant dense<0.000000e+00> : vector<200x128xf32>
    %2 = tpu.matmul %0, %1, %cst {dimension_numbers = #tpu.dot_dimension_numbers<[1], [0], [0], [1], [0, 0, 1, 1], [], []>} : vector<200x150xf32>, vector<150x128xf32>, vector<200x128xf32> -> vector<200x128xf32>
    %c0_3 = arith.constant 0 : index
    %c0_4 = arith.constant 0 : index
    %3 = vector.load %arg3[%c0_3, %c0_4] : memref<1x128xf32, #tpu.memory_space<vmem>>, vector<1x128xf32>
    %4 = vector.broadcast %3 : vector<1x128xf32> to vector<200x128xf32>
    %5 = arith.addf %2, %4 : vector<200x128xf32>
    %cst_5 = arith.constant 0.000000e+00 : f32
    %6 = vector.broadcast %cst_5 : f32 to vector<200x128xf32>
    %7 = arith.maximumf %5, %6 : vector<200x128xf32>
    %c0_6 = arith.constant 0 : index
    %c0_7 = arith.constant 0 : index
    %8 = vector.load %arg4[%c0_6, %c0_7] : memref<200x128xf32, #tpu.memory_space<vmem>>, vector<200x128xf32>
    tpu.vector_store %arg4[%c0_6, %c0_7], %7 {strides = array<i32>} : memref<200x128xf32, #tpu.memory_space<vmem>>, vector<200x128xf32>,
    return
  }
  func.func @transform_0(%arg0: i32) -> (i32, i32) {
    %c0_i32 = arith.constant 0 : i32
    %c0_i32_0 = arith.constant 0 : i32
    return %arg0, %c0_i32 : i32, i32
  }
  func.func @transform_1(%arg0: i32) -> (i32, i32) {
    %c0_i32 = arith.constant 0 : i32
    %c0_i32_0 = arith.constant 0 : i32
    %c0_i32_1 = arith.constant 0 : i32
    return %c0_i32, %c0_i32_0 : i32, i32
  }
  func.func @transform_2(%arg0: i32) -> (i32, i32) {
    %c0_i32 = arith.constant 0 : i32
    %c0_i32_0 = arith.constant 0 : i32
    %c0_i32_1 = arith.constant 0 : i32
    return %c0_i32, %c0_i32_0 : i32, i32
  }
  func.func @transform_3(%arg0: i32) -> (i32, i32) {
    %c0_i32 = arith.constant 0 : i32
    %c0_i32_0 = arith.constant 0 : i32
    return %arg0, %c0_i32 : i32, i32
  }
}

module attributes {stable_mosaic.version = 11 : i64} {
  func.func @_maxpool_kernel(%arg0: i32, %arg1: memref<10x2x5x256xf32, #tpu.memory_space<vmem>>, %arg2: memref<10x5x128xf32, #tpu.memory_space<vmem>>) attributes {dimension_semantics = [#tpu.dimension_semantics<parallel>], iteration_bounds = array<i64: 1>, scalar_prefetch = 0 : i64, scratch_operands = 0 : i64, tpu.core_type = #tpu.core_type<tc>, window_params = [{transform_indices = @transform_0, window_bounds = array<i64: 10, 2, 5, 256>}, {transform_indices = @transform_1, window_bounds = array<i64: 10, 5, 128>}]} {
    %c0 = arith.constant 0 : index
    %c0_0 = arith.constant 0 : index
    %c0_1 = arith.constant 0 : index
    %c0_2 = arith.constant 0 : index
    %0 = vector.load %arg1[%c0, %c0_0, %c0_1, %c0_2] : memref<10x2x5x256xf32, #tpu.memory_space<vmem>>, vector<10x2x5x256xf32>
    %1 = vector.extract_strided_slice %0 {offsets = [0, 0, 0, 0], sizes = [10, 2, 5, 128], strides = [1, 1, 1, 1]} : vector<10x2x5x256xf32> to vector<10x2x5x128xf32>
    %2 = vector.extract_strided_slice %0 {offsets = [0, 0, 0, 128], sizes = [10, 2, 5, 128], strides = [1, 1, 1, 1]} : vector<10x2x5x256xf32> to vector<10x2x5x128xf32>
    %3 = arith.maximumf %1, %2 : vector<10x2x5x128xf32>
    %4 = vector.extract_strided_slice %3 {offsets = [0, 0, 0, 0], sizes = [10, 1, 5, 128], strides = [1, 1, 1, 1]} : vector<10x2x5x128xf32> to vector<10x1x5x128xf32>
    %5 = vector.shape_cast %4 : vector<10x1x5x128xf32> to vector<10x5x128xf32>
    %6 = vector.extract_strided_slice %3 {offsets = [0, 1, 0, 0], sizes = [10, 1, 5, 128], strides = [1, 1, 1, 1]} : vector<10x2x5x128xf32> to vector<10x1x5x128xf32>
    %7 = vector.shape_cast %6 : vector<10x1x5x128xf32> to vector<10x5x128xf32>
    %8 = arith.maximumf %5, %7 : vector<10x5x128xf32>
    %c0_3 = arith.constant 0 : index
    %c0_4 = arith.constant 0 : index
    %c0_5 = arith.constant 0 : index
    %9 = vector.load %arg2[%c0_3, %c0_4, %c0_5] : memref<10x5x128xf32, #tpu.memory_space<vmem>>, vector<10x5x128xf32>
    tpu.vector_store %arg2[%c0_3, %c0_4, %c0_5], %8 {strides = array<i32>} : memref<10x5x128xf32, #tpu.memory_space<vmem>>, vector<10x5x128xf32>,
    return
  }
  func.func @transform_0(%arg0: i32) -> (i32, i32, i32, i32) {
    %c0_i32 = arith.constant 0 : i32
    %c0_i32_0 = arith.constant 0 : i32
    %c0_i32_1 = arith.constant 0 : i32
    %c0_i32_2 = arith.constant 0 : i32
    return %arg0, %c0_i32, %c0_i32_0, %c0_i32_1 : i32, i32, i32, i32
  }
  func.func @transform_1(%arg0: i32) -> (i32, i32, i32) {
    %c0_i32 = arith.constant 0 : i32
    %c0_i32_0 = arith.constant 0 : i32
    %c0_i32_1 = arith.constant 0 : i32
    return %arg0, %c0_i32, %c0_i32_0 : i32, i32, i32
  }
}

module attributes {stable_mosaic.version = 11 : i64} {
  func.func @_fc_fused_kernel(%arg0: i32, %arg1: memref<2x3200xf32, #tpu.memory_space<vmem>>, %arg2: memref<3200x128xf32, #tpu.memory_space<vmem>>, %arg3: memref<1x128xf32, #tpu.memory_space<vmem>>, %arg4: memref<128x128xf32, #tpu.memory_space<vmem>>, %arg5: memref<1x128xf32, #tpu.memory_space<vmem>>, %arg6: memref<128x128xf32, #tpu.memory_space<vmem>>, %arg7: memref<1x128xf32, #tpu.memory_space<vmem>>, %arg8: memref<2x128xf32, #tpu.memory_space<vmem>>) attributes {dimension_semantics = [#tpu.dimension_semantics<parallel>], iteration_bounds = array<i64: 1>, scalar_prefetch = 0 : i64, scratch_operands = 0 : i64, tpu.core_type = #tpu.core_type<tc>, window_params = [{transform_indices = @transform_0, window_bounds = array<i64: 2, 3200>}, {pipeline_mode = #tpu.pipeline_mode<synchronous>, transform_indices = @transform_1, window_bounds = array<i64: 3200, 128>}, {pipeline_mode = #tpu.pipeline_mode<synchronous>, transform_indices = @transform_2, window_bounds = array<i64: 1, 128>}, {pipeline_mode = #tpu.pipeline_mode<synchronous>, transform_indices = @transform_3, window_bounds = array<i64: 128, 128>}, {pipeline_mode = #tpu.pipeline_mode<synchronous>, transform_indices = @transform_4, window_bounds = array<i64: 1, 128>}, {pipeline_mode = #tpu.pipeline_mode<synchronous>, transform_indices = @transform_5, window_bounds = array<i64: 128, 128>}, {pipeline_mode = #tpu.pipeline_mode<synchronous>, transform_indices = @transform_6, window_bounds = array<i64: 1, 128>}, {transform_indices = @transform_7, window_bounds = array<i64: 2, 128>}]} {
    %c0 = arith.constant 0 : index
    %c0_0 = arith.constant 0 : index
    %0 = vector.load %arg1[%c0, %c0_0] : memref<2x3200xf32, #tpu.memory_space<vmem>>, vector<2x3200xf32>
    %c0_1 = arith.constant 0 : index
    %c0_2 = arith.constant 0 : index
    %1 = vector.load %arg2[%c0_1, %c0_2] : memref<3200x128xf32, #tpu.memory_space<vmem>>, vector<3200x128xf32>
    %cst = arith.constant dense<0.000000e+00> : vector<2x128xf32>
    %2 = tpu.matmul %0, %1, %cst {dimension_numbers = #tpu.dot_dimension_numbers<[1], [0], [0], [1], [0, 0, 1, 1], [], []>} : vector<2x3200xf32>, vector<3200x128xf32>, vector<2x128xf32> -> vector<2x128xf32>
    %c0_3 = arith.constant 0 : index
    %c0_4 = arith.constant 0 : index
    %3 = vector.load %arg3[%c0_3, %c0_4] : memref<1x128xf32, #tpu.memory_space<vmem>>, vector<1x128xf32>
    %4 = vector.broadcast %3 : vector<1x128xf32> to vector<2x128xf32>
    %5 = arith.addf %2, %4 : vector<2x128xf32>
    %cst_5 = arith.constant 0.000000e+00 : f32
    %6 = vector.broadcast %cst_5 : f32 to vector<2x128xf32>
    %7 = arith.maximumf %5, %6 : vector<2x128xf32>
    %c0_6 = arith.constant 0 : index
    %c0_7 = arith.constant 0 : index
    %8 = vector.load %arg4[%c0_6, %c0_7] : memref<128x128xf32, #tpu.memory_space<vmem>>, vector<128x128xf32>
    %cst_8 = arith.constant dense<0.000000e+00> : vector<2x128xf32>
    %9 = tpu.matmul %7, %8, %cst_8 {dimension_numbers = #tpu.dot_dimension_numbers<[1], [0], [0], [1], [0, 0, 1, 1], [], []>} : vector<2x128xf32>, vector<128x128xf32>, vector<2x128xf32> -> vector<2x128xf32>
    %c0_9 = arith.constant 0 : index
    %c0_10 = arith.constant 0 : index
    %10 = vector.load %arg5[%c0_9, %c0_10] : memref<1x128xf32, #tpu.memory_space<vmem>>, vector<1x128xf32>
    %11 = vector.broadcast %10 : vector<1x128xf32> to vector<2x128xf32>
    %12 = arith.addf %9, %11 : vector<2x128xf32>
    %cst_11 = arith.constant 0.000000e+00 : f32
    %13 = vector.broadcast %cst_11 : f32 to vector<2x128xf32>
    %14 = arith.maximumf %12, %13 : vector<2x128xf32>
    %c0_12 = arith.constant 0 : index
    %c0_13 = arith.constant 0 : index
    %15 = vector.load %arg6[%c0_12, %c0_13] : memref<128x128xf32, #tpu.memory_space<vmem>>, vector<128x128xf32>
    %cst_14 = arith.constant dense<0.000000e+00> : vector<2x128xf32>
    %16 = tpu.matmul %14, %15, %cst_14 {dimension_numbers = #tpu.dot_dimension_numbers<[1], [0], [0], [1], [0, 0, 1, 1], [], []>} : vector<2x128xf32>, vector<128x128xf32>, vector<2x128xf32> -> vector<2x128xf32>
    %c0_15 = arith.constant 0 : index
    %c0_16 = arith.constant 0 : index
    %17 = vector.load %arg7[%c0_15, %c0_16] : memref<1x128xf32, #tpu.memory_space<vmem>>, vector<1x128xf32>
    %18 = vector.broadcast %17 : vector<1x128xf32> to vector<2x128xf32>
    %19 = arith.addf %16, %18 : vector<2x128xf32>
    %c0_17 = arith.constant 0 : index
    %c0_18 = arith.constant 0 : index
    %20 = vector.load %arg8[%c0_17, %c0_18] : memref<2x128xf32, #tpu.memory_space<vmem>>, vector<2x128xf32>
    tpu.vector_store %arg8[%c0_17, %c0_18], %19 {strides = array<i32>} : memref<2x128xf32, #tpu.memory_space<vmem>>, vector<2x128xf32>,
    return
  }
  func.func @transform_0(%arg0: i32) -> (i32, i32) {
    %c0_i32 = arith.constant 0 : i32
    %c0_i32_0 = arith.constant 0 : i32
    return %arg0, %c0_i32 : i32, i32
  }
  func.func @transform_1(%arg0: i32) -> (i32, i32) {
    %c0_i32 = arith.constant 0 : i32
    %c0_i32_0 = arith.constant 0 : i32
    %c0_i32_1 = arith.constant 0 : i32
    return %c0_i32, %c0_i32_0 : i32, i32
  }
  func.func @transform_2(%arg0: i32) -> (i32, i32) {
    %c0_i32 = arith.constant 0 : i32
    %c0_i32_0 = arith.constant 0 : i32
    %c0_i32_1 = arith.constant 0 : i32
    return %c0_i32, %c0_i32_0 : i32, i32
  }
  func.func @transform_3(%arg0: i32) -> (i32, i32) {
    %c0_i32 = arith.constant 0 : i32
    %c0_i32_0 = arith.constant 0 : i32
    %c0_i32_1 = arith.constant 0 : i32
    return %c0_i32, %c0_i32_0 : i32, i32
  }
  func.func @transform_4(%arg0: i32) -> (i32, i32) {
    %c0_i32 = arith.constant 0 : i32
    %c0_i32_0 = arith.constant 0 : i32
    %c0_i32_1 = arith.constant 0 : i32
    return %c0_i32, %c0_i32_0 : i32, i32
  }
  func.func @transform_5(%arg0: i32) -> (i32, i32) {
    %c0_i32 = arith.constant 0 : i32
    %c0_i32_0 = arith.constant 0 : i32
    %c0_i32_1 = arith.constant 0 : i32
    return %c0_i32, %c0_i32_0 : i32, i32
  }
  func.func @transform_6(%arg0: i32) -> (i32, i32) {
    %c0_i32 = arith.constant 0 : i32
    %c0_i32_0 = arith.constant 0 : i32
    %c0_i32_1 = arith.constant 0 : i32
    return %c0_i32, %c0_i32_0 : i32, i32
  }
  func.func @transform_7(%arg0: i32) -> (i32, i32) {
    %c0_i32 = arith.constant 0 : i32
    %c0_i32_0 = arith.constant 0 : i32
    return %arg0, %c0_i32 : i32, i32
  }
}

</mosaic_0001>

<llo_original>
// kernel: lenet_forward.5
$region0: #{lenet_forward.5}
  #allocation0 [shape = 'u32[]', space=smem, size = 0x4, offset = 0x4, fixed_abs, tag = 'smem constant byte address 0x4 - core index']
  #allocation1 [shape = 'u32[144,128]{1,0:T(1,128)}', space=vmem, size = 0x12000, scoped, tag = 'internal scratch']
  %s0 = inlined_call_operand.vmem [shape: f32[1568,25], index: 0, kind: input, shape index: {}]
  %s1 = inlined_call_operand.vmem [shape: f32[25,128], index: 1, kind: input, shape index: {}]
  %s2 = inlined_call_operand.vmem [shape: f32[1,128], index: 2, kind: input, shape index: {}]
  %s3 = inlined_call_operand.vmem [shape: f32[1568,128], index: 3, kind: output, shape index: {}]
  %s4 = sld [smem:[#allocation0]]
  $region45: #{lenet_forward.5} parent=0
    _
  %s6 = ssub.s32 1, %s4
  %s7 = scalar_select 0, %s6, %s4
  loop: start=0, step=1, limit=4
  $region2: #{lenet_forward.5} parent=0 // loop_pre_header
    _
  $region3: #{lenet_forward.5} parent=0 // loop_header
    %s9 = sphi 0, %s13
    %p10 = scmp.ge.s32.totalorder %s9, 4
    %s19 = sphi 0, %s21
    %s22 = sphi 0, %s19
    %s23 = sphi 0, %s22
    %s39 = sphi 0, %s23
    %s43 = sphi 0, %s43
    %s45 = sphi 0, %s43
    %s46 = sphi 0, %s45
    %s60 = sphi 0, %s46
    %s64 = sphi 0, %s64
    %s66 = sphi 0, %s64
    %s67 = sphi 0, %s66
    %s81 = sphi 0, %s67
    %s87 = sphi 0, %s89
    %s90 = sphi 0, %s87
    %s91 = sphi 0, %s90
    %s107 = sphi 0, %s91
  $region4: #{lenet_forward.5} parent=0 // loop_header_branch
    %12 = sbr.rel (%p10) target = $region8
  $region5: #{lenet_forward.5} parent=0 // loop_body
    %s14 = ssub.s32 %s9, 1
    %s15 = ssub.s32 %s9, 2
    %s16 = sadd.s32 %s9, 1
    %s17 = ssub.s32 %s9, %s16
    %p18 = scmp.eq.s32.totalorder %s17, 0
    %s20 = sadd.s32 %s19, 1
    %s21 = scalar_select %p18, %s19, %s20
    %p24 = pneg %p18
    %p25 = scmp.eq.s32.totalorder %s9, 1
    %p26 = por %p24, %p25
    %p27 = scmp.ne.s32.totalorder %s19, %s22
    %p28 = scmp.eq.s32.totalorder %s9, 0
    %p29 = por %p27, %p28
    %p30 = scmp.ne.s32.totalorder %s19, %s22
    %p31 = scmp.eq.s32.totalorder %s14, 1
    %p32 = por %p30, %p31
    %p33 = scmp.ne.s32.totalorder %s22, %s23
    %p34 = scmp.eq.s32.totalorder %s14, 0
    %p35 = por %p33, %p34
    %p36 = scmp.ne.s32.totalorder %s22, %s23
    %p37 = scmp.eq.s32.totalorder %s15, 1
    %p38 = por %p36, %p37
    %p40 = scmp.ne.s32.totalorder %s23, %s39
    %p41 = scmp.eq.s32.totalorder %s15, 0
    %p42 = por %p40, %p41
    %s44 = sadd.s32 %s43, 1
    %p47 = scmp.eq.s32.totalorder %s9, 1
    %p48 = scmp.ne.s32.totalorder %s43, %s45
    %p49 = scmp.eq.s32.totalorder %s9, 0
    %p50 = por %p48, %p49
    %p51 = scmp.ne.s32.totalorder %s43, %s45
    %p52 = scmp.eq.s32.totalorder %s14, 1
    %p53 = por %p51, %p52
    %p54 = scmp.ne.s32.totalorder %s45, %s46
    %p55 = scmp.eq.s32.totalorder %s14, 0
    %p56 = por %p54, %p55
    %p57 = scmp.ne.s32.totalorder %s45, %s46
    %p58 = scmp.eq.s32.totalorder %s15, 1
    %p59 = por %p57, %p58
    %p61 = scmp.ne.s32.totalorder %s46, %s60
    %p62 = scmp.eq.s32.totalorder %s15, 0
    %p63 = por %p61, %p62
    %s65 = sadd.s32 %s64, 1
    %p68 = scmp.eq.s32.totalorder %s9, 1
    %p69 = scmp.ne.s32.totalorder %s64, %s66
    %p70 = scmp.eq.s32.totalorder %s9, 0
    %p71 = por %p69, %p70
    %p72 = scmp.ne.s32.totalorder %s64, %s66
    %p73 = scmp.eq.s32.totalorder %s14, 1
    %p74 = por %p72, %p73
    %p75 = scmp.ne.s32.totalorder %s66, %s67
    %p76 = scmp.eq.s32.totalorder %s14, 0
    %p77 = por %p75, %p76
    %p78 = scmp.ne.s32.totalorder %s66, %s67
    %p79 = scmp.eq.s32.totalorder %s15, 1
    %p80 = por %p78, %p79
    %p82 = scmp.ne.s32.totalorder %s67, %s81
    %p83 = scmp.eq.s32.totalorder %s15, 0
    %p84 = por %p82, %p83
    %s85 = ssub.s32 %s9, %s16
    %p86 = scmp.eq.s32.totalorder %s85, 0
    %s88 = sadd.s32 %s87, 1
    %s89 = scalar_select %p86, %s87, %s88
    %p92 = pneg %p86
    %p93 = scmp.eq.s32.totalorder %s9, 1
    %p94 = por %p92, %p93
    %p95 = scmp.ne.s32.totalorder %s87, %s90
    %p96 = scmp.eq.s32.totalorder %s9, 0
    %p97 = por %p95, %p96
    %p98 = scmp.ne.s32.totalorder %s87, %s90
    %p99 = scmp.eq.s32.totalorder %s14, 1
    %p100 = por %p98, %p99
    %p101 = scmp.ne.s32.totalorder %s90, %s91
    %p102 = scmp.eq.s32.totalorder %s14, 0
    %p103 = por %p101, %p102
    %p104 = scmp.ne.s32.totalorder %s90, %s91
    %p105 = scmp.eq.s32.totalorder %s15, 1
    %p106 = por %p104, %p105
    %p108 = scmp.ne.s32.totalorder %s91, %s107
    %p109 = scmp.eq.s32.totalorder %s15, 0
    %p110 = por %p108, %p109
    %p111 = scmp.le.s32.totalorder 1, %s9
    %p112 = scmp.lt.s32.totalorder %s9, 3
    %p113 = pnand %p111, %p112
    %p114 = pneg %p113
    // Predicated region
    $region9: #{lenet_forward.5} parent=5 // pred_check
      _
    $region10: #{lenet_forward.5} parent=5 // pred_check_branch
      %116 = sbr.rel (%p113) target = $region12
    $region11: #{lenet_forward.5} parent=5 // pred_region
      %s117 = ssub.s32 %s9, 1
      // Predicated region
      $region13: #{lenet_forward.5} parent=11 // pred_check
        %p118 = pneg %p56
      $region14: #{lenet_forward.5} parent=11 // pred_check_branch
        %120 = sbr.rel (%p118) target = $region16
      $region15: #{lenet_forward.5} parent=11 // pred_region
        _
      $region16: #{lenet_forward.5} parent=11 // pred_fallthru
        _
      // Predicated region
      $region17: #{lenet_forward.5} parent=11 // pred_check
        %p121 = pneg %p77
      $region18: #{lenet_forward.5} parent=11 // pred_check_branch
        %123 = sbr.rel (%p121) target = $region20
      $region19: #{lenet_forward.5} parent=11 // pred_region
        _
      $region20: #{lenet_forward.5} parent=11 // pred_fallthru
        _
    $region12: #{lenet_forward.5} parent=5 // pred_fallthru
      _
    %p124 = scmp.lt.s32.totalorder %s9, 2
    // Predicated region
    $region21: #{lenet_forward.5} parent=5 // pred_check
      %p125 = pneg %p124
    $region22: #{lenet_forward.5} parent=5 // pred_check_branch
      %127 = sbr.rel (%p125) target = $region24
    $region23: #{lenet_forward.5} parent=5 // pred_region
      // Predicated region
      $region25: #{lenet_forward.5} parent=23 // pred_check
        %p128 = pneg %p29
      $region26: #{lenet_forward.5} parent=23 // pred_check_branch
        %130 = sbr.rel (%p128) target = $region28
      $region27: #{lenet_forward.5} parent=23 // pred_region
        %s131 = smul.u32 98, %s9
        %p132 = scmp.lt.s32.totalorder %s131, 195
        %s133 = scalar_select %p132, %s131, 195
        %s134 = smul.addr %s133, 8
        %s135 = scalar_lea.vmem %s0, %s134
        %s136 = smul.u32 98, %s9
      $region28: #{lenet_forward.5} parent=23 // pred_fallthru
        _
    $region24: #{lenet_forward.5} parent=5 // pred_fallthru
      _
    %p137 = scmp.le.s32.totalorder 1, %s9
    %p138 = scmp.lt.s32.totalorder %s9, 3
    %p139 = pnand %p137, %p138
    %p140 = pneg %p139
    // Predicated region
    $region29: #{lenet_forward.5} parent=5 // pred_check
      _
    $region30: #{lenet_forward.5} parent=5 // pred_check_branch
      %142 = sbr.rel (%p139) target = $region32
    $region31: #{lenet_forward.5} parent=5 // pred_region
      %s143 = ssub.s32 %s9, 1
      %s144 = smul.u32 98, %s14
      %p145 = scmp.lt.s32.totalorder %s144, 195
      %s146 = scalar_select %p145, %s144, 195
      %s147 = smul.addr %s146, 8
      %s148 = scalar_lea.vmem %s0, %s147
      %p149 = pneg %p35
      %p150 = pneg %p32
      %p151 = pneg %p56
      %p152 = pneg %p53
      %p153 = pneg %p77
      %p154 = pneg %p74
      %p155 = pneg %p103
      %p156 = pneg %p100
      %s157 = smul.u32 98, %s14
      %p158 = scmp.lt.s32.totalorder %s157, 195
      %s159 = scalar_select %p158, %s157, 195
      %s160 = smul.addr %s159, 8
      %s161 = scalar_lea.vmem %s3, %s160
      %s162 = smul.u32 98, %s14
      %p163 = scmp.lt.s32.totalorder %s162, 195
      %s164 = scalar_select %p163, %s162, 195
      %s165 = smul.addr %s164, 8
      %s166 = scalar_lea.vmem %s0, %s165
      %s167 = smul.u32 98, %s14
      %s168 = smul.u32 98, %s14
      %p169 = scmp.lt.s32.totalorder %s168, 195
      %s170 = scalar_select %p169, %s168, 195
      %s171 = smul.addr %s170, 8
      %s172 = scalar_lea.vmem %s3, %s171
      %s173 = smul.u32 98, %s14
      %v174 = vld [vmem:[%s166] sm:$0xff]
      %v175 = vld [vmem:[%s166 + $0x8] sm:$0xff]
      %v176 = vld [vmem:[%s166 + $0x10] sm:$0xff]
      %v177 = vld [vmem:[%s166 + $0x18] sm:$0xff]
      %v178 = vld [vmem:[%s166 + $0x20] sm:$0xff]
      %v179 = vld [vmem:[%s166 + $0x28] sm:$0xff]
      %v180 = vld [vmem:[%s166 + $0x30] sm:$0xff]
      %v181 = vld [vmem:[%s166 + $0x38] sm:$0xff]
      %v182 = vld [vmem:[%s166 + $0x40] sm:$0xff]
      %v183 = vld [vmem:[%s166 + $0x48] sm:$0xff]
      %v184 = vld [vmem:[%s166 + $0x50] sm:$0xff]
      %v185 = vld [vmem:[%s166 + $0x58] sm:$0xff]
      %v186 = vld [vmem:[%s166 + $0x60] sm:$0xff]
      %v187 = vld [vmem:[%s166 + $0x68] sm:$0xff]
      %v188 = vld [vmem:[%s166 + $0x70] sm:$0xff]
      %v189 = vld [vmem:[%s166 + $0x78] sm:$0xff]
      %v190 = vld [vmem:[%s166 + $0x80] sm:$0xff]
      %v191 = vld [vmem:[%s166 + $0x88] sm:$0xff]
      %v192 = vld [vmem:[%s166 + $0x90] sm:$0xff]
      %v193 = vld [vmem:[%s166 + $0x98] sm:$0xff]
      %v194 = vld [vmem:[%s166 + $0xa0] sm:$0xff]
      %v195 = vld [vmem:[%s166 + $0xa8] sm:$0xff]
      %v196 = vld [vmem:[%s166 + $0xb0] sm:$0xff]
      %v197 = vld [vmem:[%s166 + $0xb8] sm:$0xff]
      %v198 = vld [vmem:[%s166 + $0xc0] sm:$0xff]
      %v199 = vld [vmem:[%s166 + $0xc8] sm:$0xff]
      %v200 = vld [vmem:[%s166 + $0xd0] sm:$0xff]
      %v201 = vld [vmem:[%s166 + $0xd8] sm:$0xff]
      %v202 = vld [vmem:[%s166 + $0xe0] sm:$0xff]
      %v203 = vld [vmem:[%s166 + $0xe8] sm:$0xff]
      %v204 = vld [vmem:[%s166 + $0xf0] sm:$0xff]
      %v205 = vld [vmem:[%s166 + $0xf8] sm:$0xff]
      %v206 = vld [vmem:[%s166 + $0x100] sm:$0xff]
      %v207 = vld [vmem:[%s166 + $0x108] sm:$0xff]
      %v208 = vld [vmem:[%s166 + $0x110] sm:$0xff]
      %v209 = vld [vmem:[%s166 + $0x118] sm:$0xff]
      %v210 = vld [vmem:[%s166 + $0x120] sm:$0xff]
      %v211 = vld [vmem:[%s166 + $0x128] sm:$0xff]
      %v212 = vld [vmem:[%s166 + $0x130] sm:$0xff]
      %v213 = vld [vmem:[%s166 + $0x138] sm:$0xff]
      %v214 = vld [vmem:[%s166 + $0x140] sm:$0xff]
      %v215 = vld [vmem:[%s166 + $0x148] sm:$0xff]
      %v216 = vld [vmem:[%s166 + $0x150] sm:$0xff]
      %v217 = vld [vmem:[%s166 + $0x158] sm:$0xff]
      %v218 = vld [vmem:[%s166 + $0x160] sm:$0xff]
      %v219 = vld [vmem:[%s166 + $0x168] sm:$0xff]
      %v220 = vld [vmem:[%s166 + $0x170] sm:$0xff]
      %v221 = vld [vmem:[%s166 + $0x178] sm:$0xff]
      %v222 = vld [vmem:[%s166 + $0x180] sm:$0xff]
      %v223 = vld [vmem:[%s166 + $0x188] sm:$0xff]
      %v224 = vld [vmem:[%s166 + $0x190] sm:$0xff]
      %v225 = vld [vmem:[%s166 + $0x198] sm:$0xff]
      %v226 = vld [vmem:[%s166 + $0x1a0] sm:$0xff]
      %v227 = vld [vmem:[%s166 + $0x1a8] sm:$0xff]
      %v228 = vld [vmem:[%s166 + $0x1b0] sm:$0xff]
      %v229 = vld [vmem:[%s166 + $0x1b8] sm:$0xff]
      %v230 = vld [vmem:[%s166 + $0x1c0] sm:$0xff]
      %v231 = vld [vmem:[%s166 + $0x1c8] sm:$0xff]
      %v232 = vld [vmem:[%s166 + $0x1d0] sm:$0xff]
      %v233 = vld [vmem:[%s166 + $0x1d8] sm:$0xff]
      %v234 = vld [vmem:[%s166 + $0x1e0] sm:$0xff]
      %v235 = vld [vmem:[%s166 + $0x1e8] sm:$0xff]
      %v236 = vld [vmem:[%s166 + $0x1f0] sm:$0xff]
      %v237 = vld [vmem:[%s166 + $0x1f8] sm:$0xff]
      %v238 = vld [vmem:[%s166 + $0x200] sm:$0xff]
      %v239 = vld [vmem:[%s166 + $0x208] sm:$0xff]
      %v240 = vld [vmem:[%s166 + $0x210] sm:$0xff]
      %v241 = vld [vmem:[%s166 + $0x218] sm:$0xff]
      %v242 = vld [vmem:[%s166 + $0x220] sm:$0xff]
      %v243 = vld [vmem:[%s166 + $0x228] sm:$0xff]
      %v244 = vld [vmem:[%s166 + $0x230] sm:$0xff]
      %v245 = vld [vmem:[%s166 + $0x238] sm:$0xff]
      %v246 = vld [vmem:[%s166 + $0x240] sm:$0xff]
      %v247 = vld [vmem:[%s166 + $0x248] sm:$0xff]
      %v248 = vld [vmem:[%s166 + $0x250] sm:$0xff]
      %v249 = vld [vmem:[%s166 + $0x258] sm:$0xff]
      %v250 = vld [vmem:[%s166 + $0x260] sm:$0xff]
      %v251 = vld [vmem:[%s166 + $0x268] sm:$0xff]
      %v252 = vld [vmem:[%s166 + $0x270] sm:$0xff]
      %v253 = vld [vmem:[%s166 + $0x278] sm:$0xff]
      %v254 = vld [vmem:[%s166 + $0x280] sm:$0xff]
      %v255 = vld [vmem:[%s166 + $0x288] sm:$0xff]
      %v256 = vld [vmem:[%s166 + $0x290] sm:$0xff]
      %v257 = vld [vmem:[%s166 + $0x298] sm:$0xff]
      %v258 = vld [vmem:[%s166 + $0x2a0] sm:$0xff]
      %v259 = vld [vmem:[%s166 + $0x2a8] sm:$0xff]
      %v260 = vld [vmem:[%s166 + $0x2b0] sm:$0xff]
      %v261 = vld [vmem:[%s166 + $0x2b8] sm:$0xff]
      %v262 = vld [vmem:[%s166 + $0x2c0] sm:$0xff]
      %v263 = vld [vmem:[%s166 + $0x2c8] sm:$0xff]
      %v264 = vld [vmem:[%s166 + $0x2d0] sm:$0xff]
      %v265 = vld [vmem:[%s166 + $0x2d8] sm:$0xff]
      %v266 = vld [vmem:[%s166 + $0x2e0] sm:$0xff]
      %v267 = vld [vmem:[%s166 + $0x2e8] sm:$0xff]
      %v268 = vld [vmem:[%s166 + $0x2f0] sm:$0xff]
      %v269 = vld [vmem:[%s166 + $0x2f8] sm:$0xff]
      %v270 = vld [vmem:[%s166 + $0x300] sm:$0xff]
      %v271 = vld [vmem:[%s166 + $0x308] sm:$0xff]
      %v272 = vld [vmem:[%s1] sm:$0xff]
      %v273 = vld [vmem:[%s1 + $0x8] sm:$0xff]
      %v274 = vld [vmem:[%s1 + $0x10] sm:$0xff]
      %v275 = vld [vmem:[%s1 + $0x18] sm:$0x1]
      %v276 = vld [vmem:[%s2] sm:$0x1]
      %v278 = vlaneseq
      %v279 = vshrl.u32 %v278, 7
      %v280 = vsub.s32 0, %v279
      %v281 = vrot.slane %v276, %v280
      %vm283 = vcmask 203776
      %v285 = vsel %vm283, %v174, 0
      %v288 = vsel %vm283, %v175, 0
      %v291 = vsel %vm283, %v176, 0
      %v294 = vsel %vm283, %v177, 0
      %v297 = vsel %vm283, %v178, 0
      %v300 = vsel %vm283, %v179, 0
      %v303 = vsel %vm283, %v180, 0
      %v306 = vsel %vm283, %v181, 0
      %v309 = vsel %vm283, %v182, 0
      %v312 = vsel %vm283, %v183, 0
      %v315 = vsel %vm283, %v184, 0
      %v318 = vsel %vm283, %v185, 0
      %v321 = vsel %vm283, %v186, 0
      %v324 = vsel %vm283, %v187, 0
      %v327 = vsel %vm283, %v188, 0
      %v330 = vsel %vm283, %v189, 0
      %v333 = vsel %vm283, %v190, 0
      %v336 = vsel %vm283, %v191, 0
      %v339 = vsel %vm283, %v192, 0
      %v342 = vsel %vm283, %v193, 0
      %v345 = vsel %vm283, %v194, 0
      %v348 = vsel %vm283, %v195, 0
      %v351 = vsel %vm283, %v196, 0
      %v354 = vsel %vm283, %v197, 0
      %v357 = vsel %vm283, %v198, 0
      %v360 = vsel %vm283, %v199, 0
      %v363 = vsel %vm283, %v200, 0
      %v366 = vsel %vm283, %v201, 0
      %v369 = vsel %vm283, %v202, 0
      %v372 = vsel %vm283, %v203, 0
      %v375 = vsel %vm283, %v204, 0
      %v378 = vsel %vm283, %v205, 0
      %v381 = vsel %vm283, %v206, 0
      %v384 = vsel %vm283, %v207, 0
      %v387 = vsel %vm283, %v208, 0
      %v390 = vsel %vm283, %v209, 0
      %v393 = vsel %vm283, %v210, 0
      %v396 = vsel %vm283, %v211, 0
      %v399 = vsel %vm283, %v212, 0
      %v402 = vsel %vm283, %v213, 0
      %v405 = vsel %vm283, %v214, 0
      %v408 = vsel %vm283, %v215, 0
      %v411 = vsel %vm283, %v216, 0
      %v414 = vsel %vm283, %v217, 0
      %v417 = vsel %vm283, %v218, 0
      %v420 = vsel %vm283, %v219, 0
      %v423 = vsel %vm283, %v220, 0
      %v426 = vsel %vm283, %v221, 0
      %v429 = vsel %vm283, %v222, 0
      %v432 = vsel %vm283, %v223, 0
      %v435 = vsel %vm283, %v224, 0
      %v438 = vsel %vm283, %v225, 0
      %v441 = vsel %vm283, %v226, 0
      %v444 = vsel %vm283, %v227, 0
      %v447 = vsel %vm283, %v228, 0
      %v450 = vsel %vm283, %v229, 0
      %v453 = vsel %vm283, %v230, 0
      %v456 = vsel %vm283, %v231, 0
      %v459 = vsel %vm283, %v232, 0
      %v462 = vsel %vm283, %v233, 0
      %v465 = vsel %vm283, %v234, 0
      %v468 = vsel %vm283, %v235, 0
      %v471 = vsel %vm283, %v236, 0
      %v474 = vsel %vm283, %v237, 0
      %v477 = vsel %vm283, %v238, 0
      %v480 = vsel %vm283, %v239, 0
      %v483 = vsel %vm283, %v240, 0
      %v486 = vsel %vm283, %v241, 0
      %v489 = vsel %vm283, %v242, 0
      %v492 = vsel %vm283, %v243, 0
      %v495 = vsel %vm283, %v244, 0
      %v498 = vsel %vm283, %v245, 0
      %v501 = vsel %vm283, %v246, 0
      %v504 = vsel %vm283, %v247, 0
      %v507 = vsel %vm283, %v248, 0
      %v510 = vsel %vm283, %v249, 0
      %v513 = vsel %vm283, %v250, 0
      %v516 = vsel %vm283, %v251, 0
      %v519 = vsel %vm283, %v252, 0
      %v522 = vsel %vm283, %v253, 0
      %v525 = vsel %vm283, %v254, 0
      %v528 = vsel %vm283, %v255, 0
      %v531 = vsel %vm283, %v256, 0
      %v534 = vsel %vm283, %v257, 0
      %v537 = vsel %vm283, %v258, 0
      %v540 = vsel %vm283, %v259, 0
      %v543 = vsel %vm283, %v260, 0
      %v546 = vsel %vm283, %v261, 0
      %v549 = vsel %vm283, %v262, 0
      %v552 = vsel %vm283, %v263, 0
      %v555 = vsel %vm283, %v264, 0
      %v558 = vsel %vm283, %v265, 0
      %v561 = vsel %vm283, %v266, 0
      %v564 = vsel %vm283, %v267, 0
      %v567 = vsel %vm283, %v268, 0
      %v570 = vsel %vm283, %v269, 0
      %v573 = vsel %vm283, %v270, 0
      %v576 = vsel %vm283, %v271, 0
      %vm578 = vcmask 1040384
      %v580 = vsel %vm578, %v275, 0
      %582 = vmatprep.subr.mxu0 0.0
      %583 = vmatpush1.msra.mxu0 0.0
      %584 = vmatprep.subr.mxu0 0.0
      %585 = vmatpush1.msra.mxu0 0.0
      %586 = vmatprep.subr.mxu0 0.0
      %587 = vmatpush1.msra.mxu0 0.0
      %588 = vmatprep.subr.mxu0 0.0
      %589 = vmatpush1.msra.mxu0 0.0
      %590 = vmatprep.subr.mxu0 0.0
      %591 = vmatpush1.msra.mxu0 0.0
      %592 = vmatprep.subr.mxu0 0.0
      %593 = vmatpush1.msra.mxu0 0.0
      %594 = vmatprep.subr.mxu0 0.0
      %595 = vmatpush1.msra.mxu0 0.0
      %596 = vmatprep.subr.mxu0 0.0
      %597 = vmatpush1.msra.mxu0 0.0
      %598 = vmatprep.subr.mxu0 0.0
      %599 = vmatpush1.msra.mxu0 0.0
      %600 = vmatprep.subr.mxu0 0.0
      %601 = vmatpush1.msra.mxu0 0.0
      %602 = vmatprep.subr.mxu0 0.0
      %603 = vmatpush1.msra.mxu0 0.0
      %604 = vmatprep.subr.mxu0 0.0
      %605 = vmatpush1.msra.mxu0 0.0
      %606 = vmatprep.subr.mxu0 0.0
      %607 = vmatpush1.msra.mxu0 %v580
      %608 = vmatprep.subr.mxu0 0.0
      %609 = vmatpush1.msra.mxu0 %v274
      %610 = vmatprep.subr.mxu0 0.0
      %611 = vmatpush1.msra.mxu0 %v273
      %612 = vmatprep.subr.mxu0 0.0
      %613 = vmatpush1.msra.mxu0 %v272
      %614 = vmatprep.subr.mxu0 0.0
      %615 = vmatpush2.msra.mxu0 0.0
      %616 = vmatprep.subr.mxu0 0.0
      %617 = vmatpush2.msra.mxu0 0.0
      %618 = vmatprep.subr.mxu0 0.0
      %619 = vmatpush2.msra.mxu0 0.0
      %620 = vmatprep.subr.mxu0 0.0
      %621 = vmatpush2.msra.mxu0 0.0
      %622 = vmatprep.subr.mxu0 0.0
      %623 = vmatpush2.msra.mxu0 0.0
      %624 = vmatprep.subr.mxu0 0.0
      %625 = vmatpush2.msra.mxu0 0.0
      %626 = vmatprep.subr.mxu0 0.0
      %627 = vmatpush2.msra.mxu0 0.0
      %628 = vmatprep.subr.mxu0 0.0
      %629 = vmatpush2.msra.mxu0 0.0
      %630 = vmatprep.subr.mxu0 0.0
      %631 = vmatpush2.msra.mxu0 0.0
      %632 = vmatprep.subr.mxu0 0.0
      %633 = vmatpush2.msra.mxu0 0.0
      %634 = vmatprep.subr.mxu0 0.0
      %635 = vmatpush2.msra.mxu0 0.0
      %636 = vmatprep.subr.mxu0 0.0
      %637 = vmatpush2.msra.mxu0 0.0
      %638 = vmatprep.subr.mxu0 0.0
      %639 = vmatpush2.msra.mxu0 0.0
      %640 = vmatprep.subr.mxu0 0.0
      %641 = vmatpush2.msra.mxu0 0.0
      %642 = vmatprep.subr.mxu0 0.0
      %643 = vmatpush2.msra.mxu0 0.0
      %644 = vmatprep.subr.mxu0 0.0
      %645 = vmatpush2.msra.mxu0 0.0
      %646 = vmatprep.mubr.f32.mxu0 0.0
      %647 = vmatmul.mubr.f32.gmra.mxu0 %v285
      %v648 = vpop.f32.mrf.mxu0
      %v649 = vadd.f32 %v281, %v648
      %v650 = vpop.f32.mrf.mxu0
      %651 = vmatprep.mubr.f32.mxu0 0.0
      %652 = vmatmul.mubr.f32.gmra.mxu0 %v288
      %v653 = vpop.f32.mrf.mxu0
      %v654 = vadd.f32 %v281, %v653
      %v655 = vpop.f32.mrf.mxu0
      %656 = vmatprep.mubr.f32.mxu0 0.0
      %657 = vmatmul.mubr.f32.gmra.mxu0 %v291
      %v658 = vpop.f32.mrf.mxu0
      %v659 = vadd.f32 %v281, %v658
      %v660 = vpop.f32.mrf.mxu0
      %661 = vmatprep.mubr.f32.mxu0 0.0
      %662 = vmatmul.mubr.f32.gmra.mxu0 %v294
      %v663 = vpop.f32.mrf.mxu0
      %v664 = vadd.f32 %v281, %v663
      %v665 = vpop.f32.mrf.mxu0
      %666 = vmatprep.mubr.f32.mxu0 0.0
      %667 = vmatmul.mubr.f32.gmra.mxu0 %v297
      %v668 = vpop.f32.mrf.mxu0
      %v669 = vadd.f32 %v281, %v668
      %v670 = vpop.f32.mrf.mxu0
      %671 = vmatprep.mubr.f32.mxu0 0.0
      %672 = vmatmul.mubr.f32.gmra.mxu0 %v300
      %v673 = vpop.f32.mrf.mxu0
      %v674 = vadd.f32 %v281, %v673
      %v675 = vpop.f32.mrf.mxu0
      %676 = vmatprep.mubr.f32.mxu0 0.0
      %677 = vmatmul.mubr.f32.gmra.mxu0 %v303
      %v678 = vpop.f32.mrf.mxu0
      %v679 = vadd.f32 %v281, %v678
      %v680 = vpop.f32.mrf.mxu0
      %681 = vmatprep.mubr.f32.mxu0 0.0
      %682 = vmatmul.mubr.f32.gmra.mxu0 %v306
      %v683 = vpop.f32.mrf.mxu0
      %v684 = vadd.f32 %v281, %v683
      %v685 = vpop.f32.mrf.mxu0
      %686 = vmatprep.mubr.f32.mxu0 0.0
      %687 = vmatmul.mubr.f32.gmra.mxu0 %v309
      %v688 = vpop.f32.mrf.mxu0
      %v689 = vadd.f32 %v281, %v688
      %v690 = vpop.f32.mrf.mxu0
      %691 = vmatprep.mubr.f32.mxu0 0.0
      %692 = vmatmul.mubr.f32.gmra.mxu0 %v312
      %v693 = vpop.f32.mrf.mxu0
      %v694 = vadd.f32 %v281, %v693
      %v695 = vpop.f32.mrf.mxu0
      %696 = vmatprep.mubr.f32.mxu0 0.0
      %697 = vmatmul.mubr.f32.gmra.mxu0 %v315
      %v698 = vpop.f32.mrf.mxu0
      %v699 = vadd.f32 %v281, %v698
      %v700 = vpop.f32.mrf.mxu0
      %701 = vmatprep.mubr.f32.mxu0 0.0
      %702 = vmatmul.mubr.f32.gmra.mxu0 %v318
      %v703 = vpop.f32.mrf.mxu0
      %v704 = vadd.f32 %v281, %v703
      %v705 = vpop.f32.mrf.mxu0
      %706 = vmatprep.mubr.f32.mxu0 0.0
      %707 = vmatmul.mubr.f32.gmra.mxu0 %v321
      %v708 = vpop.f32.mrf.mxu0
      %v709 = vadd.f32 %v281, %v708
      %v710 = vpop.f32.mrf.mxu0
      %711 = vmatprep.mubr.f32.mxu0 0.0
      %712 = vmatmul.mubr.f32.gmra.mxu0 %v324
      %v713 = vpop.f32.mrf.mxu0
      %v714 = vadd.f32 %v281, %v713
      %v715 = vpop.f32.mrf.mxu0
      %716 = vmatprep.mubr.f32.mxu0 0.0
      %717 = vmatmul.mubr.f32.gmra.mxu0 %v327
      %v718 = vpop.f32.mrf.mxu0
      %v719 = vadd.f32 %v281, %v718
      %v720 = vpop.f32.mrf.mxu0
      %721 = vmatprep.mubr.f32.mxu0 0.0
      %722 = vmatmul.mubr.f32.gmra.mxu0 %v330
      %v723 = vpop.f32.mrf.mxu0
      %v724 = vadd.f32 %v281, %v723
      %v725 = vpop.f32.mrf.mxu0
      %726 = vmatprep.mubr.f32.mxu0 0.0
      %727 = vmatmul.mubr.f32.gmra.mxu0 %v333
      %v728 = vpop.f32.mrf.mxu0
      %v729 = vadd.f32 %v281, %v728
      %v730 = vpop.f32.mrf.mxu0
      %731 = vmatprep.mubr.f32.mxu0 0.0
      %732 = vmatmul.mubr.f32.gmra.mxu0 %v336
      %v733 = vpop.f32.mrf.mxu0
      %v734 = vadd.f32 %v281, %v733
      %v735 = vpop.f32.mrf.mxu0
      %736 = vmatprep.mubr.f32.mxu0 0.0
      %737 = vmatmul.mubr.f32.gmra.mxu0 %v339
      %v738 = vpop.f32.mrf.mxu0
      %v739 = vadd.f32 %v281, %v738
      %v740 = vpop.f32.mrf.mxu0
      %741 = vmatprep.mubr.f32.mxu0 0.0
      %742 = vmatmul.mubr.f32.gmra.mxu0 %v342
      %v743 = vpop.f32.mrf.mxu0
      %v744 = vadd.f32 %v281, %v743
      %v745 = vpop.f32.mrf.mxu0
      %746 = vmatprep.mubr.f32.mxu0 0.0
      %747 = vmatmul.mubr.f32.gmra.mxu0 %v345
      %v748 = vpop.f32.mrf.mxu0
      %v749 = vadd.f32 %v281, %v748
      %v750 = vpop.f32.mrf.mxu0
      %751 = vmatprep.mubr.f32.mxu0 0.0
      %752 = vmatmul.mubr.f32.gmra.mxu0 %v348
      %v753 = vpop.f32.mrf.mxu0
      %v754 = vadd.f32 %v281, %v753
      %v755 = vpop.f32.mrf.mxu0
      %756 = vmatprep.mubr.f32.mxu0 0.0
      %757 = vmatmul.mubr.f32.gmra.mxu0 %v351
      %v758 = vpop.f32.mrf.mxu0
      %v759 = vadd.f32 %v281, %v758
      %v760 = vpop.f32.mrf.mxu0
      %761 = vmatprep.mubr.f32.mxu0 0.0
      %762 = vmatmul.mubr.f32.gmra.mxu0 %v354
      %v763 = vpop.f32.mrf.mxu0
      %v764 = vadd.f32 %v281, %v763
      %v765 = vpop.f32.mrf.mxu0
      %766 = vmatprep.mubr.f32.mxu0 0.0
      %767 = vmatmul.mubr.f32.gmra.mxu0 %v357
      %v768 = vpop.f32.mrf.mxu0
      %v769 = vadd.f32 %v281, %v768
      %v770 = vpop.f32.mrf.mxu0
      %771 = vmatprep.mubr.f32.mxu0 0.0
      %772 = vmatmul.mubr.f32.gmra.mxu0 %v360
      %v773 = vpop.f32.mrf.mxu0
      %v774 = vadd.f32 %v281, %v773
      %v775 = vpop.f32.mrf.mxu0
      %776 = vmatprep.mubr.f32.mxu0 0.0
      %777 = vmatmul.mubr.f32.gmra.mxu0 %v363
      %v778 = vpop.f32.mrf.mxu0
      %v779 = vadd.f32 %v281, %v778
      %v780 = vpop.f32.mrf.mxu0
      %781 = vmatprep.mubr.f32.mxu0 0.0
      %782 = vmatmul.mubr.f32.gmra.mxu0 %v366
      %v783 = vpop.f32.mrf.mxu0
      %v784 = vadd.f32 %v281, %v783
      %v785 = vpop.f32.mrf.mxu0
      %786 = vmatprep.mubr.f32.mxu0 0.0
      %787 = vmatmul.mubr.f32.gmra.mxu0 %v369
      %v788 = vpop.f32.mrf.mxu0
      %v789 = vadd.f32 %v281, %v788
      %v790 = vpop.f32.mrf.mxu0
      %791 = vmatprep.mubr.f32.mxu0 0.0
      %792 = vmatmul.mubr.f32.gmra.mxu0 %v372
      %v793 = vpop.f32.mrf.mxu0
      %v794 = vadd.f32 %v281, %v793
      %v795 = vpop.f32.mrf.mxu0
      %796 = vmatprep.mubr.f32.mxu0 0.0
      %797 = vmatmul.mubr.f32.gmra.mxu0 %v375
      %v798 = vpop.f32.mrf.mxu0
      %v799 = vadd.f32 %v281, %v798
      %v800 = vpop.f32.mrf.mxu0
      %801 = vmatprep.mubr.f32.mxu0 0.0
      %802 = vmatmul.mubr.f32.gmra.mxu0 %v378
      %v803 = vpop.f32.mrf.mxu0
      %v804 = vadd.f32 %v281, %v803
      %v805 = vpop.f32.mrf.mxu0
      %806 = vmatprep.mubr.f32.mxu0 0.0
      %807 = vmatmul.mubr.f32.gmra.mxu0 %v381
      %v808 = vpop.f32.mrf.mxu0
      %v809 = vadd.f32 %v281, %v808
      %v810 = vpop.f32.mrf.mxu0
      %811 = vmatprep.mubr.f32.mxu0 0.0
      %812 = vmatmul.mubr.f32.gmra.mxu0 %v384
      %v813 = vpop.f32.mrf.mxu0
      %v814 = vadd.f32 %v281, %v813
      %v815 = vpop.f32.mrf.mxu0
      %816 = vmatprep.mubr.f32.mxu0 0.0
      %817 = vmatmul.mubr.f32.gmra.mxu0 %v387
      %v818 = vpop.f32.mrf.mxu0
      %v819 = vadd.f32 %v281, %v818
      %v820 = vpop.f32.mrf.mxu0
      %821 = vmatprep.mubr.f32.mxu0 0.0
      %822 = vmatmul.mubr.f32.gmra.mxu0 %v390
      %v823 = vpop.f32.mrf.mxu0
      %v824 = vadd.f32 %v281, %v823
      %v825 = vpop.f32.mrf.mxu0
      %826 = vmatprep.mubr.f32.mxu0 0.0
      %827 = vmatmul.mubr.f32.gmra.mxu0 %v393
      %v828 = vpop.f32.mrf.mxu0
      %v829 = vadd.f32 %v281, %v828
      %v830 = vpop.f32.mrf.mxu0
      %831 = vmatprep.mubr.f32.mxu0 0.0
      %832 = vmatmul.mubr.f32.gmra.mxu0 %v396
      %v833 = vpop.f32.mrf.mxu0
      %v834 = vadd.f32 %v281, %v833
      %v835 = vpop.f32.mrf.mxu0
      %836 = vmatprep.mubr.f32.mxu0 0.0
      %837 = vmatmul.mubr.f32.gmra.mxu0 %v399
      %v838 = vpop.f32.mrf.mxu0
      %v839 = vadd.f32 %v281, %v838
      %v840 = vpop.f32.mrf.mxu0
      %841 = vmatprep.mubr.f32.mxu0 0.0
      %842 = vmatmul.mubr.f32.gmra.mxu0 %v402
      %v843 = vpop.f32.mrf.mxu0
      %v844 = vadd.f32 %v281, %v843
      %v845 = vpop.f32.mrf.mxu0
      %846 = vmatprep.mubr.f32.mxu0 0.0
      %847 = vmatmul.mubr.f32.gmra.mxu0 %v405
      %v848 = vpop.f32.mrf.mxu0
      %v849 = vadd.f32 %v281, %v848
      %v850 = vpop.f32.mrf.mxu0
      %851 = vmatprep.mubr.f32.mxu0 0.0
      %852 = vmatmul.mubr.f32.gmra.mxu0 %v408
      %v853 = vpop.f32.mrf.mxu0
      %v854 = vadd.f32 %v281, %v853
      %v855 = vpop.f32.mrf.mxu0
      %856 = vmatprep.mubr.f32.mxu0 0.0
      %857 = vmatmul.mubr.f32.gmra.mxu0 %v411
      %v858 = vpop.f32.mrf.mxu0
      %v859 = vadd.f32 %v281, %v858
      %v860 = vpop.f32.mrf.mxu0
      %861 = vmatprep.mubr.f32.mxu0 0.0
      %862 = vmatmul.mubr.f32.gmra.mxu0 %v414
      %v863 = vpop.f32.mrf.mxu0
      %v864 = vadd.f32 %v281, %v863
      %v865 = vpop.f32.mrf.mxu0
      %866 = vmatprep.mubr.f32.mxu0 0.0
      %867 = vmatmul.mubr.f32.gmra.mxu0 %v417
      %v868 = vpop.f32.mrf.mxu0
      %v869 = vadd.f32 %v281, %v868
      %v870 = vpop.f32.mrf.mxu0
      %871 = vmatprep.mubr.f32.mxu0 0.0
      %872 = vmatmul.mubr.f32.gmra.mxu0 %v420
      %v873 = vpop.f32.mrf.mxu0
      %v874 = vadd.f32 %v281, %v873
      %v875 = vpop.f32.mrf.mxu0
      %876 = vmatprep.mubr.f32.mxu0 0.0
      %877 = vmatmul.mubr.f32.gmra.mxu0 %v423
      %v878 = vpop.f32.mrf.mxu0
      %v879 = vadd.f32 %v281, %v878
      %v880 = vpop.f32.mrf.mxu0
      %881 = vmatprep.mubr.f32.mxu0 0.0
      %882 = vmatmul.mubr.f32.gmra.mxu0 %v426
      %v883 = vpop.f32.mrf.mxu0
      %v884 = vadd.f32 %v281, %v883
      %v885 = vpop.f32.mrf.mxu0
      %886 = vmatprep.mubr.f32.mxu0 0.0
      %887 = vmatmul.mubr.f32.gmra.mxu0 %v429
      %v888 = vpop.f32.mrf.mxu0
      %v889 = vadd.f32 %v281, %v888
      %v890 = vpop.f32.mrf.mxu0
      %891 = vmatprep.mubr.f32.mxu0 0.0
      %892 = vmatmul.mubr.f32.gmra.mxu0 %v432
      %v893 = vpop.f32.mrf.mxu0
      %v894 = vadd.f32 %v281, %v893
      %v895 = vpop.f32.mrf.mxu0
      %896 = vmatprep.mubr.f32.mxu0 0.0
      %897 = vmatmul.mubr.f32.gmra.mxu0 %v435
      %v898 = vpop.f32.mrf.mxu0
      %v899 = vadd.f32 %v281, %v898
      %v900 = vpop.f32.mrf.mxu0
      %901 = vmatprep.mubr.f32.mxu0 0.0
      %902 = vmatmul.mubr.f32.gmra.mxu0 %v438
      %v903 = vpop.f32.mrf.mxu0
      %v904 = vadd.f32 %v281, %v903
      %v905 = vpop.f32.mrf.mxu0
      %906 = vmatprep.mubr.f32.mxu0 0.0
      %907 = vmatmul.mubr.f32.gmra.mxu0 %v441
      %v908 = vpop.f32.mrf.mxu0
      %v909 = vadd.f32 %v281, %v908
      %v910 = vpop.f32.mrf.mxu0
      %911 = vmatprep.mubr.f32.mxu0 0.0
      %912 = vmatmul.mubr.f32.gmra.mxu0 %v444
      %v913 = vpop.f32.mrf.mxu0
      %v914 = vadd.f32 %v281, %v913
      %v915 = vpop.f32.mrf.mxu0
      %916 = vmatprep.mubr.f32.mxu0 0.0
      %917 = vmatmul.mubr.f32.gmra.mxu0 %v447
      %v918 = vpop.f32.mrf.mxu0
      %v919 = vadd.f32 %v281, %v918
      %v920 = vpop.f32.mrf.mxu0
      %921 = vmatprep.mubr.f32.mxu0 0.0
      %922 = vmatmul.mubr.f32.gmra.mxu0 %v450
      %v923 = vpop.f32.mrf.mxu0
      %v924 = vadd.f32 %v281, %v923
      %v925 = vpop.f32.mrf.mxu0
      %926 = vmatprep.mubr.f32.mxu0 0.0
      %927 = vmatmul.mubr.f32.gmra.mxu0 %v453
      %v928 = vpop.f32.mrf.mxu0
      %v929 = vadd.f32 %v281, %v928
      %v930 = vpop.f32.mrf.mxu0
      %931 = vmatprep.mubr.f32.mxu0 0.0
      %932 = vmatmul.mubr.f32.gmra.mxu0 %v456
      %v933 = vpop.f32.mrf.mxu0
      %v934 = vadd.f32 %v281, %v933
      %v935 = vpop.f32.mrf.mxu0
      %936 = vmatprep.mubr.f32.mxu0 0.0
      %937 = vmatmul.mubr.f32.gmra.mxu0 %v459
      %v938 = vpop.f32.mrf.mxu0
      %v939 = vadd.f32 %v281, %v938
      %v940 = vpop.f32.mrf.mxu0
      %941 = vmatprep.mubr.f32.mxu0 0.0
      %942 = vmatmul.mubr.f32.gmra.mxu0 %v462
      %v943 = vpop.f32.mrf.mxu0
      %v944 = vadd.f32 %v281, %v943
      %v945 = vpop.f32.mrf.mxu0
      %946 = vmatprep.mubr.f32.mxu0 0.0
      %947 = vmatmul.mubr.f32.gmra.mxu0 %v465
      %v948 = vpop.f32.mrf.mxu0
      %v949 = vadd.f32 %v281, %v948
      %v950 = vpop.f32.mrf.mxu0
      %951 = vmatprep.mubr.f32.mxu0 0.0
      %952 = vmatmul.mubr.f32.gmra.mxu0 %v468
      %v953 = vpop.f32.mrf.mxu0
      %v954 = vadd.f32 %v281, %v953
      %v955 = vpop.f32.mrf.mxu0
      %956 = vmatprep.mubr.f32.mxu0 0.0
      %957 = vmatmul.mubr.f32.gmra.mxu0 %v471
      %v958 = vpop.f32.mrf.mxu0
      %v959 = vadd.f32 %v281, %v958
      %v960 = vpop.f32.mrf.mxu0
      %961 = vmatprep.mubr.f32.mxu0 0.0
      %962 = vmatmul.mubr.f32.gmra.mxu0 %v474
      %v963 = vpop.f32.mrf.mxu0
      %v964 = vadd.f32 %v281, %v963
      %v965 = vpop.f32.mrf.mxu0
      %966 = vmatprep.mubr.f32.mxu0 0.0
      %967 = vmatmul.mubr.f32.gmra.mxu0 %v477
      %v968 = vpop.f32.mrf.mxu0
      %v969 = vadd.f32 %v281, %v968
      %v970 = vpop.f32.mrf.mxu0
      %971 = vmatprep.mubr.f32.mxu0 0.0
      %972 = vmatmul.mubr.f32.gmra.mxu0 %v480
      %v973 = vpop.f32.mrf.mxu0
      %v974 = vadd.f32 %v281, %v973
      %v975 = vpop.f32.mrf.mxu0
      %976 = vmatprep.mubr.f32.mxu0 0.0
      %977 = vmatmul.mubr.f32.gmra.mxu0 %v483
      %v978 = vpop.f32.mrf.mxu0
      %v979 = vadd.f32 %v281, %v978
      %v980 = vpop.f32.mrf.mxu0
      %981 = vmatprep.mubr.f32.mxu0 0.0
      %982 = vmatmul.mubr.f32.gmra.mxu0 %v486
      %v983 = vpop.f32.mrf.mxu0
      %v984 = vadd.f32 %v281, %v983
      %v985 = vpop.f32.mrf.mxu0
      %986 = vmatprep.mubr.f32.mxu0 0.0
      %987 = vmatmul.mubr.f32.gmra.mxu0 %v489
      %v988 = vpop.f32.mrf.mxu0
      %v989 = vadd.f32 %v281, %v988
      %v990 = vpop.f32.mrf.mxu0
      %991 = vmatprep.mubr.f32.mxu0 0.0
      %992 = vmatmul.mubr.f32.gmra.mxu0 %v492
      %v993 = vpop.f32.mrf.mxu0
      %v994 = vadd.f32 %v281, %v993
      %v995 = vpop.f32.mrf.mxu0
      %996 = vmatprep.mubr.f32.mxu0 0.0
      %997 = vmatmul.mubr.f32.gmra.mxu0 %v495
      %v998 = vpop.f32.mrf.mxu0
      %v999 = vadd.f32 %v281, %v998
      %v1000 = vpop.f32.mrf.mxu0
      %1001 = vmatprep.mubr.f32.mxu0 0.0
      %1002 = vmatmul.mubr.f32.gmra.mxu0 %v498
      %v1003 = vpop.f32.mrf.mxu0
      %v1004 = vadd.f32 %v281, %v1003
      %v1005 = vpop.f32.mrf.mxu0
      %1006 = vmatprep.mubr.f32.mxu0 0.0
      %1007 = vmatmul.mubr.f32.gmra.mxu0 %v501
      %v1008 = vpop.f32.mrf.mxu0
      %v1009 = vadd.f32 %v281, %v1008
      %v1010 = vpop.f32.mrf.mxu0
      %1011 = vmatprep.mubr.f32.mxu0 0.0
      %1012 = vmatmul.mubr.f32.gmra.mxu0 %v504
      %v1013 = vpop.f32.mrf.mxu0
      %v1014 = vadd.f32 %v281, %v1013
      %v1015 = vpop.f32.mrf.mxu0
      %1016 = vmatprep.mubr.f32.mxu0 0.0
      %1017 = vmatmul.mubr.f32.gmra.mxu0 %v507
      %v1018 = vpop.f32.mrf.mxu0
      %v1019 = vadd.f32 %v281, %v1018
      %v1020 = vpop.f32.mrf.mxu0
      %1021 = vmatprep.mubr.f32.mxu0 0.0
      %1022 = vmatmul.mubr.f32.gmra.mxu0 %v510
      %v1023 = vpop.f32.mrf.mxu0
      %v1024 = vadd.f32 %v281, %v1023
      %v1025 = vpop.f32.mrf.mxu0
      %1026 = vmatprep.mubr.f32.mxu0 0.0
      %1027 = vmatmul.mubr.f32.gmra.mxu0 %v513
      %v1028 = vpop.f32.mrf.mxu0
      %v1029 = vadd.f32 %v281, %v1028
      %v1030 = vpop.f32.mrf.mxu0
      %1031 = vmatprep.mubr.f32.mxu0 0.0
      %1032 = vmatmul.mubr.f32.gmra.mxu0 %v516
      %v1033 = vpop.f32.mrf.mxu0
      %v1034 = vadd.f32 %v281, %v1033
      %v1035 = vpop.f32.mrf.mxu0
      %1036 = vmatprep.mubr.f32.mxu0 0.0
      %1037 = vmatmul.mubr.f32.gmra.mxu0 %v519
      %v1038 = vpop.f32.mrf.mxu0
      %v1039 = vadd.f32 %v281, %v1038
      %v1040 = vpop.f32.mrf.mxu0
      %1041 = vmatprep.mubr.f32.mxu0 0.0
      %1042 = vmatmul.mubr.f32.gmra.mxu0 %v522
      %v1043 = vpop.f32.mrf.mxu0
      %v1044 = vadd.f32 %v281, %v1043
      %v1045 = vpop.f32.mrf.mxu0
      %1046 = vmatprep.mubr.f32.mxu0 0.0
      %1047 = vmatmul.mubr.f32.gmra.mxu0 %v525
      %v1048 = vpop.f32.mrf.mxu0
      %v1049 = vadd.f32 %v281, %v1048
      %v1050 = vpop.f32.mrf.mxu0
      %1051 = vmatprep.mubr.f32.mxu0 0.0
      %1052 = vmatmul.mubr.f32.gmra.mxu0 %v528
      %v1053 = vpop.f32.mrf.mxu0
      %v1054 = vadd.f32 %v281, %v1053
      %v1055 = vpop.f32.mrf.mxu0
      %1056 = vmatprep.mubr.f32.mxu0 0.0
      %1057 = vmatmul.mubr.f32.gmra.mxu0 %v531
      %v1058 = vpop.f32.mrf.mxu0
      %v1059 = vadd.f32 %v281, %v1058
      %v1060 = vpop.f32.mrf.mxu0
      %1061 = vmatprep.mubr.f32.mxu0 0.0
      %1062 = vmatmul.mubr.f32.gmra.mxu0 %v534
      %v1063 = vpop.f32.mrf.mxu0
      %v1064 = vadd.f32 %v281, %v1063
      %v1065 = vpop.f32.mrf.mxu0
      %1066 = vmatprep.mubr.f32.mxu0 0.0
      %1067 = vmatmul.mubr.f32.gmra.mxu0 %v537
      %v1068 = vpop.f32.mrf.mxu0
      %v1069 = vadd.f32 %v281, %v1068
      %v1070 = vpop.f32.mrf.mxu0
      %1071 = vmatprep.mubr.f32.mxu0 0.0
      %1072 = vmatmul.mubr.f32.gmra.mxu0 %v540
      %v1073 = vpop.f32.mrf.mxu0
      %v1074 = vadd.f32 %v281, %v1073
      %v1075 = vpop.f32.mrf.mxu0
      %1076 = vmatprep.mubr.f32.mxu0 0.0
      %1077 = vmatmul.mubr.f32.gmra.mxu0 %v543
      %v1078 = vpop.f32.mrf.mxu0
      %v1079 = vadd.f32 %v281, %v1078
      %v1080 = vpop.f32.mrf.mxu0
      %1081 = vmatprep.mubr.f32.mxu0 0.0
      %1082 = vmatmul.mubr.f32.gmra.mxu0 %v546
      %v1083 = vpop.f32.mrf.mxu0
      %v1084 = vadd.f32 %v281, %v1083
      %v1085 = vpop.f32.mrf.mxu0
      %1086 = vmatprep.mubr.f32.mxu0 0.0
      %1087 = vmatmul.mubr.f32.gmra.mxu0 %v549
      %v1088 = vpop.f32.mrf.mxu0
      %v1089 = vadd.f32 %v281, %v1088
      %v1090 = vpop.f32.mrf.mxu0
      %1091 = vmatprep.mubr.f32.mxu0 0.0
      %1092 = vmatmul.mubr.f32.gmra.mxu0 %v552
      %v1093 = vpop.f32.mrf.mxu0
      %v1094 = vadd.f32 %v281, %v1093
      %v1095 = vpop.f32.mrf.mxu0
      %1096 = vmatprep.mubr.f32.mxu0 0.0
      %1097 = vmatmul.mubr.f32.gmra.mxu0 %v555
      %v1098 = vpop.f32.mrf.mxu0
      %v1099 = vadd.f32 %v281, %v1098
      %v1100 = vpop.f32.mrf.mxu0
      %1101 = vmatprep.mubr.f32.mxu0 0.0
      %1102 = vmatmul.mubr.f32.gmra.mxu0 %v558
      %v1103 = vpop.f32.mrf.mxu0
      %v1104 = vadd.f32 %v281, %v1103
      %v1105 = vpop.f32.mrf.mxu0
      %1106 = vmatprep.mubr.f32.mxu0 0.0
      %1107 = vmatmul.mubr.f32.gmra.mxu0 %v561
      %v1108 = vpop.f32.mrf.mxu0
      %v1109 = vadd.f32 %v281, %v1108
      %v1110 = vpop.f32.mrf.mxu0
      %1111 = vmatprep.mubr.f32.mxu0 0.0
      %1112 = vmatmul.mubr.f32.gmra.mxu0 %v564
      %v1113 = vpop.f32.mrf.mxu0
      %v1114 = vadd.f32 %v281, %v1113
      %v1115 = vpop.f32.mrf.mxu0
      %1116 = vmatprep.mubr.f32.mxu0 0.0
      %1117 = vmatmul.mubr.f32.gmra.mxu0 %v567
      %v1118 = vpop.f32.mrf.mxu0
      %v1119 = vadd.f32 %v281, %v1118
      %v1120 = vpop.f32.mrf.mxu0
      %1121 = vmatprep.mubr.f32.mxu0 0.0
      %1122 = vmatmul.mubr.f32.gmra.mxu0 %v570
      %v1123 = vpop.f32.mrf.mxu0
      %v1124 = vadd.f32 %v281, %v1123
      %v1125 = vpop.f32.mrf.mxu0
      %1126 = vmatprep.mubr.f32.mxu0 0.0
      %1127 = vmatmul.mubr.f32.gmra.mxu0 %v573
      %v1128 = vpop.f32.mrf.mxu0
      %v1129 = vadd.f32 %v281, %v1128
      %v1130 = vpop.f32.mrf.mxu0
      %1131 = vmatprep.mubr.f32.mxu0 0.0
      %1132 = vmatmul.mubr.f32.gmra.mxu0 %v576
      %v1133 = vpop.f32.mrf.mxu0
      %v1134 = vadd.f32 %v281, %v1133
      %v1135 = vpop.f32.mrf.mxu0
      %1136 = vdwg.mxu0
      %v1137 = vmax.f32 %v649, 0.0
      %v1138 = vmax.f32 %v654, 0.0
      %v1139 = vmax.f32 %v659, 0.0
      %v1140 = vmax.f32 %v664, 0.0
      %v1141 = vmax.f32 %v669, 0.0
      %v1142 = vmax.f32 %v674, 0.0
      %v1143 = vmax.f32 %v679, 0.0
      %v1144 = vmax.f32 %v684, 0.0
      %v1145 = vmax.f32 %v689, 0.0
      %v1146 = vmax.f32 %v694, 0.0
      %v1147 = vmax.f32 %v699, 0.0
      %v1148 = vmax.f32 %v704, 0.0
      %v1149 = vmax.f32 %v709, 0.0
      %v1150 = vmax.f32 %v714, 0.0
      %v1151 = vmax.f32 %v719, 0.0
      %v1152 = vmax.f32 %v724, 0.0
      %v1153 = vmax.f32 %v729, 0.0
      %v1154 = vmax.f32 %v734, 0.0
      %v1155 = vmax.f32 %v739, 0.0
      %v1156 = vmax.f32 %v744, 0.0
      %v1157 = vmax.f32 %v749, 0.0
      %v1158 = vmax.f32 %v754, 0.0
      %v1159 = vmax.f32 %v759, 0.0
      %v1160 = vmax.f32 %v764, 0.0
      %v1161 = vmax.f32 %v769, 0.0
      %v1162 = vmax.f32 %v774, 0.0
      %v1163 = vmax.f32 %v779, 0.0
      %v1164 = vmax.f32 %v784, 0.0
      %v1165 = vmax.f32 %v789, 0.0
      %v1166 = vmax.f32 %v794, 0.0
      %v1167 = vmax.f32 %v799, 0.0
      %v1168 = vmax.f32 %v804, 0.0
      %v1169 = vmax.f32 %v809, 0.0
      %v1170 = vmax.f32 %v814, 0.0
      %v1171 = vmax.f32 %v819, 0.0
      %v1172 = vmax.f32 %v824, 0.0
      %v1173 = vmax.f32 %v829, 0.0
      %v1174 = vmax.f32 %v834, 0.0
      %v1175 = vmax.f32 %v839, 0.0
      %v1176 = vmax.f32 %v844, 0.0
      %v1177 = vmax.f32 %v849, 0.0
      %v1178 = vmax.f32 %v854, 0.0
      %v1179 = vmax.f32 %v859, 0.0
      %v1180 = vmax.f32 %v864, 0.0
      %v1181 = vmax.f32 %v869, 0.0
      %v1182 = vmax.f32 %v874, 0.0
      %v1183 = vmax.f32 %v879, 0.0
      %v1184 = vmax.f32 %v884, 0.0
      %v1185 = vmax.f32 %v889, 0.0
      %v1186 = vmax.f32 %v894, 0.0
      %v1187 = vmax.f32 %v899, 0.0
      %v1188 = vmax.f32 %v904, 0.0
      %v1189 = vmax.f32 %v909, 0.0
      %v1190 = vmax.f32 %v914, 0.0
      %v1191 = vmax.f32 %v919, 0.0
      %v1192 = vmax.f32 %v924, 0.0
      %v1193 = vmax.f32 %v929, 0.0
      %v1194 = vmax.f32 %v934, 0.0
      %v1195 = vmax.f32 %v939, 0.0
      %v1196 = vmax.f32 %v944, 0.0
      %v1197 = vmax.f32 %v949, 0.0
      %v1198 = vmax.f32 %v954, 0.0
      %v1199 = vmax.f32 %v959, 0.0
      %v1200 = vmax.f32 %v964, 0.0
      %v1201 = vmax.f32 %v969, 0.0
      %v1202 = vmax.f32 %v974, 0.0
      %v1203 = vmax.f32 %v979, 0.0
      %v1204 = vmax.f32 %v984, 0.0
      %v1205 = vmax.f32 %v989, 0.0
      %v1206 = vmax.f32 %v994, 0.0
      %v1207 = vmax.f32 %v999, 0.0
      %v1208 = vmax.f32 %v1004, 0.0
      %v1209 = vmax.f32 %v1009, 0.0
      %v1210 = vmax.f32 %v1014, 0.0
      %v1211 = vmax.f32 %v1019, 0.0
      %v1212 = vmax.f32 %v1024, 0.0
      %v1213 = vmax.f32 %v1029, 0.0
      %v1214 = vmax.f32 %v1034, 0.0
      %v1215 = vmax.f32 %v1039, 0.0
      %v1216 = vmax.f32 %v1044, 0.0
      %v1217 = vmax.f32 %v1049, 0.0
      %v1218 = vmax.f32 %v1054, 0.0
      %v1219 = vmax.f32 %v1059, 0.0
      %v1220 = vmax.f32 %v1064, 0.0
      %v1221 = vmax.f32 %v1069, 0.0
      %v1222 = vmax.f32 %v1074, 0.0
      %v1223 = vmax.f32 %v1079, 0.0
      %v1224 = vmax.f32 %v1084, 0.0
      %v1225 = vmax.f32 %v1089, 0.0
      %v1226 = vmax.f32 %v1094, 0.0
      %v1227 = vmax.f32 %v1099, 0.0
      %v1228 = vmax.f32 %v1104, 0.0
      %v1229 = vmax.f32 %v1109, 0.0
      %v1230 = vmax.f32 %v1114, 0.0
      %v1231 = vmax.f32 %v1119, 0.0
      %v1232 = vmax.f32 %v1124, 0.0
      %v1233 = vmax.f32 %v1129, 0.0
      %v1234 = vmax.f32 %v1134, 0.0
      %1235 = vst [vmem:[%s172] sm:$0xff] %v1137
      %1236 = vst [vmem:[%s172 + $0x8] sm:$0xff] %v1138
      %1237 = vst [vmem:[%s172 + $0x10] sm:$0xff] %v1139
      %1238 = vst [vmem:[%s172 + $0x18] sm:$0xff] %v1140
      %1239 = vst [vmem:[%s172 + $0x20] sm:$0xff] %v1141
      %1240 = vst [vmem:[%s172 + $0x28] sm:$0xff] %v1142
      %1241 = vst [vmem:[%s172 + $0x30] sm:$0xff] %v1143
      %1242 = vst [vmem:[%s172 + $0x38] sm:$0xff] %v1144
      %1243 = vst [vmem:[%s172 + $0x40] sm:$0xff] %v1145
      %1244 = vst [vmem:[%s172 + $0x48] sm:$0xff] %v1146
      %1245 = vst [vmem:[%s172 + $0x50] sm:$0xff] %v1147
      %1246 = vst [vmem:[%s172 + $0x58] sm:$0xff] %v1148
      %1247 = vst [vmem:[%s172 + $0x60] sm:$0xff] %v1149
      %1248 = vst [vmem:[%s172 + $0x68] sm:$0xff] %v1150
      %1249 = vst [vmem:[%s172 + $0x70] sm:$0xff] %v1151
      %1250 = vst [vmem:[%s172 + $0x78] sm:$0xff] %v1152
      %1251 = vst [vmem:[%s172 + $0x80] sm:$0xff] %v1153
      %1252 = vst [vmem:[%s172 + $0x88] sm:$0xff] %v1154
      %1253 = vst [vmem:[%s172 + $0x90] sm:$0xff] %v1155
      %1254 = vst [vmem:[%s172 + $0x98] sm:$0xff] %v1156
      %1255 = vst [vmem:[%s172 + $0xa0] sm:$0xff] %v1157
      %1256 = vst [vmem:[%s172 + $0xa8] sm:$0xff] %v1158
      %1257 = vst [vmem:[%s172 + $0xb0] sm:$0xff] %v1159
      %1258 = vst [vmem:[%s172 + $0xb8] sm:$0xff] %v1160
      %1259 = vst [vmem:[%s172 + $0xc0] sm:$0xff] %v1161
      %1260 = vst [vmem:[%s172 + $0xc8] sm:$0xff] %v1162
      %1261 = vst [vmem:[%s172 + $0xd0] sm:$0xff] %v1163
      %1262 = vst [vmem:[%s172 + $0xd8] sm:$0xff] %v1164
      %1263 = vst [vmem:[%s172 + $0xe0] sm:$0xff] %v1165
      %1264 = vst [vmem:[%s172 + $0xe8] sm:$0xff] %v1166
      %1265 = vst [vmem:[%s172 + $0xf0] sm:$0xff] %v1167
      %1266 = vst [vmem:[%s172 + $0xf8] sm:$0xff] %v1168
      %1267 = vst [vmem:[%s172 + $0x100] sm:$0xff] %v1169
      %1268 = vst [vmem:[%s172 + $0x108] sm:$0xff] %v1170
      %1269 = vst [vmem:[%s172 + $0x110] sm:$0xff] %v1171
      %1270 = vst [vmem:[%s172 + $0x118] sm:$0xff] %v1172
      %1271 = vst [vmem:[%s172 + $0x120] sm:$0xff] %v1173
      %1272 = vst [vmem:[%s172 + $0x128] sm:$0xff] %v1174
      %1273 = vst [vmem:[%s172 + $0x130] sm:$0xff] %v1175
      %1274 = vst [vmem:[%s172 + $0x138] sm:$0xff] %v1176
      %1275 = vst [vmem:[%s172 + $0x140] sm:$0xff] %v1177
      %1276 = vst [vmem:[%s172 + $0x148] sm:$0xff] %v1178
      %1277 = vst [vmem:[%s172 + $0x150] sm:$0xff] %v1179
      %1278 = vst [vmem:[%s172 + $0x158] sm:$0xff] %v1180
      %1279 = vst [vmem:[%s172 + $0x160] sm:$0xff] %v1181
      %1280 = vst [vmem:[%s172 + $0x168] sm:$0xff] %v1182
      %1281 = vst [vmem:[%s172 + $0x170] sm:$0xff] %v1183
      %1282 = vst [vmem:[%s172 + $0x178] sm:$0xff] %v1184
      %1283 = vst [vmem:[%s172 + $0x180] sm:$0xff] %v1185
      %1284 = vst [vmem:[%s172 + $0x188] sm:$0xff] %v1186
      %1285 = vst [vmem:[%s172 + $0x190] sm:$0xff] %v1187
      %1286 = vst [vmem:[%s172 + $0x198] sm:$0xff] %v1188
      %1287 = vst [vmem:[%s172 + $0x1a0] sm:$0xff] %v1189
      %1288 = vst [vmem:[%s172 + $0x1a8] sm:$0xff] %v1190
      %1289 = vst [vmem:[%s172 + $0x1b0] sm:$0xff] %v1191
      %1290 = vst [vmem:[%s172 + $0x1b8] sm:$0xff] %v1192
      %1291 = vst [vmem:[%s172 + $0x1c0] sm:$0xff] %v1193
      %1292 = vst [vmem:[%s172 + $0x1c8] sm:$0xff] %v1194
      %1293 = vst [vmem:[%s172 + $0x1d0] sm:$0xff] %v1195
      %1294 = vst [vmem:[%s172 + $0x1d8] sm:$0xff] %v1196
      %1295 = vst [vmem:[%s172 + $0x1e0] sm:$0xff] %v1197
      %1296 = vst [vmem:[%s172 + $0x1e8] sm:$0xff] %v1198
      %1297 = vst [vmem:[%s172 + $0x1f0] sm:$0xff] %v1199
      %1298 = vst [vmem:[%s172 + $0x1f8] sm:$0xff] %v1200
      %1299 = vst [vmem:[%s172 + $0x200] sm:$0xff] %v1201
      %1300 = vst [vmem:[%s172 + $0x208] sm:$0xff] %v1202
      %1301 = vst [vmem:[%s172 + $0x210] sm:$0xff] %v1203
      %1302 = vst [vmem:[%s172 + $0x218] sm:$0xff] %v1204
      %1303 = vst [vmem:[%s172 + $0x220] sm:$0xff] %v1205
      %1304 = vst [vmem:[%s172 + $0x228] sm:$0xff] %v1206
      %1305 = vst [vmem:[%s172 + $0x230] sm:$0xff] %v1207
      %1306 = vst [vmem:[%s172 + $0x238] sm:$0xff] %v1208
      %1307 = vst [vmem:[%s172 + $0x240] sm:$0xff] %v1209
      %1308 = vst [vmem:[%s172 + $0x248] sm:$0xff] %v1210
      %1309 = vst [vmem:[%s172 + $0x250] sm:$0xff] %v1211
      %1310 = vst [vmem:[%s172 + $0x258] sm:$0xff] %v1212
      %1311 = vst [vmem:[%s172 + $0x260] sm:$0xff] %v1213
      %1312 = vst [vmem:[%s172 + $0x268] sm:$0xff] %v1214
      %1313 = vst [vmem:[%s172 + $0x270] sm:$0xff] %v1215
      %1314 = vst [vmem:[%s172 + $0x278] sm:$0xff] %v1216
      %1315 = vst [vmem:[%s172 + $0x280] sm:$0xff] %v1217
      %1316 = vst [vmem:[%s172 + $0x288] sm:$0xff] %v1218
      %1317 = vst [vmem:[%s172 + $0x290] sm:$0xff] %v1219
      %1318 = vst [vmem:[%s172 + $0x298] sm:$0xff] %v1220
      %1319 = vst [vmem:[%s172 + $0x2a0] sm:$0xff] %v1221
      %1320 = vst [vmem:[%s172 + $0x2a8] sm:$0xff] %v1222
      %1321 = vst [vmem:[%s172 + $0x2b0] sm:$0xff] %v1223
      %1322 = vst [vmem:[%s172 + $0x2b8] sm:$0xff] %v1224
      %1323 = vst [vmem:[%s172 + $0x2c0] sm:$0xff] %v1225
      %1324 = vst [vmem:[%s172 + $0x2c8] sm:$0xff] %v1226
      %1325 = vst [vmem:[%s172 + $0x2d0] sm:$0xff] %v1227
      %1326 = vst [vmem:[%s172 + $0x2d8] sm:$0xff] %v1228
      %1327 = vst [vmem:[%s172 + $0x2e0] sm:$0xff] %v1229
      %1328 = vst [vmem:[%s172 + $0x2e8] sm:$0xff] %v1230
      %1329 = vst [vmem:[%s172 + $0x2f0] sm:$0xff] %v1231
      %1330 = vst [vmem:[%s172 + $0x2f8] sm:$0xff] %v1232
      %1331 = vst [vmem:[%s172 + $0x300] sm:$0xff] %v1233
      %1332 = vst [vmem:[%s172 + $0x308] sm:$0xff] %v1234
      %s1333 = smul.u32 98, %s14
      %p1334 = scmp.lt.s32.totalorder %s1333, 195
      %s1335 = scalar_select %p1334, %s1333, 195
      %s1336 = smul.addr %s1335, 8
      %s1337 = scalar_lea.vmem %s3, %s1336
      // Predicated region
      $region33: #{lenet_forward.5} parent=31 // pred_check
        %p1338 = pneg %p100
      $region34: #{lenet_forward.5} parent=31 // pred_check_branch
        %1340 = sbr.rel (%p1338) target = $region36
      $region35: #{lenet_forward.5} parent=31 // pred_region
        %s1341 = smul.u32 98, %s14
      $region36: #{lenet_forward.5} parent=31 // pred_fallthru
        _
    $region32: #{lenet_forward.5} parent=5 // pred_fallthru
      _
    %p1342 = scmp.le.s32.totalorder 2, %s9
    // Predicated region
    $region37: #{lenet_forward.5} parent=5 // pred_check
      %p1343 = pneg %p1342
    $region38: #{lenet_forward.5} parent=5 // pred_check_branch
      %1345 = sbr.rel (%p1343) target = $region40
    $region39: #{lenet_forward.5} parent=5 // pred_region
      %s1346 = ssub.s32 %s9, 2
      // Predicated region
      $region41: #{lenet_forward.5} parent=39 // pred_check
        %p1347 = pneg %p106
      $region42: #{lenet_forward.5} parent=39 // pred_check_branch
        %1349 = sbr.rel (%p1347) target = $region44
      $region43: #{lenet_forward.5} parent=39 // pred_region
        %s1350 = smul.u32 98, %s15
        %p1351 = scmp.lt.s32.totalorder %s1350, 195
        %s1352 = scalar_select %p1351, %s1350, 195
        %s1353 = smul.addr %s1352, 8
        %s1354 = scalar_lea.vmem %s3, %s1353
      $region44: #{lenet_forward.5} parent=39 // pred_fallthru
        _
    $region40: #{lenet_forward.5} parent=5 // pred_fallthru
      _
  $region6: #{lenet_forward.5} parent=0 // loop_footer
    %s13 = sadd.s32 1, %s9
  $region7: #{lenet_forward.5} parent=0 // loop_footer_branch
    %8 = sbr.rel target = $region3
  $region8: #{lenet_forward.5} parent=0 // loop_exit
    _

// kernel: lenet_forward.6
$region0: #{lenet_forward.6}
  #allocation0 [shape = 'u32[]', space=smem, size = 0x4, offset = 0x4, fixed_abs, tag = 'smem constant byte address 0x4 - core index']
  #allocation1 [shape = 'u32[144,128]{1,0:T(1,128)}', space=vmem, size = 0x12000, scoped, tag = 'internal scratch']
  %s0 = inlined_call_operand.vmem [shape: f32[28,2,14,256], index: 0, kind: input, shape index: {}]
  %s1 = inlined_call_operand.vmem [shape: f32[28,14,128], index: 1, kind: output, shape index: {}]
  %s2 = sld [smem:[#allocation0]]
  $region14: #{lenet_forward.6} parent=0
    _
  %s4 = ssub.s32 1, %s2
  %s5 = scalar_select 0, %s4, %s2
  // Predicated region
  $region2: #{lenet_forward.6} parent=0 // pred_check
    _
  $region3: #{lenet_forward.6} parent=0 // pred_check_branch
    %7 = sbr.rel (0) target = $region5
  $region4: #{lenet_forward.6} parent=0 // pred_region
    _
  $region5: #{lenet_forward.6} parent=0 // pred_fallthru
    _
  %v8 = vld [vmem:[%s0] sm:$0xff]
  %v9 = vld [vmem:[%s0 + $0x8] sm:$0xff]
  %v10 = vld [vmem:[%s0 + $0x10] sm:$0x3f]
  %v11 = vld [vmem:[%s0 + $0x18] sm:$0x3f]
  %v12 = vld [vmem:[%s0 + $0x20] sm:$0xff]
  %v13 = vld [vmem:[%s0 + $0x28] sm:$0xff]
  %v14 = vld [vmem:[%s0 + $0x30] sm:$0x3f]
  %v15 = vld [vmem:[%s0 + $0x38] sm:$0x3f]
  %v16 = vld [vmem:[%s0 + $0x40] sm:$0xff]
  %v17 = vld [vmem:[%s0 + $0x48] sm:$0xff]
  %v18 = vld [vmem:[%s0 + $0x50] sm:$0x3f]
  %v19 = vld [vmem:[%s0 + $0x58] sm:$0x3f]
  %v20 = vld [vmem:[%s0 + $0x60] sm:$0xff]
  %v21 = vld [vmem:[%s0 + $0x68] sm:$0xff]
  %v22 = vld [vmem:[%s0 + $0x70] sm:$0x3f]
  %v23 = vld [vmem:[%s0 + $0x78] sm:$0x3f]
  %v24 = vld [vmem:[%s0 + $0x80] sm:$0xff]
  %v25 = vld [vmem:[%s0 + $0x88] sm:$0xff]
  %v26 = vld [vmem:[%s0 + $0x90] sm:$0x3f]
  %v27 = vld [vmem:[%s0 + $0x98] sm:$0x3f]
  %v28 = vld [vmem:[%s0 + $0xa0] sm:$0xff]
  %v29 = vld [vmem:[%s0 + $0xa8] sm:$0xff]
  %v30 = vld [vmem:[%s0 + $0xb0] sm:$0x3f]
  %v31 = vld [vmem:[%s0 + $0xb8] sm:$0x3f]
  %v32 = vld [vmem:[%s0 + $0xc0] sm:$0xff]
  %v33 = vld [vmem:[%s0 + $0xc8] sm:$0xff]
  %v34 = vld [vmem:[%s0 + $0xd0] sm:$0x3f]
  %v35 = vld [vmem:[%s0 + $0xd8] sm:$0x3f]
  %v36 = vld [vmem:[%s0 + $0xe0] sm:$0xff]
  %v37 = vld [vmem:[%s0 + $0xe8] sm:$0xff]
  %v38 = vld [vmem:[%s0 + $0xf0] sm:$0x3f]
  %v39 = vld [vmem:[%s0 + $0xf8] sm:$0x3f]
  %v40 = vld [vmem:[%s0 + $0x100] sm:$0xff]
  %v41 = vld [vmem:[%s0 + $0x108] sm:$0xff]
  %v42 = vld [vmem:[%s0 + $0x110] sm:$0x3f]
  %v43 = vld [vmem:[%s0 + $0x118] sm:$0x3f]
  %v44 = vld [vmem:[%s0 + $0x120] sm:$0xff]
  %v45 = vld [vmem:[%s0 + $0x128] sm:$0xff]
  %v46 = vld [vmem:[%s0 + $0x130] sm:$0x3f]
  %v47 = vld [vmem:[%s0 + $0x138] sm:$0x3f]
  %v48 = vld [vmem:[%s0 + $0x140] sm:$0xff]
  %v49 = vld [vmem:[%s0 + $0x148] sm:$0xff]
  %v50 = vld [vmem:[%s0 + $0x150] sm:$0x3f]
  %v51 = vld [vmem:[%s0 + $0x158] sm:$0x3f]
  %v52 = vld [vmem:[%s0 + $0x160] sm:$0xff]
  %v53 = vld [vmem:[%s0 + $0x168] sm:$0xff]
  %v54 = vld [vmem:[%s0 + $0x170] sm:$0x3f]
  %v55 = vld [vmem:[%s0 + $0x178] sm:$0x3f]
  %v56 = vld [vmem:[%s0 + $0x180] sm:$0xff]
  %v57 = vld [vmem:[%s0 + $0x188] sm:$0xff]
  %v58 = vld [vmem:[%s0 + $0x190] sm:$0x3f]
  %v59 = vld [vmem:[%s0 + $0x198] sm:$0x3f]
  %v60 = vld [vmem:[%s0 + $0x1a0] sm:$0xff]
  %v61 = vld [vmem:[%s0 + $0x1a8] sm:$0xff]
  %v62 = vld [vmem:[%s0 + $0x1b0] sm:$0x3f]
  %v63 = vld [vmem:[%s0 + $0x1b8] sm:$0x3f]
  %v64 = vld [vmem:[%s0 + $0x1c0] sm:$0xff]
  %v65 = vld [vmem:[%s0 + $0x1c8] sm:$0xff]
  %v66 = vld [vmem:[%s0 + $0x1d0] sm:$0x3f]
  %v67 = vld [vmem:[%s0 + $0x1d8] sm:$0x3f]
  %v68 = vld [vmem:[%s0 + $0x1e0] sm:$0xff]
  %v69 = vld [vmem:[%s0 + $0x1e8] sm:$0xff]
  %v70 = vld [vmem:[%s0 + $0x1f0] sm:$0x3f]
  %v71 = vld [vmem:[%s0 + $0x1f8] sm:$0x3f]
  %v72 = vld [vmem:[%s0 + $0x200] sm:$0xff]
  %v73 = vld [vmem:[%s0 + $0x208] sm:$0xff]
  %v74 = vld [vmem:[%s0 + $0x210] sm:$0x3f]
  %v75 = vld [vmem:[%s0 + $0x218] sm:$0x3f]
  %v76 = vld [vmem:[%s0 + $0x220] sm:$0xff]
  %v77 = vld [vmem:[%s0 + $0x228] sm:$0xff]
  %v78 = vld [vmem:[%s0 + $0x230] sm:$0x3f]
  %v79 = vld [vmem:[%s0 + $0x238] sm:$0x3f]
  %v80 = vld [vmem:[%s0 + $0x240] sm:$0xff]
  %v81 = vld [vmem:[%s0 + $0x248] sm:$0xff]
  %v82 = vld [vmem:[%s0 + $0x250] sm:$0x3f]
  %v83 = vld [vmem:[%s0 + $0x258] sm:$0x3f]
  %v84 = vld [vmem:[%s0 + $0x260] sm:$0xff]
  %v85 = vld [vmem:[%s0 + $0x268] sm:$0xff]
  %v86 = vld [vmem:[%s0 + $0x270] sm:$0x3f]
  %v87 = vld [vmem:[%s0 + $0x278] sm:$0x3f]
  %v88 = vld [vmem:[%s0 + $0x280] sm:$0xff]
  %v89 = vld [vmem:[%s0 + $0x288] sm:$0xff]
  %v90 = vld [vmem:[%s0 + $0x290] sm:$0x3f]
  %v91 = vld [vmem:[%s0 + $0x298] sm:$0x3f]
  %v92 = vld [vmem:[%s0 + $0x2a0] sm:$0xff]
  %v93 = vld [vmem:[%s0 + $0x2a8] sm:$0xff]
  %v94 = vld [vmem:[%s0 + $0x2b0] sm:$0x3f]
  %v95 = vld [vmem:[%s0 + $0x2b8] sm:$0x3f]
  %v96 = vld [vmem:[%s0 + $0x2c0] sm:$0xff]
  %v97 = vld [vmem:[%s0 + $0x2c8] sm:$0xff]
  %v98 = vld [vmem:[%s0 + $0x2d0] sm:$0x3f]
  %v99 = vld [vmem:[%s0 + $0x2d8] sm:$0x3f]
  %v100 = vld [vmem:[%s0 + $0x2e0] sm:$0xff]
  %v101 = vld [vmem:[%s0 + $0x2e8] sm:$0xff]
  %v102 = vld [vmem:[%s0 + $0x2f0] sm:$0x3f]
  %v103 = vld [vmem:[%s0 + $0x2f8] sm:$0x3f]
  %v104 = vld [vmem:[%s0 + $0x300] sm:$0xff]
  %v105 = vld [vmem:[%s0 + $0x308] sm:$0xff]
  %v106 = vld [vmem:[%s0 + $0x310] sm:$0x3f]
  %v107 = vld [vmem:[%s0 + $0x318] sm:$0x3f]
  %v108 = vld [vmem:[%s0 + $0x320] sm:$0xff]
  %v109 = vld [vmem:[%s0 + $0x328] sm:$0xff]
  %v110 = vld [vmem:[%s0 + $0x330] sm:$0x3f]
  %v111 = vld [vmem:[%s0 + $0x338] sm:$0x3f]
  %v112 = vld [vmem:[%s0 + $0x340] sm:$0xff]
  %v113 = vld [vmem:[%s0 + $0x348] sm:$0xff]
  %v114 = vld [vmem:[%s0 + $0x350] sm:$0x3f]
  %v115 = vld [vmem:[%s0 + $0x358] sm:$0x3f]
  %v116 = vld [vmem:[%s0 + $0x360] sm:$0xff]
  %v117 = vld [vmem:[%s0 + $0x368] sm:$0xff]
  %v118 = vld [vmem:[%s0 + $0x370] sm:$0x3f]
  %v119 = vld [vmem:[%s0 + $0x378] sm:$0x3f]
  %v120 = vld [vmem:[%s0 + $0x380] sm:$0xff]
  %v121 = vld [vmem:[%s0 + $0x388] sm:$0xff]
  %v122 = vld [vmem:[%s0 + $0x390] sm:$0x3f]
  %v123 = vld [vmem:[%s0 + $0x398] sm:$0x3f]
  %v124 = vld [vmem:[%s0 + $0x3a0] sm:$0xff]
  %v125 = vld [vmem:[%s0 + $0x3a8] sm:$0xff]
  %v126 = vld [vmem:[%s0 + $0x3b0] sm:$0x3f]
  %v127 = vld [vmem:[%s0 + $0x3b8] sm:$0x3f]
  %v128 = vld [vmem:[%s0 + $0x3c0] sm:$0xff]
  %v129 = vld [vmem:[%s0 + $0x3c8] sm:$0xff]
  %v130 = vld [vmem:[%s0 + $0x3d0] sm:$0x3f]
  %v131 = vld [vmem:[%s0 + $0x3d8] sm:$0x3f]
  %v132 = vld [vmem:[%s0 + $0x3e0] sm:$0xff]
  %v133 = vld [vmem:[%s0 + $0x3e8] sm:$0xff]
  %v134 = vld [vmem:[%s0 + $0x3f0] sm:$0x3f]
  %v135 = vld [vmem:[%s0 + $0x3f8] sm:$0x3f]
  %v136 = vld [vmem:[%s0 + $0x400] sm:$0xff]
  %v137 = vld [vmem:[%s0 + $0x408] sm:$0xff]
  %v138 = vld [vmem:[%s0 + $0x410] sm:$0x3f]
  %v139 = vld [vmem:[%s0 + $0x418] sm:$0x3f]
  %v140 = vld [vmem:[%s0 + $0x420] sm:$0xff]
  %v141 = vld [vmem:[%s0 + $0x428] sm:$0xff]
  %v142 = vld [vmem:[%s0 + $0x430] sm:$0x3f]
  %v143 = vld [vmem:[%s0 + $0x438] sm:$0x3f]
  %v144 = vld [vmem:[%s0 + $0x440] sm:$0xff]
  %v145 = vld [vmem:[%s0 + $0x448] sm:$0xff]
  %v146 = vld [vmem:[%s0 + $0x450] sm:$0x3f]
  %v147 = vld [vmem:[%s0 + $0x458] sm:$0x3f]
  %v148 = vld [vmem:[%s0 + $0x460] sm:$0xff]
  %v149 = vld [vmem:[%s0 + $0x468] sm:$0xff]
  %v150 = vld [vmem:[%s0 + $0x470] sm:$0x3f]
  %v151 = vld [vmem:[%s0 + $0x478] sm:$0x3f]
  %v152 = vld [vmem:[%s0 + $0x480] sm:$0xff]
  %v153 = vld [vmem:[%s0 + $0x488] sm:$0xff]
  %v154 = vld [vmem:[%s0 + $0x490] sm:$0x3f]
  %v155 = vld [vmem:[%s0 + $0x498] sm:$0x3f]
  %v156 = vld [vmem:[%s0 + $0x4a0] sm:$0xff]
  %v157 = vld [vmem:[%s0 + $0x4a8] sm:$0xff]
  %v158 = vld [vmem:[%s0 + $0x4b0] sm:$0x3f]
  %v159 = vld [vmem:[%s0 + $0x4b8] sm:$0x3f]
  %v160 = vld [vmem:[%s0 + $0x4c0] sm:$0xff]
  %v161 = vld [vmem:[%s0 + $0x4c8] sm:$0xff]
  %v162 = vld [vmem:[%s0 + $0x4d0] sm:$0x3f]
  %v163 = vld [vmem:[%s0 + $0x4d8] sm:$0x3f]
  %v164 = vld [vmem:[%s0 + $0x4e0] sm:$0xff]
  %v165 = vld [vmem:[%s0 + $0x4e8] sm:$0xff]
  %v166 = vld [vmem:[%s0 + $0x4f0] sm:$0x3f]
  %v167 = vld [vmem:[%s0 + $0x4f8] sm:$0x3f]
  %v168 = vld [vmem:[%s0 + $0x500] sm:$0xff]
  %v169 = vld [vmem:[%s0 + $0x508] sm:$0xff]
  %v170 = vld [vmem:[%s0 + $0x510] sm:$0x3f]
  %v171 = vld [vmem:[%s0 + $0x518] sm:$0x3f]
  %v172 = vld [vmem:[%s0 + $0x520] sm:$0xff]
  %v173 = vld [vmem:[%s0 + $0x528] sm:$0xff]
  %v174 = vld [vmem:[%s0 + $0x530] sm:$0x3f]
  %v175 = vld [vmem:[%s0 + $0x538] sm:$0x3f]
  %v176 = vld [vmem:[%s0 + $0x540] sm:$0xff]
  %v177 = vld [vmem:[%s0 + $0x548] sm:$0xff]
  %v178 = vld [vmem:[%s0 + $0x550] sm:$0x3f]
  %v179 = vld [vmem:[%s0 + $0x558] sm:$0x3f]
  %v180 = vld [vmem:[%s0 + $0x560] sm:$0xff]
  %v181 = vld [vmem:[%s0 + $0x568] sm:$0xff]
  %v182 = vld [vmem:[%s0 + $0x570] sm:$0x3f]
  %v183 = vld [vmem:[%s0 + $0x578] sm:$0x3f]
  %v184 = vld [vmem:[%s0 + $0x580] sm:$0xff]
  %v185 = vld [vmem:[%s0 + $0x588] sm:$0xff]
  %v186 = vld [vmem:[%s0 + $0x590] sm:$0x3f]
  %v187 = vld [vmem:[%s0 + $0x598] sm:$0x3f]
  %v188 = vld [vmem:[%s0 + $0x5a0] sm:$0xff]
  %v189 = vld [vmem:[%s0 + $0x5a8] sm:$0xff]
  %v190 = vld [vmem:[%s0 + $0x5b0] sm:$0x3f]
  %v191 = vld [vmem:[%s0 + $0x5b8] sm:$0x3f]
  %v192 = vld [vmem:[%s0 + $0x5c0] sm:$0xff]
  %v193 = vld [vmem:[%s0 + $0x5c8] sm:$0xff]
  %v194 = vld [vmem:[%s0 + $0x5d0] sm:$0x3f]
  %v195 = vld [vmem:[%s0 + $0x5d8] sm:$0x3f]
  %v196 = vld [vmem:[%s0 + $0x5e0] sm:$0xff]
  %v197 = vld [vmem:[%s0 + $0x5e8] sm:$0xff]
  %v198 = vld [vmem:[%s0 + $0x5f0] sm:$0x3f]
  %v199 = vld [vmem:[%s0 + $0x5f8] sm:$0x3f]
  %v200 = vld [vmem:[%s0 + $0x600] sm:$0xff]
  %v201 = vld [vmem:[%s0 + $0x608] sm:$0xff]
  %v202 = vld [vmem:[%s0 + $0x610] sm:$0x3f]
  %v203 = vld [vmem:[%s0 + $0x618] sm:$0x3f]
  %v204 = vld [vmem:[%s0 + $0x620] sm:$0xff]
  %v205 = vld [vmem:[%s0 + $0x628] sm:$0xff]
  %v206 = vld [vmem:[%s0 + $0x630] sm:$0x3f]
  %v207 = vld [vmem:[%s0 + $0x638] sm:$0x3f]
  %v208 = vld [vmem:[%s0 + $0x640] sm:$0xff]
  %v209 = vld [vmem:[%s0 + $0x648] sm:$0xff]
  %v210 = vld [vmem:[%s0 + $0x650] sm:$0x3f]
  %v211 = vld [vmem:[%s0 + $0x658] sm:$0x3f]
  %v212 = vld [vmem:[%s0 + $0x660] sm:$0xff]
  %v213 = vld [vmem:[%s0 + $0x668] sm:$0xff]
  %v214 = vld [vmem:[%s0 + $0x670] sm:$0x3f]
  %v215 = vld [vmem:[%s0 + $0x678] sm:$0x3f]
  %v216 = vld [vmem:[%s0 + $0x680] sm:$0xff]
  %v217 = vld [vmem:[%s0 + $0x688] sm:$0xff]
  %v218 = vld [vmem:[%s0 + $0x690] sm:$0x3f]
  %v219 = vld [vmem:[%s0 + $0x698] sm:$0x3f]
  %v220 = vld [vmem:[%s0 + $0x6a0] sm:$0xff]
  %v221 = vld [vmem:[%s0 + $0x6a8] sm:$0xff]
  %v222 = vld [vmem:[%s0 + $0x6b0] sm:$0x3f]
  %v223 = vld [vmem:[%s0 + $0x6b8] sm:$0x3f]
  %v224 = vld [vmem:[%s0 + $0x6c0] sm:$0xff]
  %v225 = vld [vmem:[%s0 + $0x6c8] sm:$0xff]
  %v226 = vld [vmem:[%s0 + $0x6d0] sm:$0x3f]
  %v227 = vld [vmem:[%s0 + $0x6d8] sm:$0x3f]
  %v228 = vld [vmem:[%s0 + $0x6e0] sm:$0xff]
  %v229 = vld [vmem:[%s0 + $0x6e8] sm:$0xff]
  %v230 = vld [vmem:[%s0 + $0x6f0] sm:$0x3f]
  %v231 = vld [vmem:[%s0 + $0x6f8] sm:$0x3f]
  %v232 = vmax.f32 %v8, %v9
  %v233 = vmax.f32 %v10, %v11
  %v234 = vmax.f32 %v12, %v13
  %v235 = vmax.f32 %v14, %v15
  %v236 = vmax.f32 %v16, %v17
  %v237 = vmax.f32 %v18, %v19
  %v238 = vmax.f32 %v20, %v21
  %v239 = vmax.f32 %v22, %v23
  %v240 = vmax.f32 %v24, %v25
  %v241 = vmax.f32 %v26, %v27
  %v242 = vmax.f32 %v28, %v29
  %v243 = vmax.f32 %v30, %v31
  %v244 = vmax.f32 %v32, %v33
  %v245 = vmax.f32 %v34, %v35
  %v246 = vmax.f32 %v36, %v37
  %v247 = vmax.f32 %v38, %v39
  %v248 = vmax.f32 %v40, %v41
  %v249 = vmax.f32 %v42, %v43
  %v250 = vmax.f32 %v44, %v45
  %v251 = vmax.f32 %v46, %v47
  %v252 = vmax.f32 %v48, %v49
  %v253 = vmax.f32 %v50, %v51
  %v254 = vmax.f32 %v52, %v53
  %v255 = vmax.f32 %v54, %v55
  %v256 = vmax.f32 %v56, %v57
  %v257 = vmax.f32 %v58, %v59
  %v258 = vmax.f32 %v60, %v61
  %v259 = vmax.f32 %v62, %v63
  %v260 = vmax.f32 %v64, %v65
  %v261 = vmax.f32 %v66, %v67
  %v262 = vmax.f32 %v68, %v69
  %v263 = vmax.f32 %v70, %v71
  %v264 = vmax.f32 %v72, %v73
  %v265 = vmax.f32 %v74, %v75
  %v266 = vmax.f32 %v76, %v77
  %v267 = vmax.f32 %v78, %v79
  %v268 = vmax.f32 %v80, %v81
  %v269 = vmax.f32 %v82, %v83
  %v270 = vmax.f32 %v84, %v85
  %v271 = vmax.f32 %v86, %v87
  %v272 = vmax.f32 %v88, %v89
  %v273 = vmax.f32 %v90, %v91
  %v274 = vmax.f32 %v92, %v93
  %v275 = vmax.f32 %v94, %v95
  %v276 = vmax.f32 %v96, %v97
  %v277 = vmax.f32 %v98, %v99
  %v278 = vmax.f32 %v100, %v101
  %v279 = vmax.f32 %v102, %v103
  %v280 = vmax.f32 %v104, %v105
  %v281 = vmax.f32 %v106, %v107
  %v282 = vmax.f32 %v108, %v109
  %v283 = vmax.f32 %v110, %v111
  %v284 = vmax.f32 %v112, %v113
  %v285 = vmax.f32 %v114, %v115
  %v286 = vmax.f32 %v116, %v117
  %v287 = vmax.f32 %v118, %v119
  %v288 = vmax.f32 %v120, %v121
  %v289 = vmax.f32 %v122, %v123
  %v290 = vmax.f32 %v124, %v125
  %v291 = vmax.f32 %v126, %v127
  %v292 = vmax.f32 %v128, %v129
  %v293 = vmax.f32 %v130, %v131
  %v294 = vmax.f32 %v132, %v133
  %v295 = vmax.f32 %v134, %v135
  %v296 = vmax.f32 %v136, %v137
  %v297 = vmax.f32 %v138, %v139
  %v298 = vmax.f32 %v140, %v141
  %v299 = vmax.f32 %v142, %v143
  %v300 = vmax.f32 %v144, %v145
  %v301 = vmax.f32 %v146, %v147
  %v302 = vmax.f32 %v148, %v149
  %v303 = vmax.f32 %v150, %v151
  %v304 = vmax.f32 %v152, %v153
  %v305 = vmax.f32 %v154, %v155
  %v306 = vmax.f32 %v156, %v157
  %v307 = vmax.f32 %v158, %v159
  %v308 = vmax.f32 %v160, %v161
  %v309 = vmax.f32 %v162, %v163
  %v310 = vmax.f32 %v164, %v165
  %v311 = vmax.f32 %v166, %v167
  %v312 = vmax.f32 %v168, %v169
  %v313 = vmax.f32 %v170, %v171
  %v314 = vmax.f32 %v172, %v173
  %v315 = vmax.f32 %v174, %v175
  %v316 = vmax.f32 %v176, %v177
  %v317 = vmax.f32 %v178, %v179
  %v318 = vmax.f32 %v180, %v181
  %v319 = vmax.f32 %v182, %v183
  %v320 = vmax.f32 %v184, %v185
  %v321 = vmax.f32 %v186, %v187
  %v322 = vmax.f32 %v188, %v189
  %v323 = vmax.f32 %v190, %v191
  %v324 = vmax.f32 %v192, %v193
  %v325 = vmax.f32 %v194, %v195
  %v326 = vmax.f32 %v196, %v197
  %v327 = vmax.f32 %v198, %v199
  %v328 = vmax.f32 %v200, %v201
  %v329 = vmax.f32 %v202, %v203
  %v330 = vmax.f32 %v204, %v205
  %v331 = vmax.f32 %v206, %v207
  %v332 = vmax.f32 %v208, %v209
  %v333 = vmax.f32 %v210, %v211
  %v334 = vmax.f32 %v212, %v213
  %v335 = vmax.f32 %v214, %v215
  %v336 = vmax.f32 %v216, %v217
  %v337 = vmax.f32 %v218, %v219
  %v338 = vmax.f32 %v220, %v221
  %v339 = vmax.f32 %v222, %v223
  %v340 = vmax.f32 %v224, %v225
  %v341 = vmax.f32 %v226, %v227
  %v342 = vmax.f32 %v228, %v229
  %v343 = vmax.f32 %v230, %v231
  %v344 = vmax.f32 %v232, %v234
  %v345 = vmax.f32 %v233, %v235
  %v346 = vmax.f32 %v236, %v238
  %v347 = vmax.f32 %v237, %v239
  %v348 = vmax.f32 %v240, %v242
  %v349 = vmax.f32 %v241, %v243
  %v350 = vmax.f32 %v244, %v246
  %v351 = vmax.f32 %v245, %v247
  %v352 = vmax.f32 %v248, %v250
  %v353 = vmax.f32 %v249, %v251
  %v354 = vmax.f32 %v252, %v254
  %v355 = vmax.f32 %v253, %v255
  %v356 = vmax.f32 %v256, %v258
  %v357 = vmax.f32 %v257, %v259
  %v358 = vmax.f32 %v260, %v262
  %v359 = vmax.f32 %v261, %v263
  %v360 = vmax.f32 %v264, %v266
  %v361 = vmax.f32 %v265, %v267
  %v362 = vmax.f32 %v268, %v270
  %v363 = vmax.f32 %v269, %v271
  %v364 = vmax.f32 %v272, %v274
  %v365 = vmax.f32 %v273, %v275
  %v366 = vmax.f32 %v276, %v278
  %v367 = vmax.f32 %v277, %v279
  %v368 = vmax.f32 %v280, %v282
  %v369 = vmax.f32 %v281, %v283
  %v370 = vmax.f32 %v284, %v286
  %v371 = vmax.f32 %v285, %v287
  %v372 = vmax.f32 %v288, %v290
  %v373 = vmax.f32 %v289, %v291
  %v374 = vmax.f32 %v292, %v294
  %v375 = vmax.f32 %v293, %v295
  %v376 = vmax.f32 %v296, %v298
  %v377 = vmax.f32 %v297, %v299
  %v378 = vmax.f32 %v300, %v302
  %v379 = vmax.f32 %v301, %v303
  %v380 = vmax.f32 %v304, %v306
  %v381 = vmax.f32 %v305, %v307
  %v382 = vmax.f32 %v308, %v310
  %v383 = vmax.f32 %v309, %v311
  %v384 = vmax.f32 %v312, %v314
  %v385 = vmax.f32 %v313, %v315
  %v386 = vmax.f32 %v316, %v318
  %v387 = vmax.f32 %v317, %v319
  %v388 = vmax.f32 %v320, %v322
  %v389 = vmax.f32 %v321, %v323
  %v390 = vmax.f32 %v324, %v326
  %v391 = vmax.f32 %v325, %v327
  %v392 = vmax.f32 %v328, %v330
  %v393 = vmax.f32 %v329, %v331
  %v394 = vmax.f32 %v332, %v334
  %v395 = vmax.f32 %v333, %v335
  %v396 = vmax.f32 %v336, %v338
  %v397 = vmax.f32 %v337, %v339
  %v398 = vmax.f32 %v340, %v342
  %v399 = vmax.f32 %v341, %v343
  %400 = vst [vmem:[%s1] sm:$0xff] %v344
  %401 = vst [vmem:[%s1 + $0x8] sm:$0x3f] %v345
  %402 = vst [vmem:[%s1 + $0x10] sm:$0xff] %v346
  %403 = vst [vmem:[%s1 + $0x18] sm:$0x3f] %v347
  %404 = vst [vmem:[%s1 + $0x20] sm:$0xff] %v348
  %405 = vst [vmem:[%s1 + $0x28] sm:$0x3f] %v349
  %406 = vst [vmem:[%s1 + $0x30] sm:$0xff] %v350
  %407 = vst [vmem:[%s1 + $0x38] sm:$0x3f] %v351
  %408 = vst [vmem:[%s1 + $0x40] sm:$0xff] %v352
  %409 = vst [vmem:[%s1 + $0x48] sm:$0x3f] %v353
  %410 = vst [vmem:[%s1 + $0x50] sm:$0xff] %v354
  %411 = vst [vmem:[%s1 + $0x58] sm:$0x3f] %v355
  %412 = vst [vmem:[%s1 + $0x60] sm:$0xff] %v356
  %413 = vst [vmem:[%s1 + $0x68] sm:$0x3f] %v357
  %414 = vst [vmem:[%s1 + $0x70] sm:$0xff] %v358
  %415 = vst [vmem:[%s1 + $0x78] sm:$0x3f] %v359
  %416 = vst [vmem:[%s1 + $0x80] sm:$0xff] %v360
  %417 = vst [vmem:[%s1 + $0x88] sm:$0x3f] %v361
  %418 = vst [vmem:[%s1 + $0x90] sm:$0xff] %v362
  %419 = vst [vmem:[%s1 + $0x98] sm:$0x3f] %v363
  %420 = vst [vmem:[%s1 + $0xa0] sm:$0xff] %v364
  %421 = vst [vmem:[%s1 + $0xa8] sm:$0x3f] %v365
  %422 = vst [vmem:[%s1 + $0xb0] sm:$0xff] %v366
  %423 = vst [vmem:[%s1 + $0xb8] sm:$0x3f] %v367
  %424 = vst [vmem:[%s1 + $0xc0] sm:$0xff] %v368
  %425 = vst [vmem:[%s1 + $0xc8] sm:$0x3f] %v369
  %426 = vst [vmem:[%s1 + $0xd0] sm:$0xff] %v370
  %427 = vst [vmem:[%s1 + $0xd8] sm:$0x3f] %v371
  %428 = vst [vmem:[%s1 + $0xe0] sm:$0xff] %v372
  %429 = vst [vmem:[%s1 + $0xe8] sm:$0x3f] %v373
  %430 = vst [vmem:[%s1 + $0xf0] sm:$0xff] %v374
  %431 = vst [vmem:[%s1 + $0xf8] sm:$0x3f] %v375
  %432 = vst [vmem:[%s1 + $0x100] sm:$0xff] %v376
  %433 = vst [vmem:[%s1 + $0x108] sm:$0x3f] %v377
  %434 = vst [vmem:[%s1 + $0x110] sm:$0xff] %v378
  %435 = vst [vmem:[%s1 + $0x118] sm:$0x3f] %v379
  %436 = vst [vmem:[%s1 + $0x120] sm:$0xff] %v380
  %437 = vst [vmem:[%s1 + $0x128] sm:$0x3f] %v381
  %438 = vst [vmem:[%s1 + $0x130] sm:$0xff] %v382
  %439 = vst [vmem:[%s1 + $0x138] sm:$0x3f] %v383
  %440 = vst [vmem:[%s1 + $0x140] sm:$0xff] %v384
  %441 = vst [vmem:[%s1 + $0x148] sm:$0x3f] %v385
  %442 = vst [vmem:[%s1 + $0x150] sm:$0xff] %v386
  %443 = vst [vmem:[%s1 + $0x158] sm:$0x3f] %v387
  %444 = vst [vmem:[%s1 + $0x160] sm:$0xff] %v388
  %445 = vst [vmem:[%s1 + $0x168] sm:$0x3f] %v389
  %446 = vst [vmem:[%s1 + $0x170] sm:$0xff] %v390
  %447 = vst [vmem:[%s1 + $0x178] sm:$0x3f] %v391
  %448 = vst [vmem:[%s1 + $0x180] sm:$0xff] %v392
  %449 = vst [vmem:[%s1 + $0x188] sm:$0x3f] %v393
  %450 = vst [vmem:[%s1 + $0x190] sm:$0xff] %v394
  %451 = vst [vmem:[%s1 + $0x198] sm:$0x3f] %v395
  %452 = vst [vmem:[%s1 + $0x1a0] sm:$0xff] %v396
  %453 = vst [vmem:[%s1 + $0x1a8] sm:$0x3f] %v397
  %454 = vst [vmem:[%s1 + $0x1b0] sm:$0xff] %v398
  %455 = vst [vmem:[%s1 + $0x1b8] sm:$0x3f] %v399
  // Predicated region
  $region6: #{lenet_forward.6} parent=0 // pred_check
    _
  $region7: #{lenet_forward.6} parent=0 // pred_check_branch
    %457 = sbr.rel (0) target = $region9
  $region8: #{lenet_forward.6} parent=0 // pred_region
    _
  $region9: #{lenet_forward.6} parent=0 // pred_fallthru
    _
  // Predicated region
  $region10: #{lenet_forward.6} parent=0 // pred_check
    _
  $region11: #{lenet_forward.6} parent=0 // pred_check_branch
    %459 = sbr.rel (0) target = $region13
  $region12: #{lenet_forward.6} parent=0 // pred_region
    _
  $region13: #{lenet_forward.6} parent=0 // pred_fallthru
    _

// kernel: lenet_forward.7
$region0: #{lenet_forward.7}
  #allocation0 [shape = 'u32[]', space=smem, size = 0x4, offset = 0x4, fixed_abs, tag = 'smem constant byte address 0x4 - core index']
  #allocation1 [shape = 'u32[144,128]{1,0:T(1,128)}', space=vmem, size = 0x12000, scoped, tag = 'internal scratch']
  %s0 = inlined_call_operand.vmem [shape: f32[200,150], index: 0, kind: input, shape index: {}]
  %s1 = inlined_call_operand.vmem [shape: f32[150,128], index: 1, kind: input, shape index: {}]
  %s2 = inlined_call_operand.vmem [shape: f32[1,128], index: 2, kind: input, shape index: {}]
  %s3 = inlined_call_operand.vmem [shape: f32[200,128], index: 3, kind: output, shape index: {}]
  %s4 = sld [smem:[#allocation0]]
  $region22: #{lenet_forward.7} parent=0
    _
  %s6 = ssub.s32 1, %s4
  %s7 = scalar_select 0, %s6, %s4
  // Predicated region
  $region2: #{lenet_forward.7} parent=0 // pred_check
    _
  $region3: #{lenet_forward.7} parent=0 // pred_check_branch
    %9 = sbr.rel (0) target = $region5
  $region4: #{lenet_forward.7} parent=0 // pred_region
    _
  $region5: #{lenet_forward.7} parent=0 // pred_fallthru
    _
  // Predicated region
  $region6: #{lenet_forward.7} parent=0 // pred_check
    _
  $region7: #{lenet_forward.7} parent=0 // pred_check_branch
    %11 = sbr.rel (0) target = $region9
  $region8: #{lenet_forward.7} parent=0 // pred_region
    _
  $region9: #{lenet_forward.7} parent=0 // pred_fallthru
    _
  // Predicated region
  $region10: #{lenet_forward.7} parent=0 // pred_check
    _
  $region11: #{lenet_forward.7} parent=0 // pred_check_branch
    %13 = sbr.rel (0) target = $region13
  $region12: #{lenet_forward.7} parent=0 // pred_region
    _
  $region13: #{lenet_forward.7} parent=0 // pred_fallthru
    _
  %v14 = vld [vmem:[%s0] sm:$0xff]
  %v15 = vld [vmem:[%s0 + $0x8] sm:$0xff]
  %v16 = vld [vmem:[%s0 + $0x10] sm:$0xff]
  %v17 = vld [vmem:[%s0 + $0x18] sm:$0xff]
  %v18 = vld [vmem:[%s0 + $0x20] sm:$0xff]
  %v19 = vld [vmem:[%s0 + $0x28] sm:$0xff]
  %v20 = vld [vmem:[%s0 + $0x30] sm:$0xff]
  %v21 = vld [vmem:[%s0 + $0x38] sm:$0xff]
  %v22 = vld [vmem:[%s0 + $0x40] sm:$0xff]
  %v23 = vld [vmem:[%s0 + $0x48] sm:$0xff]
  %v24 = vld [vmem:[%s0 + $0x50] sm:$0xff]
  %v25 = vld [vmem:[%s0 + $0x58] sm:$0xff]
  %v26 = vld [vmem:[%s0 + $0x60] sm:$0xff]
  %v27 = vld [vmem:[%s0 + $0x68] sm:$0xff]
  %v28 = vld [vmem:[%s0 + $0x70] sm:$0xff]
  %v29 = vld [vmem:[%s0 + $0x78] sm:$0xff]
  %v30 = vld [vmem:[%s0 + $0x80] sm:$0xff]
  %v31 = vld [vmem:[%s0 + $0x88] sm:$0xff]
  %v32 = vld [vmem:[%s0 + $0x90] sm:$0xff]
  %v33 = vld [vmem:[%s0 + $0x98] sm:$0xff]
  %v34 = vld [vmem:[%s0 + $0xa0] sm:$0xff]
  %v35 = vld [vmem:[%s0 + $0xa8] sm:$0xff]
  %v36 = vld [vmem:[%s0 + $0xb0] sm:$0xff]
  %v37 = vld [vmem:[%s0 + $0xb8] sm:$0xff]
  %v38 = vld [vmem:[%s0 + $0xc0] sm:$0xff]
  %v39 = vld [vmem:[%s0 + $0xc8] sm:$0xff]
  %v40 = vld [vmem:[%s0 + $0xd0] sm:$0xff]
  %v41 = vld [vmem:[%s0 + $0xd8] sm:$0xff]
  %v42 = vld [vmem:[%s0 + $0xe0] sm:$0xff]
  %v43 = vld [vmem:[%s0 + $0xe8] sm:$0xff]
  %v44 = vld [vmem:[%s0 + $0xf0] sm:$0xff]
  %v45 = vld [vmem:[%s0 + $0xf8] sm:$0xff]
  %v46 = vld [vmem:[%s0 + $0x100] sm:$0xff]
  %v47 = vld [vmem:[%s0 + $0x108] sm:$0xff]
  %v48 = vld [vmem:[%s0 + $0x110] sm:$0xff]
  %v49 = vld [vmem:[%s0 + $0x118] sm:$0xff]
  %v50 = vld [vmem:[%s0 + $0x120] sm:$0xff]
  %v51 = vld [vmem:[%s0 + $0x128] sm:$0xff]
  %v52 = vld [vmem:[%s0 + $0x130] sm:$0xff]
  %v53 = vld [vmem:[%s0 + $0x138] sm:$0xff]
  %v54 = vld [vmem:[%s0 + $0x140] sm:$0xff]
  %v55 = vld [vmem:[%s0 + $0x148] sm:$0xff]
  %v56 = vld [vmem:[%s0 + $0x150] sm:$0xff]
  %v57 = vld [vmem:[%s0 + $0x158] sm:$0xff]
  %v58 = vld [vmem:[%s0 + $0x160] sm:$0xff]
  %v59 = vld [vmem:[%s0 + $0x168] sm:$0xff]
  %v60 = vld [vmem:[%s0 + $0x170] sm:$0xff]
  %v61 = vld [vmem:[%s0 + $0x178] sm:$0xff]
  %v62 = vld [vmem:[%s0 + $0x180] sm:$0xff]
  %v63 = vld [vmem:[%s0 + $0x188] sm:$0xff]
  %v64 = vld [vmem:[%s1] sm:$0xff]
  %v65 = vld [vmem:[%s1 + $0x8] sm:$0xff]
  %v66 = vld [vmem:[%s1 + $0x10] sm:$0xff]
  %v67 = vld [vmem:[%s1 + $0x18] sm:$0xff]
  %v68 = vld [vmem:[%s1 + $0x20] sm:$0xff]
  %v69 = vld [vmem:[%s1 + $0x28] sm:$0xff]
  %v70 = vld [vmem:[%s1 + $0x30] sm:$0xff]
  %v71 = vld [vmem:[%s1 + $0x38] sm:$0xff]
  %v72 = vld [vmem:[%s1 + $0x40] sm:$0xff]
  %v73 = vld [vmem:[%s1 + $0x48] sm:$0xff]
  %v74 = vld [vmem:[%s1 + $0x50] sm:$0xff]
  %v75 = vld [vmem:[%s1 + $0x58] sm:$0xff]
  %v76 = vld [vmem:[%s1 + $0x60] sm:$0xff]
  %v77 = vld [vmem:[%s1 + $0x68] sm:$0xff]
  %v78 = vld [vmem:[%s1 + $0x70] sm:$0xff]
  %v79 = vld [vmem:[%s1 + $0x78] sm:$0xff]
  %v80 = vld [vmem:[%s1 + $0x80] sm:$0xff]
  %v81 = vld [vmem:[%s1 + $0x88] sm:$0xff]
  %v82 = vld [vmem:[%s1 + $0x90] sm:$0x3f]
  %v83 = vld [vmem:[%s2] sm:$0x1]
  %v85 = vlaneseq
  %v86 = vshrl.u32 %v85, 7
  %v87 = vsub.s32 0, %v86
  %v88 = vrot.slane %v83, %v87
  %vm90 = vcmask 179200
  %v92 = vsel %vm90, %v15, 0
  %v95 = vsel %vm90, %v17, 0
  %v98 = vsel %vm90, %v19, 0
  %v101 = vsel %vm90, %v21, 0
  %v104 = vsel %vm90, %v23, 0
  %v107 = vsel %vm90, %v25, 0
  %v110 = vsel %vm90, %v27, 0
  %v113 = vsel %vm90, %v29, 0
  %v116 = vsel %vm90, %v31, 0
  %v119 = vsel %vm90, %v33, 0
  %v122 = vsel %vm90, %v35, 0
  %v125 = vsel %vm90, %v37, 0
  %v128 = vsel %vm90, %v39, 0
  %v131 = vsel %vm90, %v41, 0
  %v134 = vsel %vm90, %v43, 0
  %v137 = vsel %vm90, %v45, 0
  %v140 = vsel %vm90, %v47, 0
  %v143 = vsel %vm90, %v49, 0
  %v146 = vsel %vm90, %v51, 0
  %v149 = vsel %vm90, %v53, 0
  %v152 = vsel %vm90, %v55, 0
  %v155 = vsel %vm90, %v57, 0
  %v158 = vsel %vm90, %v59, 0
  %v161 = vsel %vm90, %v61, 0
  %v164 = vsel %vm90, %v63, 0
  %vm166 = vcmask 1045504
  %v168 = vsel %vm166, %v82, 0
  %170 = vmatprep.subr.mxu0 0.0
  %171 = vmatpush1.msra.mxu0 %v79
  %172 = vmatprep.subr.mxu0 0.0
  %173 = vmatpush1.msra.mxu0 %v78
  %174 = vmatprep.subr.mxu0 0.0
  %175 = vmatpush1.msra.mxu0 %v77
  %176 = vmatprep.subr.mxu0 0.0
  %177 = vmatpush1.msra.mxu0 %v76
  %178 = vmatprep.subr.mxu0 0.0
  %179 = vmatpush1.msra.mxu0 %v75
  %180 = vmatprep.subr.mxu0 0.0
  %181 = vmatpush1.msra.mxu0 %v74
  %182 = vmatprep.subr.mxu0 0.0
  %183 = vmatpush1.msra.mxu0 %v73
  %184 = vmatprep.subr.mxu0 0.0
  %185 = vmatpush1.msra.mxu0 %v72
  %186 = vmatprep.subr.mxu0 0.0
  %187 = vmatpush1.msra.mxu0 %v71
  %188 = vmatprep.subr.mxu0 0.0
  %189 = vmatpush1.msra.mxu0 %v70
  %190 = vmatprep.subr.mxu0 0.0
  %191 = vmatpush1.msra.mxu0 %v69
  %192 = vmatprep.subr.mxu0 0.0
  %193 = vmatpush1.msra.mxu0 %v68
  %194 = vmatprep.subr.mxu0 0.0
  %195 = vmatpush1.msra.mxu0 %v67
  %196 = vmatprep.subr.mxu0 0.0
  %197 = vmatpush1.msra.mxu0 %v66
  %198 = vmatprep.subr.mxu0 0.0
  %199 = vmatpush1.msra.mxu0 %v65
  %200 = vmatprep.subr.mxu0 0.0
  %201 = vmatpush1.msra.mxu0 %v64
  %202 = vmatprep.subr.mxu0 0.0
  %203 = vmatpush2.msra.mxu0 0.0
  %204 = vmatprep.subr.mxu0 0.0
  %205 = vmatpush2.msra.mxu0 0.0
  %206 = vmatprep.subr.mxu0 0.0
  %207 = vmatpush2.msra.mxu0 0.0
  %208 = vmatprep.subr.mxu0 0.0
  %209 = vmatpush2.msra.mxu0 0.0
  %210 = vmatprep.subr.mxu0 0.0
  %211 = vmatpush2.msra.mxu0 0.0
  %212 = vmatprep.subr.mxu0 0.0
  %213 = vmatpush2.msra.mxu0 0.0
  %214 = vmatprep.subr.mxu0 0.0
  %215 = vmatpush2.msra.mxu0 0.0
  %216 = vmatprep.subr.mxu0 0.0
  %217 = vmatpush2.msra.mxu0 0.0
  %218 = vmatprep.subr.mxu0 0.0
  %219 = vmatpush2.msra.mxu0 0.0
  %220 = vmatprep.subr.mxu0 0.0
  %221 = vmatpush2.msra.mxu0 0.0
  %222 = vmatprep.subr.mxu0 0.0
  %223 = vmatpush2.msra.mxu0 0.0
  %224 = vmatprep.subr.mxu0 0.0
  %225 = vmatpush2.msra.mxu0 0.0
  %226 = vmatprep.subr.mxu0 0.0
  %227 = vmatpush2.msra.mxu0 0.0
  %228 = vmatprep.subr.mxu0 0.0
  %229 = vmatpush2.msra.mxu0 %v168
  %230 = vmatprep.subr.mxu0 0.0
  %231 = vmatpush2.msra.mxu0 %v81
  %232 = vmatprep.subr.mxu0 0.0
  %233 = vmatpush2.msra.mxu0 %v80
  %234 = vmatprep.mubr.f32.mxu0 %v92
  %235 = vmatmul.mubr.f32.gmra.mxu0 %v14
  %v236 = vpop.f32.mrf.mxu0
  %v237 = vadd.f32 %v88, %v236
  %v238 = vpop.f32.mrf.mxu0
  %239 = vmatprep.mubr.f32.mxu0 %v95
  %240 = vmatmul.mubr.f32.gmra.mxu0 %v16
  %v241 = vpop.f32.mrf.mxu0
  %v242 = vadd.f32 %v88, %v241
  %v243 = vpop.f32.mrf.mxu0
  %244 = vmatprep.mubr.f32.mxu0 %v98
  %245 = vmatmul.mubr.f32.gmra.mxu0 %v18
  %v246 = vpop.f32.mrf.mxu0
  %v247 = vadd.f32 %v88, %v246
  %v248 = vpop.f32.mrf.mxu0
  %249 = vmatprep.mubr.f32.mxu0 %v101
  %250 = vmatmul.mubr.f32.gmra.mxu0 %v20
  %v251 = vpop.f32.mrf.mxu0
  %v252 = vadd.f32 %v88, %v251
  %v253 = vpop.f32.mrf.mxu0
  %254 = vmatprep.mubr.f32.mxu0 %v104
  %255 = vmatmul.mubr.f32.gmra.mxu0 %v22
  %v256 = vpop.f32.mrf.mxu0
  %v257 = vadd.f32 %v88, %v256
  %v258 = vpop.f32.mrf.mxu0
  %259 = vmatprep.mubr.f32.mxu0 %v107
  %260 = vmatmul.mubr.f32.gmra.mxu0 %v24
  %v261 = vpop.f32.mrf.mxu0
  %v262 = vadd.f32 %v88, %v261
  %v263 = vpop.f32.mrf.mxu0
  %264 = vmatprep.mubr.f32.mxu0 %v110
  %265 = vmatmul.mubr.f32.gmra.mxu0 %v26
  %v266 = vpop.f32.mrf.mxu0
  %v267 = vadd.f32 %v88, %v266
  %v268 = vpop.f32.mrf.mxu0
  %269 = vmatprep.mubr.f32.mxu0 %v113
  %270 = vmatmul.mubr.f32.gmra.mxu0 %v28
  %v271 = vpop.f32.mrf.mxu0
  %v272 = vadd.f32 %v88, %v271
  %v273 = vpop.f32.mrf.mxu0
  %274 = vmatprep.mubr.f32.mxu0 %v116
  %275 = vmatmul.mubr.f32.gmra.mxu0 %v30
  %v276 = vpop.f32.mrf.mxu0
  %v277 = vadd.f32 %v88, %v276
  %v278 = vpop.f32.mrf.mxu0
  %279 = vmatprep.mubr.f32.mxu0 %v119
  %280 = vmatmul.mubr.f32.gmra.mxu0 %v32
  %v281 = vpop.f32.mrf.mxu0
  %v282 = vadd.f32 %v88, %v281
  %v283 = vpop.f32.mrf.mxu0
  %284 = vmatprep.mubr.f32.mxu0 %v122
  %285 = vmatmul.mubr.f32.gmra.mxu0 %v34
  %v286 = vpop.f32.mrf.mxu0
  %v287 = vadd.f32 %v88, %v286
  %v288 = vpop.f32.mrf.mxu0
  %289 = vmatprep.mubr.f32.mxu0 %v125
  %290 = vmatmul.mubr.f32.gmra.mxu0 %v36
  %v291 = vpop.f32.mrf.mxu0
  %v292 = vadd.f32 %v88, %v291
  %v293 = vpop.f32.mrf.mxu0
  %294 = vmatprep.mubr.f32.mxu0 %v128
  %295 = vmatmul.mubr.f32.gmra.mxu0 %v38
  %v296 = vpop.f32.mrf.mxu0
  %v297 = vadd.f32 %v88, %v296
  %v298 = vpop.f32.mrf.mxu0
  %299 = vmatprep.mubr.f32.mxu0 %v131
  %300 = vmatmul.mubr.f32.gmra.mxu0 %v40
  %v301 = vpop.f32.mrf.mxu0
  %v302 = vadd.f32 %v88, %v301
  %v303 = vpop.f32.mrf.mxu0
  %304 = vmatprep.mubr.f32.mxu0 %v134
  %305 = vmatmul.mubr.f32.gmra.mxu0 %v42
  %v306 = vpop.f32.mrf.mxu0
  %v307 = vadd.f32 %v88, %v306
  %v308 = vpop.f32.mrf.mxu0
  %309 = vmatprep.mubr.f32.mxu0 %v137
  %310 = vmatmul.mubr.f32.gmra.mxu0 %v44
  %v311 = vpop.f32.mrf.mxu0
  %v312 = vadd.f32 %v88, %v311
  %v313 = vpop.f32.mrf.mxu0
  %314 = vmatprep.mubr.f32.mxu0 %v140
  %315 = vmatmul.mubr.f32.gmra.mxu0 %v46
  %v316 = vpop.f32.mrf.mxu0
  %v317 = vadd.f32 %v88, %v316
  %v318 = vpop.f32.mrf.mxu0
  %319 = vmatprep.mubr.f32.mxu0 %v143
  %320 = vmatmul.mubr.f32.gmra.mxu0 %v48
  %v321 = vpop.f32.mrf.mxu0
  %v322 = vadd.f32 %v88, %v321
  %v323 = vpop.f32.mrf.mxu0
  %324 = vmatprep.mubr.f32.mxu0 %v146
  %325 = vmatmul.mubr.f32.gmra.mxu0 %v50
  %v326 = vpop.f32.mrf.mxu0
  %v327 = vadd.f32 %v88, %v326
  %v328 = vpop.f32.mrf.mxu0
  %329 = vmatprep.mubr.f32.mxu0 %v149
  %330 = vmatmul.mubr.f32.gmra.mxu0 %v52
  %v331 = vpop.f32.mrf.mxu0
  %v332 = vadd.f32 %v88, %v331
  %v333 = vpop.f32.mrf.mxu0
  %334 = vmatprep.mubr.f32.mxu0 %v152
  %335 = vmatmul.mubr.f32.gmra.mxu0 %v54
  %v336 = vpop.f32.mrf.mxu0
  %v337 = vadd.f32 %v88, %v336
  %v338 = vpop.f32.mrf.mxu0
  %339 = vmatprep.mubr.f32.mxu0 %v155
  %340 = vmatmul.mubr.f32.gmra.mxu0 %v56
  %v341 = vpop.f32.mrf.mxu0
  %v342 = vadd.f32 %v88, %v341
  %v343 = vpop.f32.mrf.mxu0
  %344 = vmatprep.mubr.f32.mxu0 %v158
  %345 = vmatmul.mubr.f32.gmra.mxu0 %v58
  %v346 = vpop.f32.mrf.mxu0
  %v347 = vadd.f32 %v88, %v346
  %v348 = vpop.f32.mrf.mxu0
  %349 = vmatprep.mubr.f32.mxu0 %v161
  %350 = vmatmul.mubr.f32.gmra.mxu0 %v60
  %v351 = vpop.f32.mrf.mxu0
  %v352 = vadd.f32 %v88, %v351
  %v353 = vpop.f32.mrf.mxu0
  %354 = vmatprep.mubr.f32.mxu0 %v164
  %355 = vmatmul.mubr.f32.gmra.mxu0 %v62
  %v356 = vpop.f32.mrf.mxu0
  %v357 = vadd.f32 %v88, %v356
  %v358 = vpop.f32.mrf.mxu0
  %359 = vdwg.mxu0
  %v360 = vmax.f32 %v237, 0.0
  %v361 = vmax.f32 %v242, 0.0
  %v362 = vmax.f32 %v247, 0.0
  %v363 = vmax.f32 %v252, 0.0
  %v364 = vmax.f32 %v257, 0.0
  %v365 = vmax.f32 %v262, 0.0
  %v366 = vmax.f32 %v267, 0.0
  %v367 = vmax.f32 %v272, 0.0
  %v368 = vmax.f32 %v277, 0.0
  %v369 = vmax.f32 %v282, 0.0
  %v370 = vmax.f32 %v287, 0.0
  %v371 = vmax.f32 %v292, 0.0
  %v372 = vmax.f32 %v297, 0.0
  %v373 = vmax.f32 %v302, 0.0
  %v374 = vmax.f32 %v307, 0.0
  %v375 = vmax.f32 %v312, 0.0
  %v376 = vmax.f32 %v317, 0.0
  %v377 = vmax.f32 %v322, 0.0
  %v378 = vmax.f32 %v327, 0.0
  %v379 = vmax.f32 %v332, 0.0
  %v380 = vmax.f32 %v337, 0.0
  %v381 = vmax.f32 %v342, 0.0
  %v382 = vmax.f32 %v347, 0.0
  %v383 = vmax.f32 %v352, 0.0
  %v384 = vmax.f32 %v357, 0.0
  %385 = vst [vmem:[%s3] sm:$0xff] %v360
  %386 = vst [vmem:[%s3 + $0x8] sm:$0xff] %v361
  %387 = vst [vmem:[%s3 + $0x10] sm:$0xff] %v362
  %388 = vst [vmem:[%s3 + $0x18] sm:$0xff] %v363
  %389 = vst [vmem:[%s3 + $0x20] sm:$0xff] %v364
  %390 = vst [vmem:[%s3 + $0x28] sm:$0xff] %v365
  %391 = vst [vmem:[%s3 + $0x30] sm:$0xff] %v366
  %392 = vst [vmem:[%s3 + $0x38] sm:$0xff] %v367
  %393 = vst [vmem:[%s3 + $0x40] sm:$0xff] %v368
  %394 = vst [vmem:[%s3 + $0x48] sm:$0xff] %v369
  %395 = vst [vmem:[%s3 + $0x50] sm:$0xff] %v370
  %396 = vst [vmem:[%s3 + $0x58] sm:$0xff] %v371
  %397 = vst [vmem:[%s3 + $0x60] sm:$0xff] %v372
  %398 = vst [vmem:[%s3 + $0x68] sm:$0xff] %v373
  %399 = vst [vmem:[%s3 + $0x70] sm:$0xff] %v374
  %400 = vst [vmem:[%s3 + $0x78] sm:$0xff] %v375
  %401 = vst [vmem:[%s3 + $0x80] sm:$0xff] %v376
  %402 = vst [vmem:[%s3 + $0x88] sm:$0xff] %v377
  %403 = vst [vmem:[%s3 + $0x90] sm:$0xff] %v378
  %404 = vst [vmem:[%s3 + $0x98] sm:$0xff] %v379
  %405 = vst [vmem:[%s3 + $0xa0] sm:$0xff] %v380
  %406 = vst [vmem:[%s3 + $0xa8] sm:$0xff] %v381
  %407 = vst [vmem:[%s3 + $0xb0] sm:$0xff] %v382
  %408 = vst [vmem:[%s3 + $0xb8] sm:$0xff] %v383
  %409 = vst [vmem:[%s3 + $0xc0] sm:$0xff] %v384
  // Predicated region
  $region14: #{lenet_forward.7} parent=0 // pred_check
    _
  $region15: #{lenet_forward.7} parent=0 // pred_check_branch
    %411 = sbr.rel (0) target = $region17
  $region16: #{lenet_forward.7} parent=0 // pred_region
    _
  $region17: #{lenet_forward.7} parent=0 // pred_fallthru
    _
  // Predicated region
  $region18: #{lenet_forward.7} parent=0 // pred_check
    _
  $region19: #{lenet_forward.7} parent=0 // pred_check_branch
    %413 = sbr.rel (0) target = $region21
  $region20: #{lenet_forward.7} parent=0 // pred_region
    _
  $region21: #{lenet_forward.7} parent=0 // pred_fallthru
    _

// kernel: lenet_forward.8
$region0: #{lenet_forward.8}
  #allocation0 [shape = 'u32[]', space=smem, size = 0x4, offset = 0x4, fixed_abs, tag = 'smem constant byte address 0x4 - core index']
  #allocation1 [shape = 'u32[144,128]{1,0:T(1,128)}', space=vmem, size = 0x12000, scoped, tag = 'internal scratch']
  %s0 = inlined_call_operand.vmem [shape: f32[10,2,5,256], index: 0, kind: input, shape index: {}]
  %s1 = inlined_call_operand.vmem [shape: f32[10,5,128], index: 1, kind: output, shape index: {}]
  %s2 = sld [smem:[#allocation0]]
  $region14: #{lenet_forward.8} parent=0
    _
  %s4 = ssub.s32 1, %s2
  %s5 = scalar_select 0, %s4, %s2
  // Predicated region
  $region2: #{lenet_forward.8} parent=0 // pred_check
    _
  $region3: #{lenet_forward.8} parent=0 // pred_check_branch
    %7 = sbr.rel (0) target = $region5
  $region4: #{lenet_forward.8} parent=0 // pred_region
    _
  $region5: #{lenet_forward.8} parent=0 // pred_fallthru
    _
  %v8 = vld [vmem:[%s0] sm:$0x1f]
  %v9 = vld [vmem:[%s0 + $0x8] sm:$0x1f]
  %v10 = vld [vmem:[%s0 + $0x10] sm:$0x1f]
  %v11 = vld [vmem:[%s0 + $0x18] sm:$0x1f]
  %v12 = vld [vmem:[%s0 + $0x20] sm:$0x1f]
  %v13 = vld [vmem:[%s0 + $0x28] sm:$0x1f]
  %v14 = vld [vmem:[%s0 + $0x30] sm:$0x1f]
  %v15 = vld [vmem:[%s0 + $0x38] sm:$0x1f]
  %v16 = vld [vmem:[%s0 + $0x40] sm:$0x1f]
  %v17 = vld [vmem:[%s0 + $0x48] sm:$0x1f]
  %v18 = vld [vmem:[%s0 + $0x50] sm:$0x1f]
  %v19 = vld [vmem:[%s0 + $0x58] sm:$0x1f]
  %v20 = vld [vmem:[%s0 + $0x60] sm:$0x1f]
  %v21 = vld [vmem:[%s0 + $0x68] sm:$0x1f]
  %v22 = vld [vmem:[%s0 + $0x70] sm:$0x1f]
  %v23 = vld [vmem:[%s0 + $0x78] sm:$0x1f]
  %v24 = vld [vmem:[%s0 + $0x80] sm:$0x1f]
  %v25 = vld [vmem:[%s0 + $0x88] sm:$0x1f]
  %v26 = vld [vmem:[%s0 + $0x90] sm:$0x1f]
  %v27 = vld [vmem:[%s0 + $0x98] sm:$0x1f]
  %v28 = vld [vmem:[%s0 + $0xa0] sm:$0x1f]
  %v29 = vld [vmem:[%s0 + $0xa8] sm:$0x1f]
  %v30 = vld [vmem:[%s0 + $0xb0] sm:$0x1f]
  %v31 = vld [vmem:[%s0 + $0xb8] sm:$0x1f]
  %v32 = vld [vmem:[%s0 + $0xc0] sm:$0x1f]
  %v33 = vld [vmem:[%s0 + $0xc8] sm:$0x1f]
  %v34 = vld [vmem:[%s0 + $0xd0] sm:$0x1f]
  %v35 = vld [vmem:[%s0 + $0xd8] sm:$0x1f]
  %v36 = vld [vmem:[%s0 + $0xe0] sm:$0x1f]
  %v37 = vld [vmem:[%s0 + $0xe8] sm:$0x1f]
  %v38 = vld [vmem:[%s0 + $0xf0] sm:$0x1f]
  %v39 = vld [vmem:[%s0 + $0xf8] sm:$0x1f]
  %v40 = vld [vmem:[%s0 + $0x100] sm:$0x1f]
  %v41 = vld [vmem:[%s0 + $0x108] sm:$0x1f]
  %v42 = vld [vmem:[%s0 + $0x110] sm:$0x1f]
  %v43 = vld [vmem:[%s0 + $0x118] sm:$0x1f]
  %v44 = vld [vmem:[%s0 + $0x120] sm:$0x1f]
  %v45 = vld [vmem:[%s0 + $0x128] sm:$0x1f]
  %v46 = vld [vmem:[%s0 + $0x130] sm:$0x1f]
  %v47 = vld [vmem:[%s0 + $0x138] sm:$0x1f]
  %v48 = vmax.f32 %v8, %v9
  %v49 = vmax.f32 %v10, %v11
  %v50 = vmax.f32 %v12, %v13
  %v51 = vmax.f32 %v14, %v15
  %v52 = vmax.f32 %v16, %v17
  %v53 = vmax.f32 %v18, %v19
  %v54 = vmax.f32 %v20, %v21
  %v55 = vmax.f32 %v22, %v23
  %v56 = vmax.f32 %v24, %v25
  %v57 = vmax.f32 %v26, %v27
  %v58 = vmax.f32 %v28, %v29
  %v59 = vmax.f32 %v30, %v31
  %v60 = vmax.f32 %v32, %v33
  %v61 = vmax.f32 %v34, %v35
  %v62 = vmax.f32 %v36, %v37
  %v63 = vmax.f32 %v38, %v39
  %v64 = vmax.f32 %v40, %v41
  %v65 = vmax.f32 %v42, %v43
  %v66 = vmax.f32 %v44, %v45
  %v67 = vmax.f32 %v46, %v47
  %v68 = vmax.f32 %v48, %v49
  %v69 = vmax.f32 %v50, %v51
  %v70 = vmax.f32 %v52, %v53
  %v71 = vmax.f32 %v54, %v55
  %v72 = vmax.f32 %v56, %v57
  %v73 = vmax.f32 %v58, %v59
  %v74 = vmax.f32 %v60, %v61
  %v75 = vmax.f32 %v62, %v63
  %v76 = vmax.f32 %v64, %v65
  %v77 = vmax.f32 %v66, %v67
  %78 = vst [vmem:[%s1] sm:$0x1f] %v68
  %79 = vst [vmem:[%s1 + $0x8] sm:$0x1f] %v69
  %80 = vst [vmem:[%s1 + $0x10] sm:$0x1f] %v70
  %81 = vst [vmem:[%s1 + $0x18] sm:$0x1f] %v71
  %82 = vst [vmem:[%s1 + $0x20] sm:$0x1f] %v72
  %83 = vst [vmem:[%s1 + $0x28] sm:$0x1f] %v73
  %84 = vst [vmem:[%s1 + $0x30] sm:$0x1f] %v74
  %85 = vst [vmem:[%s1 + $0x38] sm:$0x1f] %v75
  %86 = vst [vmem:[%s1 + $0x40] sm:$0x1f] %v76
  %87 = vst [vmem:[%s1 + $0x48] sm:$0x1f] %v77
  // Predicated region
  $region6: #{lenet_forward.8} parent=0 // pred_check
    _
  $region7: #{lenet_forward.8} parent=0 // pred_check_branch
    %89 = sbr.rel (0) target = $region9
  $region8: #{lenet_forward.8} parent=0 // pred_region
    _
  $region9: #{lenet_forward.8} parent=0 // pred_fallthru
    _
  // Predicated region
  $region10: #{lenet_forward.8} parent=0 // pred_check
    _
  $region11: #{lenet_forward.8} parent=0 // pred_check_branch
    %91 = sbr.rel (0) target = $region13
  $region12: #{lenet_forward.8} parent=0 // pred_region
    _
  $region13: #{lenet_forward.8} parent=0 // pred_fallthru
    _

// kernel: lenet_forward.9
$region0: #{lenet_forward.9}
  #allocation0 [shape = 'u32[]', space=smem, size = 0x4, offset = 0x4, fixed_abs, tag = 'smem constant byte address 0x4 - core index']
  #allocation1 [shape = 'u32[144,128]{1,0:T(1,128)}', space=vmem, size = 0x12000, scoped, tag = 'internal scratch']
  %s0 = inlined_call_operand.vmem [shape: f32[2,3200], index: 0, kind: input, shape index: {}]
  %s1 = inlined_call_operand.vmem [shape: f32[3200,128], index: 1, kind: input, shape index: {}]
  %s2 = inlined_call_operand.vmem [shape: f32[1,128], index: 2, kind: input, shape index: {}]
  %s3 = inlined_call_operand.vmem [shape: f32[128,128], index: 3, kind: input, shape index: {}]
  %s4 = inlined_call_operand.vmem [shape: f32[1,128], index: 4, kind: input, shape index: {}]
  %s5 = inlined_call_operand.vmem [shape: f32[128,128], index: 5, kind: input, shape index: {}]
  %s6 = inlined_call_operand.vmem [shape: f32[1,128], index: 6, kind: input, shape index: {}]
  %s7 = inlined_call_operand.hbm [shape: f32[2,128], index: 7, kind: output, shape index: {}]
  %s8 = sld [smem:[#allocation0]]
  $region38: #{lenet_forward.9} parent=0
    _
  %s10 = ssub.s32 1, %s8
  %s11 = scalar_select 0, %s10, %s8
  $region1: #{lenet_forward.9} parent=0
    #allocation2 [shape = 'u8[1024]{0}', space=vmem, size = 0x400, scoped, tag = 'output window, operand 0, single buffered']
    #allocation3 [shape = 's32[1]{0}', space=sflag, size = 0x4, scoped, tag = 'scoped memory for lenet_forward.9']
    %12 = vsyncpa [#allocation3], 0
    // Predicated region
    $region2: #{lenet_forward.9} parent=1 // pred_check
      _
    $region3: #{lenet_forward.9} parent=1 // pred_check_branch
      %14 = sbr.rel (0) target = $region5
    $region4: #{lenet_forward.9} parent=1 // pred_region
      _
    $region5: #{lenet_forward.9} parent=1 // pred_fallthru
      _
    // Predicated region
    $region6: #{lenet_forward.9} parent=1 // pred_check
      _
    $region7: #{lenet_forward.9} parent=1 // pred_check_branch
      %16 = sbr.rel (0) target = $region9
    $region8: #{lenet_forward.9} parent=1 // pred_region
      _
    $region9: #{lenet_forward.9} parent=1 // pred_fallthru
      _
    // Predicated region
    $region10: #{lenet_forward.9} parent=1 // pred_check
      _
    $region11: #{lenet_forward.9} parent=1 // pred_check_branch
      %18 = sbr.rel (0) target = $region13
    $region12: #{lenet_forward.9} parent=1 // pred_region
      _
    $region13: #{lenet_forward.9} parent=1 // pred_fallthru
      _
    // Predicated region
    $region14: #{lenet_forward.9} parent=1 // pred_check
      _
    $region15: #{lenet_forward.9} parent=1 // pred_check_branch
      %20 = sbr.rel (0) target = $region17
    $region16: #{lenet_forward.9} parent=1 // pred_region
      _
    $region17: #{lenet_forward.9} parent=1 // pred_fallthru
      _
    // Predicated region
    $region18: #{lenet_forward.9} parent=1 // pred_check
      _
    $region19: #{lenet_forward.9} parent=1 // pred_check_branch
      %22 = sbr.rel (0) target = $region21
    $region20: #{lenet_forward.9} parent=1 // pred_region
      _
    $region21: #{lenet_forward.9} parent=1 // pred_fallthru
      _
    // Predicated region
    $region22: #{lenet_forward.9} parent=1 // pred_check
      _
    $region23: #{lenet_forward.9} parent=1 // pred_check_branch
      %24 = sbr.rel (0) target = $region25
    $region24: #{lenet_forward.9} parent=1 // pred_region
      _
    $region25: #{lenet_forward.9} parent=1 // pred_fallthru
      _
    // Predicated region
    $region26: #{lenet_forward.9} parent=1 // pred_check
      _
    $region27: #{lenet_forward.9} parent=1 // pred_check_branch
      %26 = sbr.rel (0) target = $region29
    $region28: #{lenet_forward.9} parent=1 // pred_region
      _
    $region29: #{lenet_forward.9} parent=1 // pred_fallthru
      _
    %v27 = vld [vmem:[%s0] sm:$0xff]
    %v28 = vld [vmem:[%s0 + $0x8] sm:$0xff]
    %v29 = vld [vmem:[%s0 + $0x10] sm:$0xff]
    %v30 = vld [vmem:[%s0 + $0x18] sm:$0xff]
    %v31 = vld [vmem:[%s0 + $0x20] sm:$0xff]
    %v32 = vld [vmem:[%s0 + $0x28] sm:$0xff]
    %v33 = vld [vmem:[%s0 + $0x30] sm:$0x3]
    %v34 = vld [vmem:[%s1] sm:$0xff]
    %v35 = vld [vmem:[%s1 + $0x8] sm:$0xff]
    %v36 = vld [vmem:[%s1 + $0x10] sm:$0xff]
    %v37 = vld [vmem:[%s1 + $0x18] sm:$0xff]
    %v38 = vld [vmem:[%s1 + $0x20] sm:$0xff]
    %v39 = vld [vmem:[%s1 + $0x28] sm:$0xff]
    %v40 = vld [vmem:[%s1 + $0x30] sm:$0xff]
    %v41 = vld [vmem:[%s1 + $0x38] sm:$0xff]
    %v42 = vld [vmem:[%s1 + $0x40] sm:$0xff]
    %v43 = vld [vmem:[%s1 + $0x48] sm:$0xff]
    %v44 = vld [vmem:[%s1 + $0x50] sm:$0xff]
    %v45 = vld [vmem:[%s1 + $0x58] sm:$0xff]
    %v46 = vld [vmem:[%s1 + $0x60] sm:$0xff]
    %v47 = vld [vmem:[%s1 + $0x68] sm:$0xff]
    %v48 = vld [vmem:[%s1 + $0x70] sm:$0xff]
    %v49 = vld [vmem:[%s1 + $0x78] sm:$0xff]
    %v50 = vld [vmem:[%s1 + $0x80] sm:$0xff]
    %v51 = vld [vmem:[%s1 + $0x88] sm:$0xff]
    %v52 = vld [vmem:[%s1 + $0x90] sm:$0xff]
    %v53 = vld [vmem:[%s1 + $0x98] sm:$0xff]
    %v54 = vld [vmem:[%s1 + $0xa0] sm:$0xff]
    %v55 = vld [vmem:[%s1 + $0xa8] sm:$0xff]
    %v56 = vld [vmem:[%s1 + $0xb0] sm:$0xff]
    %v57 = vld [vmem:[%s1 + $0xb8] sm:$0xff]
    %v58 = vld [vmem:[%s1 + $0xc0] sm:$0xff]
    %v59 = vld [vmem:[%s1 + $0xc8] sm:$0xff]
    %v60 = vld [vmem:[%s1 + $0xd0] sm:$0xff]
    %v61 = vld [vmem:[%s1 + $0xd8] sm:$0xff]
    %v62 = vld [vmem:[%s1 + $0xe0] sm:$0xff]
    %v63 = vld [vmem:[%s1 + $0xe8] sm:$0xff]
    %v64 = vld [vmem:[%s1 + $0xf0] sm:$0xff]
    %v65 = vld [vmem:[%s1 + $0xf8] sm:$0xff]
    %v66 = vld [vmem:[%s1 + $0x100] sm:$0xff]
    %v67 = vld [vmem:[%s1 + $0x108] sm:$0xff]
    %v68 = vld [vmem:[%s1 + $0x110] sm:$0xff]
    %v69 = vld [vmem:[%s1 + $0x118] sm:$0xff]
    %v70 = vld [vmem:[%s1 + $0x120] sm:$0xff]
    %v71 = vld [vmem:[%s1 + $0x128] sm:$0xff]
    %v72 = vld [vmem:[%s1 + $0x130] sm:$0xff]
    %v73 = vld [vmem:[%s1 + $0x138] sm:$0xff]
    %v74 = vld [vmem:[%s1 + $0x140] sm:$0xff]
    %v75 = vld [vmem:[%s1 + $0x148] sm:$0xff]
    %v76 = vld [vmem:[%s1 + $0x150] sm:$0xff]
    %v77 = vld [vmem:[%s1 + $0x158] sm:$0xff]
    %v78 = vld [vmem:[%s1 + $0x160] sm:$0xff]
    %v79 = vld [vmem:[%s1 + $0x168] sm:$0xff]
    %v80 = vld [vmem:[%s1 + $0x170] sm:$0xff]
    %v81 = vld [vmem:[%s1 + $0x178] sm:$0xff]
    %v82 = vld [vmem:[%s1 + $0x180] sm:$0xff]
    %v83 = vld [vmem:[%s1 + $0x188] sm:$0xff]
    %v84 = vld [vmem:[%s1 + $0x190] sm:$0xff]
    %v85 = vld [vmem:[%s1 + $0x198] sm:$0xff]
    %v86 = vld [vmem:[%s1 + $0x1a0] sm:$0xff]
    %v87 = vld [vmem:[%s1 + $0x1a8] sm:$0xff]
    %v88 = vld [vmem:[%s1 + $0x1b0] sm:$0xff]
    %v89 = vld [vmem:[%s1 + $0x1b8] sm:$0xff]
    %v90 = vld [vmem:[%s1 + $0x1c0] sm:$0xff]
    %v91 = vld [vmem:[%s1 + $0x1c8] sm:$0xff]
    %v92 = vld [vmem:[%s1 + $0x1d0] sm:$0xff]
    %v93 = vld [vmem:[%s1 + $0x1d8] sm:$0xff]
    %v94 = vld [vmem:[%s1 + $0x1e0] sm:$0xff]
    %v95 = vld [vmem:[%s1 + $0x1e8] sm:$0xff]
    %v96 = vld [vmem:[%s1 + $0x1f0] sm:$0xff]
    %v97 = vld [vmem:[%s1 + $0x1f8] sm:$0xff]
    %v98 = vld [vmem:[%s1 + $0x200] sm:$0xff]
    %v99 = vld [vmem:[%s1 + $0x208] sm:$0xff]
    %v100 = vld [vmem:[%s1 + $0x210] sm:$0xff]
    %v101 = vld [vmem:[%s1 + $0x218] sm:$0xff]
    %v102 = vld [vmem:[%s1 + $0x220] sm:$0xff]
    %v103 = vld [vmem:[%s1 + $0x228] sm:$0xff]
    %v104 = vld [vmem:[%s1 + $0x230] sm:$0xff]
    %v105 = vld [vmem:[%s1 + $0x238] sm:$0xff]
    %v106 = vld [vmem:[%s1 + $0x240] sm:$0xff]
    %v107 = vld [vmem:[%s1 + $0x248] sm:$0xff]
    %v108 = vld [vmem:[%s1 + $0x250] sm:$0xff]
    %v109 = vld [vmem:[%s1 + $0x258] sm:$0xff]
    %v110 = vld [vmem:[%s1 + $0x260] sm:$0xff]
    %v111 = vld [vmem:[%s1 + $0x268] sm:$0xff]
    %v112 = vld [vmem:[%s1 + $0x270] sm:$0xff]
    %v113 = vld [vmem:[%s1 + $0x278] sm:$0xff]
    %v114 = vld [vmem:[%s1 + $0x280] sm:$0xff]
    %v115 = vld [vmem:[%s1 + $0x288] sm:$0xff]
    %v116 = vld [vmem:[%s1 + $0x290] sm:$0xff]
    %v117 = vld [vmem:[%s1 + $0x298] sm:$0xff]
    %v118 = vld [vmem:[%s1 + $0x2a0] sm:$0xff]
    %v119 = vld [vmem:[%s1 + $0x2a8] sm:$0xff]
    %v120 = vld [vmem:[%s1 + $0x2b0] sm:$0xff]
    %v121 = vld [vmem:[%s1 + $0x2b8] sm:$0xff]
    %v122 = vld [vmem:[%s1 + $0x2c0] sm:$0xff]
    %v123 = vld [vmem:[%s1 + $0x2c8] sm:$0xff]
    %v124 = vld [vmem:[%s1 + $0x2d0] sm:$0xff]
    %v125 = vld [vmem:[%s1 + $0x2d8] sm:$0xff]
    %v126 = vld [vmem:[%s1 + $0x2e0] sm:$0xff]
    %v127 = vld [vmem:[%s1 + $0x2e8] sm:$0xff]
    %v128 = vld [vmem:[%s1 + $0x2f0] sm:$0xff]
    %v129 = vld [vmem:[%s1 + $0x2f8] sm:$0xff]
    %v130 = vld [vmem:[%s1 + $0x300] sm:$0xff]
    %v131 = vld [vmem:[%s1 + $0x308] sm:$0xff]
    %v132 = vld [vmem:[%s1 + $0x310] sm:$0xff]
    %v133 = vld [vmem:[%s1 + $0x318] sm:$0xff]
    %v134 = vld [vmem:[%s1 + $0x320] sm:$0xff]
    %v135 = vld [vmem:[%s1 + $0x328] sm:$0xff]
    %v136 = vld [vmem:[%s1 + $0x330] sm:$0xff]
    %v137 = vld [vmem:[%s1 + $0x338] sm:$0xff]
    %v138 = vld [vmem:[%s1 + $0x340] sm:$0xff]
    %v139 = vld [vmem:[%s1 + $0x348] sm:$0xff]
    %v140 = vld [vmem:[%s1 + $0x350] sm:$0xff]
    %v141 = vld [vmem:[%s1 + $0x358] sm:$0xff]
    %v142 = vld [vmem:[%s1 + $0x360] sm:$0xff]
    %v143 = vld [vmem:[%s1 + $0x368] sm:$0xff]
    %v144 = vld [vmem:[%s1 + $0x370] sm:$0xff]
    %v145 = vld [vmem:[%s1 + $0x378] sm:$0xff]
    %v146 = vld [vmem:[%s1 + $0x380] sm:$0xff]
    %v147 = vld [vmem:[%s1 + $0x388] sm:$0xff]
    %v148 = vld [vmem:[%s1 + $0x390] sm:$0xff]
    %v149 = vld [vmem:[%s1 + $0x398] sm:$0xff]
    %v150 = vld [vmem:[%s1 + $0x3a0] sm:$0xff]
    %v151 = vld [vmem:[%s1 + $0x3a8] sm:$0xff]
    %v152 = vld [vmem:[%s1 + $0x3b0] sm:$0xff]
    %v153 = vld [vmem:[%s1 + $0x3b8] sm:$0xff]
    %v154 = vld [vmem:[%s1 + $0x3c0] sm:$0xff]
    %v155 = vld [vmem:[%s1 + $0x3c8] sm:$0xff]
    %v156 = vld [vmem:[%s1 + $0x3d0] sm:$0xff]
    %v157 = vld [vmem:[%s1 + $0x3d8] sm:$0xff]
    %v158 = vld [vmem:[%s1 + $0x3e0] sm:$0xff]
    %v159 = vld [vmem:[%s1 + $0x3e8] sm:$0xff]
    %v160 = vld [vmem:[%s1 + $0x3f0] sm:$0xff]
    %v161 = vld [vmem:[%s1 + $0x3f8] sm:$0xff]
    %v162 = vld [vmem:[%s1 + $0x400] sm:$0xff]
    %v163 = vld [vmem:[%s1 + $0x408] sm:$0xff]
    %v164 = vld [vmem:[%s1 + $0x410] sm:$0xff]
    %v165 = vld [vmem:[%s1 + $0x418] sm:$0xff]
    %v166 = vld [vmem:[%s1 + $0x420] sm:$0xff]
    %v167 = vld [vmem:[%s1 + $0x428] sm:$0xff]
    %v168 = vld [vmem:[%s1 + $0x430] sm:$0xff]
    %v169 = vld [vmem:[%s1 + $0x438] sm:$0xff]
    %v170 = vld [vmem:[%s1 + $0x440] sm:$0xff]
    %v171 = vld [vmem:[%s1 + $0x448] sm:$0xff]
    %v172 = vld [vmem:[%s1 + $0x450] sm:$0xff]
    %v173 = vld [vmem:[%s1 + $0x458] sm:$0xff]
    %v174 = vld [vmem:[%s1 + $0x460] sm:$0xff]
    %v175 = vld [vmem:[%s1 + $0x468] sm:$0xff]
    %v176 = vld [vmem:[%s1 + $0x470] sm:$0xff]
    %v177 = vld [vmem:[%s1 + $0x478] sm:$0xff]
    %v178 = vld [vmem:[%s1 + $0x480] sm:$0xff]
    %v179 = vld [vmem:[%s1 + $0x488] sm:$0xff]
    %v180 = vld [vmem:[%s1 + $0x490] sm:$0xff]
    %v181 = vld [vmem:[%s1 + $0x498] sm:$0xff]
    %v182 = vld [vmem:[%s1 + $0x4a0] sm:$0xff]
    %v183 = vld [vmem:[%s1 + $0x4a8] sm:$0xff]
    %v184 = vld [vmem:[%s1 + $0x4b0] sm:$0xff]
    %v185 = vld [vmem:[%s1 + $0x4b8] sm:$0xff]
    %v186 = vld [vmem:[%s1 + $0x4c0] sm:$0xff]
    %v187 = vld [vmem:[%s1 + $0x4c8] sm:$0xff]
    %v188 = vld [vmem:[%s1 + $0x4d0] sm:$0xff]
    %v189 = vld [vmem:[%s1 + $0x4d8] sm:$0xff]
    %v190 = vld [vmem:[%s1 + $0x4e0] sm:$0xff]
    %v191 = vld [vmem:[%s1 + $0x4e8] sm:$0xff]
    %v192 = vld [vmem:[%s1 + $0x4f0] sm:$0xff]
    %v193 = vld [vmem:[%s1 + $0x4f8] sm:$0xff]
    %v194 = vld [vmem:[%s1 + $0x500] sm:$0xff]
    %v195 = vld [vmem:[%s1 + $0x508] sm:$0xff]
    %v196 = vld [vmem:[%s1 + $0x510] sm:$0xff]
    %v197 = vld [vmem:[%s1 + $0x518] sm:$0xff]
    %v198 = vld [vmem:[%s1 + $0x520] sm:$0xff]
    %v199 = vld [vmem:[%s1 + $0x528] sm:$0xff]
    %v200 = vld [vmem:[%s1 + $0x530] sm:$0xff]
    %v201 = vld [vmem:[%s1 + $0x538] sm:$0xff]
    %v202 = vld [vmem:[%s1 + $0x540] sm:$0xff]
    %v203 = vld [vmem:[%s1 + $0x548] sm:$0xff]
    %v204 = vld [vmem:[%s1 + $0x550] sm:$0xff]
    %v205 = vld [vmem:[%s1 + $0x558] sm:$0xff]
    %v206 = vld [vmem:[%s1 + $0x560] sm:$0xff]
    %v207 = vld [vmem:[%s1 + $0x568] sm:$0xff]
    %v208 = vld [vmem:[%s1 + $0x570] sm:$0xff]
    %v209 = vld [vmem:[%s1 + $0x578] sm:$0xff]
    %v210 = vld [vmem:[%s1 + $0x580] sm:$0xff]
    %v211 = vld [vmem:[%s1 + $0x588] sm:$0xff]
    %v212 = vld [vmem:[%s1 + $0x590] sm:$0xff]
    %v213 = vld [vmem:[%s1 + $0x598] sm:$0xff]
    %v214 = vld [vmem:[%s1 + $0x5a0] sm:$0xff]
    %v215 = vld [vmem:[%s1 + $0x5a8] sm:$0xff]
    %v216 = vld [vmem:[%s1 + $0x5b0] sm:$0xff]
    %v217 = vld [vmem:[%s1 + $0x5b8] sm:$0xff]
    %v218 = vld [vmem:[%s1 + $0x5c0] sm:$0xff]
    %v219 = vld [vmem:[%s1 + $0x5c8] sm:$0xff]
    %v220 = vld [vmem:[%s1 + $0x5d0] sm:$0xff]
    %v221 = vld [vmem:[%s1 + $0x5d8] sm:$0xff]
    %v222 = vld [vmem:[%s1 + $0x5e0] sm:$0xff]
    %v223 = vld [vmem:[%s1 + $0x5e8] sm:$0xff]
    %v224 = vld [vmem:[%s1 + $0x5f0] sm:$0xff]
    %v225 = vld [vmem:[%s1 + $0x5f8] sm:$0xff]
    %v226 = vld [vmem:[%s1 + $0x600] sm:$0xff]
    %v227 = vld [vmem:[%s1 + $0x608] sm:$0xff]
    %v228 = vld [vmem:[%s1 + $0x610] sm:$0xff]
    %v229 = vld [vmem:[%s1 + $0x618] sm:$0xff]
    %v230 = vld [vmem:[%s1 + $0x620] sm:$0xff]
    %v231 = vld [vmem:[%s1 + $0x628] sm:$0xff]
    %v232 = vld [vmem:[%s1 + $0x630] sm:$0xff]
    %v233 = vld [vmem:[%s1 + $0x638] sm:$0xff]
    %v234 = vld [vmem:[%s1 + $0x640] sm:$0xff]
    %v235 = vld [vmem:[%s1 + $0x648] sm:$0xff]
    %v236 = vld [vmem:[%s1 + $0x650] sm:$0xff]
    %v237 = vld [vmem:[%s1 + $0x658] sm:$0xff]
    %v238 = vld [vmem:[%s1 + $0x660] sm:$0xff]
    %v239 = vld [vmem:[%s1 + $0x668] sm:$0xff]
    %v240 = vld [vmem:[%s1 + $0x670] sm:$0xff]
    %v241 = vld [vmem:[%s1 + $0x678] sm:$0xff]
    %v242 = vld [vmem:[%s1 + $0x680] sm:$0xff]
    %v243 = vld [vmem:[%s1 + $0x688] sm:$0xff]
    %v244 = vld [vmem:[%s1 + $0x690] sm:$0xff]
    %v245 = vld [vmem:[%s1 + $0x698] sm:$0xff]
    %v246 = vld [vmem:[%s1 + $0x6a0] sm:$0xff]
    %v247 = vld [vmem:[%s1 + $0x6a8] sm:$0xff]
    %v248 = vld [vmem:[%s1 + $0x6b0] sm:$0xff]
    %v249 = vld [vmem:[%s1 + $0x6b8] sm:$0xff]
    %v250 = vld [vmem:[%s1 + $0x6c0] sm:$0xff]
    %v251 = vld [vmem:[%s1 + $0x6c8] sm:$0xff]
    %v252 = vld [vmem:[%s1 + $0x6d0] sm:$0xff]
    %v253 = vld [vmem:[%s1 + $0x6d8] sm:$0xff]
    %v254 = vld [vmem:[%s1 + $0x6e0] sm:$0xff]
    %v255 = vld [vmem:[%s1 + $0x6e8] sm:$0xff]
    %v256 = vld [vmem:[%s1 + $0x6f0] sm:$0xff]
    %v257 = vld [vmem:[%s1 + $0x6f8] sm:$0xff]
    %v258 = vld [vmem:[%s1 + $0x700] sm:$0xff]
    %v259 = vld [vmem:[%s1 + $0x708] sm:$0xff]
    %v260 = vld [vmem:[%s1 + $0x710] sm:$0xff]
    %v261 = vld [vmem:[%s1 + $0x718] sm:$0xff]
    %v262 = vld [vmem:[%s1 + $0x720] sm:$0xff]
    %v263 = vld [vmem:[%s1 + $0x728] sm:$0xff]
    %v264 = vld [vmem:[%s1 + $0x730] sm:$0xff]
    %v265 = vld [vmem:[%s1 + $0x738] sm:$0xff]
    %v266 = vld [vmem:[%s1 + $0x740] sm:$0xff]
    %v267 = vld [vmem:[%s1 + $0x748] sm:$0xff]
    %v268 = vld [vmem:[%s1 + $0x750] sm:$0xff]
    %v269 = vld [vmem:[%s1 + $0x758] sm:$0xff]
    %v270 = vld [vmem:[%s1 + $0x760] sm:$0xff]
    %v271 = vld [vmem:[%s1 + $0x768] sm:$0xff]
    %v272 = vld [vmem:[%s1 + $0x770] sm:$0xff]
    %v273 = vld [vmem:[%s1 + $0x778] sm:$0xff]
    %v274 = vld [vmem:[%s1 + $0x780] sm:$0xff]
    %v275 = vld [vmem:[%s1 + $0x788] sm:$0xff]
    %v276 = vld [vmem:[%s1 + $0x790] sm:$0xff]
    %v277 = vld [vmem:[%s1 + $0x798] sm:$0xff]
    %v278 = vld [vmem:[%s1 + $0x7a0] sm:$0xff]
    %v279 = vld [vmem:[%s1 + $0x7a8] sm:$0xff]
    %v280 = vld [vmem:[%s1 + $0x7b0] sm:$0xff]
    %v281 = vld [vmem:[%s1 + $0x7b8] sm:$0xff]
    %v282 = vld [vmem:[%s1 + $0x7c0] sm:$0xff]
    %v283 = vld [vmem:[%s1 + $0x7c8] sm:$0xff]
    %v284 = vld [vmem:[%s1 + $0x7d0] sm:$0xff]
    %v285 = vld [vmem:[%s1 + $0x7d8] sm:$0xff]
    %v286 = vld [vmem:[%s1 + $0x7e0] sm:$0xff]
    %v287 = vld [vmem:[%s1 + $0x7e8] sm:$0xff]
    %v288 = vld [vmem:[%s1 + $0x7f0] sm:$0xff]
    %v289 = vld [vmem:[%s1 + $0x7f8] sm:$0xff]
    %v290 = vld [vmem:[%s1 + $0x800] sm:$0xff]
    %v291 = vld [vmem:[%s1 + $0x808] sm:$0xff]
    %v292 = vld [vmem:[%s1 + $0x810] sm:$0xff]
    %v293 = vld [vmem:[%s1 + $0x818] sm:$0xff]
    %v294 = vld [vmem:[%s1 + $0x820] sm:$0xff]
    %v295 = vld [vmem:[%s1 + $0x828] sm:$0xff]
    %v296 = vld [vmem:[%s1 + $0x830] sm:$0xff]
    %v297 = vld [vmem:[%s1 + $0x838] sm:$0xff]
    %v298 = vld [vmem:[%s1 + $0x840] sm:$0xff]
    %v299 = vld [vmem:[%s1 + $0x848] sm:$0xff]
    %v300 = vld [vmem:[%s1 + $0x850] sm:$0xff]
    %v301 = vld [vmem:[%s1 + $0x858] sm:$0xff]
    %v302 = vld [vmem:[%s1 + $0x860] sm:$0xff]
    %v303 = vld [vmem:[%s1 + $0x868] sm:$0xff]
    %v304 = vld [vmem:[%s1 + $0x870] sm:$0xff]
    %v305 = vld [vmem:[%s1 + $0x878] sm:$0xff]
    %v306 = vld [vmem:[%s1 + $0x880] sm:$0xff]
    %v307 = vld [vmem:[%s1 + $0x888] sm:$0xff]
    %v308 = vld [vmem:[%s1 + $0x890] sm:$0xff]
    %v309 = vld [vmem:[%s1 + $0x898] sm:$0xff]
    %v310 = vld [vmem:[%s1 + $0x8a0] sm:$0xff]
    %v311 = vld [vmem:[%s1 + $0x8a8] sm:$0xff]
    %v312 = vld [vmem:[%s1 + $0x8b0] sm:$0xff]
    %v313 = vld [vmem:[%s1 + $0x8b8] sm:$0xff]
    %v314 = vld [vmem:[%s1 + $0x8c0] sm:$0xff]
    %v315 = vld [vmem:[%s1 + $0x8c8] sm:$0xff]
    %v316 = vld [vmem:[%s1 + $0x8d0] sm:$0xff]
    %v317 = vld [vmem:[%s1 + $0x8d8] sm:$0xff]
    %v318 = vld [vmem:[%s1 + $0x8e0] sm:$0xff]
    %v319 = vld [vmem:[%s1 + $0x8e8] sm:$0xff]
    %v320 = vld [vmem:[%s1 + $0x8f0] sm:$0xff]
    %v321 = vld [vmem:[%s1 + $0x8f8] sm:$0xff]
    %v322 = vld [vmem:[%s1 + $0x900] sm:$0xff]
    %v323 = vld [vmem:[%s1 + $0x908] sm:$0xff]
    %v324 = vld [vmem:[%s1 + $0x910] sm:$0xff]
    %v325 = vld [vmem:[%s1 + $0x918] sm:$0xff]
    %v326 = vld [vmem:[%s1 + $0x920] sm:$0xff]
    %v327 = vld [vmem:[%s1 + $0x928] sm:$0xff]
    %v328 = vld [vmem:[%s1 + $0x930] sm:$0xff]
    %v329 = vld [vmem:[%s1 + $0x938] sm:$0xff]
    %v330 = vld [vmem:[%s1 + $0x940] sm:$0xff]
    %v331 = vld [vmem:[%s1 + $0x948] sm:$0xff]
    %v332 = vld [vmem:[%s1 + $0x950] sm:$0xff]
    %v333 = vld [vmem:[%s1 + $0x958] sm:$0xff]
    %v334 = vld [vmem:[%s1 + $0x960] sm:$0xff]
    %v335 = vld [vmem:[%s1 + $0x968] sm:$0xff]
    %v336 = vld [vmem:[%s1 + $0x970] sm:$0xff]
    %v337 = vld [vmem:[%s1 + $0x978] sm:$0xff]
    %v338 = vld [vmem:[%s1 + $0x980] sm:$0xff]
    %v339 = vld [vmem:[%s1 + $0x988] sm:$0xff]
    %v340 = vld [vmem:[%s1 + $0x990] sm:$0xff]
    %v341 = vld [vmem:[%s1 + $0x998] sm:$0xff]
    %v342 = vld [vmem:[%s1 + $0x9a0] sm:$0xff]
    %v343 = vld [vmem:[%s1 + $0x9a8] sm:$0xff]
    %v344 = vld [vmem:[%s1 + $0x9b0] sm:$0xff]
    %v345 = vld [vmem:[%s1 + $0x9b8] sm:$0xff]
    %v346 = vld [vmem:[%s1 + $0x9c0] sm:$0xff]
    %v347 = vld [vmem:[%s1 + $0x9c8] sm:$0xff]
    %v348 = vld [vmem:[%s1 + $0x9d0] sm:$0xff]
    %v349 = vld [vmem:[%s1 + $0x9d8] sm:$0xff]
    %v350 = vld [vmem:[%s1 + $0x9e0] sm:$0xff]
    %v351 = vld [vmem:[%s1 + $0x9e8] sm:$0xff]
    %v352 = vld [vmem:[%s1 + $0x9f0] sm:$0xff]
    %v353 = vld [vmem:[%s1 + $0x9f8] sm:$0xff]
    %v354 = vld [vmem:[%s1 + $0xa00] sm:$0xff]
    %v355 = vld [vmem:[%s1 + $0xa08] sm:$0xff]
    %v356 = vld [vmem:[%s1 + $0xa10] sm:$0xff]
    %v357 = vld [vmem:[%s1 + $0xa18] sm:$0xff]
    %v358 = vld [vmem:[%s1 + $0xa20] sm:$0xff]
    %v359 = vld [vmem:[%s1 + $0xa28] sm:$0xff]
    %v360 = vld [vmem:[%s1 + $0xa30] sm:$0xff]
    %v361 = vld [vmem:[%s1 + $0xa38] sm:$0xff]
    %v362 = vld [vmem:[%s1 + $0xa40] sm:$0xff]
    %v363 = vld [vmem:[%s1 + $0xa48] sm:$0xff]
    %v364 = vld [vmem:[%s1 + $0xa50] sm:$0xff]
    %v365 = vld [vmem:[%s1 + $0xa58] sm:$0xff]
    %v366 = vld [vmem:[%s1 + $0xa60] sm:$0xff]
    %v367 = vld [vmem:[%s1 + $0xa68] sm:$0xff]
    %v368 = vld [vmem:[%s1 + $0xa70] sm:$0xff]
    %v369 = vld [vmem:[%s1 + $0xa78] sm:$0xff]
    %v370 = vld [vmem:[%s1 + $0xa80] sm:$0xff]
    %v371 = vld [vmem:[%s1 + $0xa88] sm:$0xff]
    %v372 = vld [vmem:[%s1 + $0xa90] sm:$0xff]
    %v373 = vld [vmem:[%s1 + $0xa98] sm:$0xff]
    %v374 = vld [vmem:[%s1 + $0xaa0] sm:$0xff]
    %v375 = vld [vmem:[%s1 + $0xaa8] sm:$0xff]
    %v376 = vld [vmem:[%s1 + $0xab0] sm:$0xff]
    %v377 = vld [vmem:[%s1 + $0xab8] sm:$0xff]
    %v378 = vld [vmem:[%s1 + $0xac0] sm:$0xff]
    %v379 = vld [vmem:[%s1 + $0xac8] sm:$0xff]
    %v380 = vld [vmem:[%s1 + $0xad0] sm:$0xff]
    %v381 = vld [vmem:[%s1 + $0xad8] sm:$0xff]
    %v382 = vld [vmem:[%s1 + $0xae0] sm:$0xff]
    %v383 = vld [vmem:[%s1 + $0xae8] sm:$0xff]
    %v384 = vld [vmem:[%s1 + $0xaf0] sm:$0xff]
    %v385 = vld [vmem:[%s1 + $0xaf8] sm:$0xff]
    %v386 = vld [vmem:[%s1 + $0xb00] sm:$0xff]
    %v387 = vld [vmem:[%s1 + $0xb08] sm:$0xff]
    %v388 = vld [vmem:[%s1 + $0xb10] sm:$0xff]
    %v389 = vld [vmem:[%s1 + $0xb18] sm:$0xff]
    %v390 = vld [vmem:[%s1 + $0xb20] sm:$0xff]
    %v391 = vld [vmem:[%s1 + $0xb28] sm:$0xff]
    %v392 = vld [vmem:[%s1 + $0xb30] sm:$0xff]
    %v393 = vld [vmem:[%s1 + $0xb38] sm:$0xff]
    %v394 = vld [vmem:[%s1 + $0xb40] sm:$0xff]
    %v395 = vld [vmem:[%s1 + $0xb48] sm:$0xff]
    %v396 = vld [vmem:[%s1 + $0xb50] sm:$0xff]
    %v397 = vld [vmem:[%s1 + $0xb58] sm:$0xff]
    %v398 = vld [vmem:[%s1 + $0xb60] sm:$0xff]
    %v399 = vld [vmem:[%s1 + $0xb68] sm:$0xff]
    %v400 = vld [vmem:[%s1 + $0xb70] sm:$0xff]
    %v401 = vld [vmem:[%s1 + $0xb78] sm:$0xff]
    %v402 = vld [vmem:[%s1 + $0xb80] sm:$0xff]
    %v403 = vld [vmem:[%s1 + $0xb88] sm:$0xff]
    %v404 = vld [vmem:[%s1 + $0xb90] sm:$0xff]
    %v405 = vld [vmem:[%s1 + $0xb98] sm:$0xff]
    %v406 = vld [vmem:[%s1 + $0xba0] sm:$0xff]
    %v407 = vld [vmem:[%s1 + $0xba8] sm:$0xff]
    %v408 = vld [vmem:[%s1 + $0xbb0] sm:$0xff]
    %v409 = vld [vmem:[%s1 + $0xbb8] sm:$0xff]
    %v410 = vld [vmem:[%s1 + $0xbc0] sm:$0xff]
    %v411 = vld [vmem:[%s1 + $0xbc8] sm:$0xff]
    %v412 = vld [vmem:[%s1 + $0xbd0] sm:$0xff]
    %v413 = vld [vmem:[%s1 + $0xbd8] sm:$0xff]
    %v414 = vld [vmem:[%s1 + $0xbe0] sm:$0xff]
    %v415 = vld [vmem:[%s1 + $0xbe8] sm:$0xff]
    %v416 = vld [vmem:[%s1 + $0xbf0] sm:$0xff]
    %v417 = vld [vmem:[%s1 + $0xbf8] sm:$0xff]
    %v418 = vld [vmem:[%s1 + $0xc00] sm:$0xff]
    %v419 = vld [vmem:[%s1 + $0xc08] sm:$0xff]
    %v420 = vld [vmem:[%s1 + $0xc10] sm:$0xff]
    %v421 = vld [vmem:[%s1 + $0xc18] sm:$0xff]
    %v422 = vld [vmem:[%s1 + $0xc20] sm:$0xff]
    %v423 = vld [vmem:[%s1 + $0xc28] sm:$0xff]
    %v424 = vld [vmem:[%s1 + $0xc30] sm:$0xff]
    %v425 = vld [vmem:[%s1 + $0xc38] sm:$0xff]
    %v426 = vld [vmem:[%s1 + $0xc40] sm:$0xff]
    %v427 = vld [vmem:[%s1 + $0xc48] sm:$0xff]
    %v428 = vld [vmem:[%s1 + $0xc50] sm:$0xff]
    %v429 = vld [vmem:[%s1 + $0xc58] sm:$0xff]
    %v430 = vld [vmem:[%s1 + $0xc60] sm:$0xff]
    %v431 = vld [vmem:[%s1 + $0xc68] sm:$0xff]
    %v432 = vld [vmem:[%s1 + $0xc70] sm:$0xff]
    %v433 = vld [vmem:[%s1 + $0xc78] sm:$0xff]
    %v434 = vld [vmem:[%s2] sm:$0x1]
    %v436 = vlaneseq
    %v437 = vshrl.u32 %v436, 7
    %v438 = vsub.s32 0, %v437
    %v439 = vrot.slane %v434, %v438
    %v448 = vcombine.high %v27, %v27
    %v450 = vunpack.c.l.s4 1983009808
    %v451 = vunpack.c.0.s8 %v450
    %v452 = vlaneseq
    %v453 = vshrl.u32 %v452, 7
    %v454 = vsub.s32 %v451, %v453
    %v455 = vrot.slane %v27, %v454
    %v457 = vunpack.c.l.s4 1983009808
    %v458 = vunpack.c.0.s8 %v457
    %v459 = vlaneseq
    %v460 = vshrl.u32 %v459, 7
    %v461 = vsub.s32 %v458, %v460
    %v462 = vrot.slane %v448, %v461
    %v463 = vcombine.high %v455, %v455
    %v464 = vcombine.high %v462, %v462
    %v465 = vcombine.high %v28, %v28
    %v467 = vunpack.c.l.s4 1983009808
    %v468 = vunpack.c.0.s8 %v467
    %v469 = vlaneseq
    %v470 = vshrl.u32 %v469, 7
    %v471 = vsub.s32 %v468, %v470
    %v472 = vrot.slane %v28, %v471
    %v474 = vunpack.c.l.s4 1983009808
    %v475 = vunpack.c.0.s8 %v474
    %v476 = vlaneseq
    %v477 = vshrl.u32 %v476, 7
    %v478 = vsub.s32 %v475, %v477
    %v479 = vrot.slane %v465, %v478
    %v480 = vcombine.high %v472, %v472
    %v481 = vcombine.high %v479, %v479
    %v482 = vcombine.high %v29, %v29
    %v484 = vunpack.c.l.s4 1983009808
    %v485 = vunpack.c.0.s8 %v484
    %v486 = vlaneseq
    %v487 = vshrl.u32 %v486, 7
    %v488 = vsub.s32 %v485, %v487
    %v489 = vrot.slane %v29, %v488
    %v491 = vunpack.c.l.s4 1983009808
    %v492 = vunpack.c.0.s8 %v491
    %v493 = vlaneseq
    %v494 = vshrl.u32 %v493, 7
    %v495 = vsub.s32 %v492, %v494
    %v496 = vrot.slane %v482, %v495
    %v497 = vcombine.high %v489, %v489
    %v498 = vcombine.high %v496, %v496
    %v499 = vcombine.high %v30, %v30
    %v501 = vunpack.c.l.s4 1983009808
    %v502 = vunpack.c.0.s8 %v501
    %v503 = vlaneseq
    %v504 = vshrl.u32 %v503, 7
    %v505 = vsub.s32 %v502, %v504
    %v506 = vrot.slane %v30, %v505
    %v508 = vunpack.c.l.s4 1983009808
    %v509 = vunpack.c.0.s8 %v508
    %v510 = vlaneseq
    %v511 = vshrl.u32 %v510, 7
    %v512 = vsub.s32 %v509, %v511
    %v513 = vrot.slane %v499, %v512
    %v514 = vcombine.high %v506, %v506
    %v515 = vcombine.high %v513, %v513
    %v516 = vcombine.high %v31, %v31
    %v518 = vunpack.c.l.s4 1983009808
    %v519 = vunpack.c.0.s8 %v518
    %v520 = vlaneseq
    %v521 = vshrl.u32 %v520, 7
    %v522 = vsub.s32 %v519, %v521
    %v523 = vrot.slane %v31, %v522
    %v525 = vunpack.c.l.s4 1983009808
    %v526 = vunpack.c.0.s8 %v525
    %v527 = vlaneseq
    %v528 = vshrl.u32 %v527, 7
    %v529 = vsub.s32 %v526, %v528
    %v530 = vrot.slane %v516, %v529
    %v531 = vcombine.high %v523, %v523
    %v532 = vcombine.high %v530, %v530
    %v533 = vcombine.high %v32, %v32
    %v535 = vunpack.c.l.s4 1983009808
    %v536 = vunpack.c.0.s8 %v535
    %v537 = vlaneseq
    %v538 = vshrl.u32 %v537, 7
    %v539 = vsub.s32 %v536, %v538
    %v540 = vrot.slane %v32, %v539
    %v542 = vunpack.c.l.s4 1983009808
    %v543 = vunpack.c.0.s8 %v542
    %v544 = vlaneseq
    %v545 = vshrl.u32 %v544, 7
    %v546 = vsub.s32 %v543, %v545
    %v547 = vrot.slane %v533, %v546
    %v548 = vcombine.high %v540, %v540
    %v549 = vcombine.high %v547, %v547
    %v551 = vunpack.c.l.s4 1983009808
    %v552 = vunpack.c.0.s8 %v551
    %v553 = vlaneseq
    %v554 = vshrl.u32 %v553, 7
    %v555 = vsub.s32 %v552, %v554
    %v556 = vrot.slane %v33, %v555
    %582 = vmatprep.subr.mxu0 0.0
    %583 = vmatpush1.msra.mxu0 %v49
    %584 = vmatprep.subr.mxu0 0.0
    %585 = vmatpush1.msra.mxu0 %v48
    %586 = vmatprep.subr.mxu0 0.0
    %587 = vmatpush1.msra.mxu0 %v47
    %588 = vmatprep.subr.mxu0 0.0
    %589 = vmatpush1.msra.mxu0 %v46
    %590 = vmatprep.subr.mxu0 0.0
    %591 = vmatpush1.msra.mxu0 %v45
    %592 = vmatprep.subr.mxu0 0.0
    %593 = vmatpush1.msra.mxu0 %v44
    %594 = vmatprep.subr.mxu0 0.0
    %595 = vmatpush1.msra.mxu0 %v43
    %596 = vmatprep.subr.mxu0 0.0
    %597 = vmatpush1.msra.mxu0 %v42
    %598 = vmatprep.subr.mxu0 0.0
    %599 = vmatpush1.msra.mxu0 %v41
    %600 = vmatprep.subr.mxu0 0.0
    %601 = vmatpush1.msra.mxu0 %v40
    %602 = vmatprep.subr.mxu0 0.0
    %603 = vmatpush1.msra.mxu0 %v39
    %604 = vmatprep.subr.mxu0 0.0
    %605 = vmatpush1.msra.mxu0 %v38
    %606 = vmatprep.subr.mxu0 0.0
    %607 = vmatpush1.msra.mxu0 %v37
    %608 = vmatprep.subr.mxu0 0.0
    %609 = vmatpush1.msra.mxu0 %v36
    %610 = vmatprep.subr.mxu0 0.0
    %611 = vmatpush1.msra.mxu0 %v35
    %612 = vmatprep.subr.mxu0 0.0
    %613 = vmatpush1.msra.mxu0 %v34
    %614 = vmatprep.subr.mxu0 0.0
    %615 = vmatpush2.msra.mxu0 %v65
    %616 = vmatprep.subr.mxu0 0.0
    %617 = vmatpush2.msra.mxu0 %v64
    %618 = vmatprep.subr.mxu0 0.0
    %619 = vmatpush2.msra.mxu0 %v63
    %620 = vmatprep.subr.mxu0 0.0
    %621 = vmatpush2.msra.mxu0 %v62
    %622 = vmatprep.subr.mxu0 0.0
    %623 = vmatpush2.msra.mxu0 %v61
    %624 = vmatprep.subr.mxu0 0.0
    %625 = vmatpush2.msra.mxu0 %v60
    %626 = vmatprep.subr.mxu0 0.0
    %627 = vmatpush2.msra.mxu0 %v59
    %628 = vmatprep.subr.mxu0 0.0
    %629 = vmatpush2.msra.mxu0 %v58
    %630 = vmatprep.subr.mxu0 0.0
    %631 = vmatpush2.msra.mxu0 %v57
    %632 = vmatprep.subr.mxu0 0.0
    %633 = vmatpush2.msra.mxu0 %v56
    %634 = vmatprep.subr.mxu0 0.0
    %635 = vmatpush2.msra.mxu0 %v55
    %636 = vmatprep.subr.mxu0 0.0
    %637 = vmatpush2.msra.mxu0 %v54
    %638 = vmatprep.subr.mxu0 0.0
    %639 = vmatpush2.msra.mxu0 %v53
    %640 = vmatprep.subr.mxu0 0.0
    %641 = vmatpush2.msra.mxu0 %v52
    %642 = vmatprep.subr.mxu0 0.0
    %643 = vmatpush2.msra.mxu0 %v51
    %644 = vmatprep.subr.mxu0 0.0
    %645 = vmatpush2.msra.mxu0 %v50
    %646 = vmatprep.mubr.f32.mxu0 %v463
    %647 = vmatmul.mubr.f32.gmra.mxu0 %v455
    %v648 = vpop.f32.mrf.mxu0
    %v649 = vadd.f32 %v439, %v648
    %v650 = vpop.f32.mrf.mxu0
    %651 = vdwg.mxu0
    %652 = vmatprep.subr.mxu0 0.0
    %653 = vmatpush1.msra.mxu0 %v81
    %654 = vmatprep.subr.mxu0 0.0
    %655 = vmatpush1.msra.mxu0 %v80
    %656 = vmatprep.subr.mxu0 0.0
    %657 = vmatpush1.msra.mxu0 %v79
    %658 = vmatprep.subr.mxu0 0.0
    %659 = vmatpush1.msra.mxu0 %v78
    %660 = vmatprep.subr.mxu0 0.0
    %661 = vmatpush1.msra.mxu0 %v77
    %662 = vmatprep.subr.mxu0 0.0
    %663 = vmatpush1.msra.mxu0 %v76
    %664 = vmatprep.subr.mxu0 0.0
    %665 = vmatpush1.msra.mxu0 %v75
    %666 = vmatprep.subr.mxu0 0.0
    %667 = vmatpush1.msra.mxu0 %v74
    %668 = vmatprep.subr.mxu0 0.0
    %669 = vmatpush1.msra.mxu0 %v73
    %670 = vmatprep.subr.mxu0 0.0
    %671 = vmatpush1.msra.mxu0 %v72
    %672 = vmatprep.subr.mxu0 0.0
    %673 = vmatpush1.msra.mxu0 %v71
    %674 = vmatprep.subr.mxu0 0.0
    %675 = vmatpush1.msra.mxu0 %v70
    %676 = vmatprep.subr.mxu0 0.0
    %677 = vmatpush1.msra.mxu0 %v69
    %678 = vmatprep.subr.mxu0 0.0
    %679 = vmatpush1.msra.mxu0 %v68
    %680 = vmatprep.subr.mxu0 0.0
    %681 = vmatpush1.msra.mxu0 %v67
    %682 = vmatprep.subr.mxu0 0.0
    %683 = vmatpush1.msra.mxu0 %v66
    %684 = vmatprep.subr.mxu0 0.0
    %685 = vmatpush2.msra.mxu0 %v97
    %686 = vmatprep.subr.mxu0 0.0
    %687 = vmatpush2.msra.mxu0 %v96
    %688 = vmatprep.subr.mxu0 0.0
    %689 = vmatpush2.msra.mxu0 %v95
    %690 = vmatprep.subr.mxu0 0.0
    %691 = vmatpush2.msra.mxu0 %v94
    %692 = vmatprep.subr.mxu0 0.0
    %693 = vmatpush2.msra.mxu0 %v93
    %694 = vmatprep.subr.mxu0 0.0
    %695 = vmatpush2.msra.mxu0 %v92
    %696 = vmatprep.subr.mxu0 0.0
    %697 = vmatpush2.msra.mxu0 %v91
    %698 = vmatprep.subr.mxu0 0.0
    %699 = vmatpush2.msra.mxu0 %v90
    %700 = vmatprep.subr.mxu0 0.0
    %701 = vmatpush2.msra.mxu0 %v89
    %702 = vmatprep.subr.mxu0 0.0
    %703 = vmatpush2.msra.mxu0 %v88
    %704 = vmatprep.subr.mxu0 0.0
    %705 = vmatpush2.msra.mxu0 %v87
    %706 = vmatprep.subr.mxu0 0.0
    %707 = vmatpush2.msra.mxu0 %v86
    %708 = vmatprep.subr.mxu0 0.0
    %709 = vmatpush2.msra.mxu0 %v85
    %710 = vmatprep.subr.mxu0 0.0
    %711 = vmatpush2.msra.mxu0 %v84
    %712 = vmatprep.subr.mxu0 0.0
    %713 = vmatpush2.msra.mxu0 %v83
    %714 = vmatprep.subr.mxu0 0.0
    %715 = vmatpush2.msra.mxu0 %v82
    %716 = vmatprep.mubr.f32.mxu0 %v464
    %717 = vmatmul.mubr.f32.gmra.mxu0 %v462
    %v718 = vpop.f32.mrf.mxu0
    %v719 = vadd.f32 %v649, %v718
    %v720 = vpop.f32.mrf.mxu0
    %721 = vdwg.mxu0
    %722 = vmatprep.subr.mxu0 0.0
    %723 = vmatpush1.msra.mxu0 %v113
    %724 = vmatprep.subr.mxu0 0.0
    %725 = vmatpush1.msra.mxu0 %v112
    %726 = vmatprep.subr.mxu0 0.0
    %727 = vmatpush1.msra.mxu0 %v111
    %728 = vmatprep.subr.mxu0 0.0
    %729 = vmatpush1.msra.mxu0 %v110
    %730 = vmatprep.subr.mxu0 0.0
    %731 = vmatpush1.msra.mxu0 %v109
    %732 = vmatprep.subr.mxu0 0.0
    %733 = vmatpush1.msra.mxu0 %v108
    %734 = vmatprep.subr.mxu0 0.0
    %735 = vmatpush1.msra.mxu0 %v107
    %736 = vmatprep.subr.mxu0 0.0
    %737 = vmatpush1.msra.mxu0 %v106
    %738 = vmatprep.subr.mxu0 0.0
    %739 = vmatpush1.msra.mxu0 %v105
    %740 = vmatprep.subr.mxu0 0.0
    %741 = vmatpush1.msra.mxu0 %v104
    %742 = vmatprep.subr.mxu0 0.0
    %743 = vmatpush1.msra.mxu0 %v103
    %744 = vmatprep.subr.mxu0 0.0
    %745 = vmatpush1.msra.mxu0 %v102
    %746 = vmatprep.subr.mxu0 0.0
    %747 = vmatpush1.msra.mxu0 %v101
    %748 = vmatprep.subr.mxu0 0.0
    %749 = vmatpush1.msra.mxu0 %v100
    %750 = vmatprep.subr.mxu0 0.0
    %751 = vmatpush1.msra.mxu0 %v99
    %752 = vmatprep.subr.mxu0 0.0
    %753 = vmatpush1.msra.mxu0 %v98
    %754 = vmatprep.subr.mxu0 0.0
    %755 = vmatpush2.msra.mxu0 %v129
    %756 = vmatprep.subr.mxu0 0.0
    %757 = vmatpush2.msra.mxu0 %v128
    %758 = vmatprep.subr.mxu0 0.0
    %759 = vmatpush2.msra.mxu0 %v127
    %760 = vmatprep.subr.mxu0 0.0
    %761 = vmatpush2.msra.mxu0 %v126
    %762 = vmatprep.subr.mxu0 0.0
    %763 = vmatpush2.msra.mxu0 %v125
    %764 = vmatprep.subr.mxu0 0.0
    %765 = vmatpush2.msra.mxu0 %v124
    %766 = vmatprep.subr.mxu0 0.0
    %767 = vmatpush2.msra.mxu0 %v123
    %768 = vmatprep.subr.mxu0 0.0
    %769 = vmatpush2.msra.mxu0 %v122
    %770 = vmatprep.subr.mxu0 0.0
    %771 = vmatpush2.msra.mxu0 %v121
    %772 = vmatprep.subr.mxu0 0.0
    %773 = vmatpush2.msra.mxu0 %v120
    %774 = vmatprep.subr.mxu0 0.0
    %775 = vmatpush2.msra.mxu0 %v119
    %776 = vmatprep.subr.mxu0 0.0
    %777 = vmatpush2.msra.mxu0 %v118
    %778 = vmatprep.subr.mxu0 0.0
    %779 = vmatpush2.msra.mxu0 %v117
    %780 = vmatprep.subr.mxu0 0.0
    %781 = vmatpush2.msra.mxu0 %v116
    %782 = vmatprep.subr.mxu0 0.0
    %783 = vmatpush2.msra.mxu0 %v115
    %784 = vmatprep.subr.mxu0 0.0
    %785 = vmatpush2.msra.mxu0 %v114
    %786 = vmatprep.mubr.f32.mxu0 %v480
    %787 = vmatmul.mubr.f32.gmra.mxu0 %v472
    %v788 = vpop.f32.mrf.mxu0
    %v789 = vadd.f32 %v719, %v788
    %v790 = vpop.f32.mrf.mxu0
    %791 = vdwg.mxu0
    %792 = vmatprep.subr.mxu0 0.0
    %793 = vmatpush1.msra.mxu0 %v145
    %794 = vmatprep.subr.mxu0 0.0
    %795 = vmatpush1.msra.mxu0 %v144
    %796 = vmatprep.subr.mxu0 0.0
    %797 = vmatpush1.msra.mxu0 %v143
    %798 = vmatprep.subr.mxu0 0.0
    %799 = vmatpush1.msra.mxu0 %v142
    %800 = vmatprep.subr.mxu0 0.0
    %801 = vmatpush1.msra.mxu0 %v141
    %802 = vmatprep.subr.mxu0 0.0
    %803 = vmatpush1.msra.mxu0 %v140
    %804 = vmatprep.subr.mxu0 0.0
    %805 = vmatpush1.msra.mxu0 %v139
    %806 = vmatprep.subr.mxu0 0.0
    %807 = vmatpush1.msra.mxu0 %v138
    %808 = vmatprep.subr.mxu0 0.0
    %809 = vmatpush1.msra.mxu0 %v137
    %810 = vmatprep.subr.mxu0 0.0
    %811 = vmatpush1.msra.mxu0 %v136
    %812 = vmatprep.subr.mxu0 0.0
    %813 = vmatpush1.msra.mxu0 %v135
    %814 = vmatprep.subr.mxu0 0.0
    %815 = vmatpush1.msra.mxu0 %v134
    %816 = vmatprep.subr.mxu0 0.0
    %817 = vmatpush1.msra.mxu0 %v133
    %818 = vmatprep.subr.mxu0 0.0
    %819 = vmatpush1.msra.mxu0 %v132
    %820 = vmatprep.subr.mxu0 0.0
    %821 = vmatpush1.msra.mxu0 %v131
    %822 = vmatprep.subr.mxu0 0.0
    %823 = vmatpush1.msra.mxu0 %v130
    %824 = vmatprep.subr.mxu0 0.0
    %825 = vmatpush2.msra.mxu0 %v161
    %826 = vmatprep.subr.mxu0 0.0
    %827 = vmatpush2.msra.mxu0 %v160
    %828 = vmatprep.subr.mxu0 0.0
    %829 = vmatpush2.msra.mxu0 %v159
    %830 = vmatprep.subr.mxu0 0.0
    %831 = vmatpush2.msra.mxu0 %v158
    %832 = vmatprep.subr.mxu0 0.0
    %833 = vmatpush2.msra.mxu0 %v157
    %834 = vmatprep.subr.mxu0 0.0
    %835 = vmatpush2.msra.mxu0 %v156
    %836 = vmatprep.subr.mxu0 0.0
    %837 = vmatpush2.msra.mxu0 %v155
    %838 = vmatprep.subr.mxu0 0.0
    %839 = vmatpush2.msra.mxu0 %v154
    %840 = vmatprep.subr.mxu0 0.0
    %841 = vmatpush2.msra.mxu0 %v153
    %842 = vmatprep.subr.mxu0 0.0
    %843 = vmatpush2.msra.mxu0 %v152
    %844 = vmatprep.subr.mxu0 0.0
    %845 = vmatpush2.msra.mxu0 %v151
    %846 = vmatprep.subr.mxu0 0.0
    %847 = vmatpush2.msra.mxu0 %v150
    %848 = vmatprep.subr.mxu0 0.0
    %849 = vmatpush2.msra.mxu0 %v149
    %850 = vmatprep.subr.mxu0 0.0
    %851 = vmatpush2.msra.mxu0 %v148
    %852 = vmatprep.subr.mxu0 0.0
    %853 = vmatpush2.msra.mxu0 %v147
    %854 = vmatprep.subr.mxu0 0.0
    %855 = vmatpush2.msra.mxu0 %v146
    %856 = vmatprep.mubr.f32.mxu0 %v481
    %857 = vmatmul.mubr.f32.gmra.mxu0 %v479
    %v858 = vpop.f32.mrf.mxu0
    %v859 = vadd.f32 %v789, %v858
    %v860 = vpop.f32.mrf.mxu0
    %861 = vdwg.mxu0
    %862 = vmatprep.subr.mxu0 0.0
    %863 = vmatpush1.msra.mxu0 %v177
    %864 = vmatprep.subr.mxu0 0.0
    %865 = vmatpush1.msra.mxu0 %v176
    %866 = vmatprep.subr.mxu0 0.0
    %867 = vmatpush1.msra.mxu0 %v175
    %868 = vmatprep.subr.mxu0 0.0
    %869 = vmatpush1.msra.mxu0 %v174
    %870 = vmatprep.subr.mxu0 0.0
    %871 = vmatpush1.msra.mxu0 %v173
    %872 = vmatprep.subr.mxu0 0.0
    %873 = vmatpush1.msra.mxu0 %v172
    %874 = vmatprep.subr.mxu0 0.0
    %875 = vmatpush1.msra.mxu0 %v171
    %876 = vmatprep.subr.mxu0 0.0
    %877 = vmatpush1.msra.mxu0 %v170
    %878 = vmatprep.subr.mxu0 0.0
    %879 = vmatpush1.msra.mxu0 %v169
    %880 = vmatprep.subr.mxu0 0.0
    %881 = vmatpush1.msra.mxu0 %v168
    %882 = vmatprep.subr.mxu0 0.0
    %883 = vmatpush1.msra.mxu0 %v167
    %884 = vmatprep.subr.mxu0 0.0
    %885 = vmatpush1.msra.mxu0 %v166
    %886 = vmatprep.subr.mxu0 0.0
    %887 = vmatpush1.msra.mxu0 %v165
    %888 = vmatprep.subr.mxu0 0.0
    %889 = vmatpush1.msra.mxu0 %v164
    %890 = vmatprep.subr.mxu0 0.0
    %891 = vmatpush1.msra.mxu0 %v163
    %892 = vmatprep.subr.mxu0 0.0
    %893 = vmatpush1.msra.mxu0 %v162
    %894 = vmatprep.subr.mxu0 0.0
    %895 = vmatpush2.msra.mxu0 %v193
    %896 = vmatprep.subr.mxu0 0.0
    %897 = vmatpush2.msra.mxu0 %v192
    %898 = vmatprep.subr.mxu0 0.0
    %899 = vmatpush2.msra.mxu0 %v191
    %900 = vmatprep.subr.mxu0 0.0
    %901 = vmatpush2.msra.mxu0 %v190
    %902 = vmatprep.subr.mxu0 0.0
    %903 = vmatpush2.msra.mxu0 %v189
    %904 = vmatprep.subr.mxu0 0.0
    %905 = vmatpush2.msra.mxu0 %v188
    %906 = vmatprep.subr.mxu0 0.0
    %907 = vmatpush2.msra.mxu0 %v187
    %908 = vmatprep.subr.mxu0 0.0
    %909 = vmatpush2.msra.mxu0 %v186
    %910 = vmatprep.subr.mxu0 0.0
    %911 = vmatpush2.msra.mxu0 %v185
    %912 = vmatprep.subr.mxu0 0.0
    %913 = vmatpush2.msra.mxu0 %v184
    %914 = vmatprep.subr.mxu0 0.0
    %915 = vmatpush2.msra.mxu0 %v183
    %916 = vmatprep.subr.mxu0 0.0
    %917 = vmatpush2.msra.mxu0 %v182
    %918 = vmatprep.subr.mxu0 0.0
    %919 = vmatpush2.msra.mxu0 %v181
    %920 = vmatprep.subr.mxu0 0.0
    %921 = vmatpush2.msra.mxu0 %v180
    %922 = vmatprep.subr.mxu0 0.0
    %923 = vmatpush2.msra.mxu0 %v179
    %924 = vmatprep.subr.mxu0 0.0
    %925 = vmatpush2.msra.mxu0 %v178
    %926 = vmatprep.mubr.f32.mxu0 %v497
    %927 = vmatmul.mubr.f32.gmra.mxu0 %v489
    %v928 = vpop.f32.mrf.mxu0
    %v929 = vadd.f32 %v859, %v928
    %v930 = vpop.f32.mrf.mxu0
    %931 = vdwg.mxu0
    %932 = vmatprep.subr.mxu0 0.0
    %933 = vmatpush1.msra.mxu0 %v209
    %934 = vmatprep.subr.mxu0 0.0
    %935 = vmatpush1.msra.mxu0 %v208
    %936 = vmatprep.subr.mxu0 0.0
    %937 = vmatpush1.msra.mxu0 %v207
    %938 = vmatprep.subr.mxu0 0.0
    %939 = vmatpush1.msra.mxu0 %v206
    %940 = vmatprep.subr.mxu0 0.0
    %941 = vmatpush1.msra.mxu0 %v205
    %942 = vmatprep.subr.mxu0 0.0
    %943 = vmatpush1.msra.mxu0 %v204
    %944 = vmatprep.subr.mxu0 0.0
    %945 = vmatpush1.msra.mxu0 %v203
    %946 = vmatprep.subr.mxu0 0.0
    %947 = vmatpush1.msra.mxu0 %v202
    %948 = vmatprep.subr.mxu0 0.0
    %949 = vmatpush1.msra.mxu0 %v201
    %950 = vmatprep.subr.mxu0 0.0
    %951 = vmatpush1.msra.mxu0 %v200
    %952 = vmatprep.subr.mxu0 0.0
    %953 = vmatpush1.msra.mxu0 %v199
    %954 = vmatprep.subr.mxu0 0.0
    %955 = vmatpush1.msra.mxu0 %v198
    %956 = vmatprep.subr.mxu0 0.0
    %957 = vmatpush1.msra.mxu0 %v197
    %958 = vmatprep.subr.mxu0 0.0
    %959 = vmatpush1.msra.mxu0 %v196
    %960 = vmatprep.subr.mxu0 0.0
    %961 = vmatpush1.msra.mxu0 %v195
    %962 = vmatprep.subr.mxu0 0.0
    %963 = vmatpush1.msra.mxu0 %v194
    %964 = vmatprep.subr.mxu0 0.0
    %965 = vmatpush2.msra.mxu0 %v225
    %966 = vmatprep.subr.mxu0 0.0
    %967 = vmatpush2.msra.mxu0 %v224
    %968 = vmatprep.subr.mxu0 0.0
    %969 = vmatpush2.msra.mxu0 %v223
    %970 = vmatprep.subr.mxu0 0.0
    %971 = vmatpush2.msra.mxu0 %v222
    %972 = vmatprep.subr.mxu0 0.0
    %973 = vmatpush2.msra.mxu0 %v221
    %974 = vmatprep.subr.mxu0 0.0
    %975 = vmatpush2.msra.mxu0 %v220
    %976 = vmatprep.subr.mxu0 0.0
    %977 = vmatpush2.msra.mxu0 %v219
    %978 = vmatprep.subr.mxu0 0.0
    %979 = vmatpush2.msra.mxu0 %v218
    %980 = vmatprep.subr.mxu0 0.0
    %981 = vmatpush2.msra.mxu0 %v217
    %982 = vmatprep.subr.mxu0 0.0
    %983 = vmatpush2.msra.mxu0 %v216
    %984 = vmatprep.subr.mxu0 0.0
    %985 = vmatpush2.msra.mxu0 %v215
    %986 = vmatprep.subr.mxu0 0.0
    %987 = vmatpush2.msra.mxu0 %v214
    %988 = vmatprep.subr.mxu0 0.0
    %989 = vmatpush2.msra.mxu0 %v213
    %990 = vmatprep.subr.mxu0 0.0
    %991 = vmatpush2.msra.mxu0 %v212
    %992 = vmatprep.subr.mxu0 0.0
    %993 = vmatpush2.msra.mxu0 %v211
    %994 = vmatprep.subr.mxu0 0.0
    %995 = vmatpush2.msra.mxu0 %v210
    %996 = vmatprep.mubr.f32.mxu0 %v498
    %997 = vmatmul.mubr.f32.gmra.mxu0 %v496
    %v998 = vpop.f32.mrf.mxu0
    %v999 = vadd.f32 %v929, %v998
    %v1000 = vpop.f32.mrf.mxu0
    %1001 = vdwg.mxu0
    %1002 = vmatprep.subr.mxu0 0.0
    %1003 = vmatpush1.msra.mxu0 %v241
    %1004 = vmatprep.subr.mxu0 0.0
    %1005 = vmatpush1.msra.mxu0 %v240
    %1006 = vmatprep.subr.mxu0 0.0
    %1007 = vmatpush1.msra.mxu0 %v239
    %1008 = vmatprep.subr.mxu0 0.0
    %1009 = vmatpush1.msra.mxu0 %v238
    %1010 = vmatprep.subr.mxu0 0.0
    %1011 = vmatpush1.msra.mxu0 %v237
    %1012 = vmatprep.subr.mxu0 0.0
    %1013 = vmatpush1.msra.mxu0 %v236
    %1014 = vmatprep.subr.mxu0 0.0
    %1015 = vmatpush1.msra.mxu0 %v235
    %1016 = vmatprep.subr.mxu0 0.0
    %1017 = vmatpush1.msra.mxu0 %v234
    %1018 = vmatprep.subr.mxu0 0.0
    %1019 = vmatpush1.msra.mxu0 %v233
    %1020 = vmatprep.subr.mxu0 0.0
    %1021 = vmatpush1.msra.mxu0 %v232
    %1022 = vmatprep.subr.mxu0 0.0
    %1023 = vmatpush1.msra.mxu0 %v231
    %1024 = vmatprep.subr.mxu0 0.0
    %1025 = vmatpush1.msra.mxu0 %v230
    %1026 = vmatprep.subr.mxu0 0.0
    %1027 = vmatpush1.msra.mxu0 %v229
    %1028 = vmatprep.subr.mxu0 0.0
    %1029 = vmatpush1.msra.mxu0 %v228
    %1030 = vmatprep.subr.mxu0 0.0
    %1031 = vmatpush1.msra.mxu0 %v227
    %1032 = vmatprep.subr.mxu0 0.0
    %1033 = vmatpush1.msra.mxu0 %v226
    %1034 = vmatprep.subr.mxu0 0.0
    %1035 = vmatpush2.msra.mxu0 %v257
    %1036 = vmatprep.subr.mxu0 0.0
    %1037 = vmatpush2.msra.mxu0 %v256
    %1038 = vmatprep.subr.mxu0 0.0
    %1039 = vmatpush2.msra.mxu0 %v255
    %1040 = vmatprep.subr.mxu0 0.0
    %1041 = vmatpush2.msra.mxu0 %v254
    %1042 = vmatprep.subr.mxu0 0.0
    %1043 = vmatpush2.msra.mxu0 %v253
    %1044 = vmatprep.subr.mxu0 0.0
    %1045 = vmatpush2.msra.mxu0 %v252
    %1046 = vmatprep.subr.mxu0 0.0
    %1047 = vmatpush2.msra.mxu0 %v251
    %1048 = vmatprep.subr.mxu0 0.0
    %1049 = vmatpush2.msra.mxu0 %v250
    %1050 = vmatprep.subr.mxu0 0.0
    %1051 = vmatpush2.msra.mxu0 %v249
    %1052 = vmatprep.subr.mxu0 0.0
    %1053 = vmatpush2.msra.mxu0 %v248
    %1054 = vmatprep.subr.mxu0 0.0
    %1055 = vmatpush2.msra.mxu0 %v247
    %1056 = vmatprep.subr.mxu0 0.0
    %1057 = vmatpush2.msra.mxu0 %v246
    %1058 = vmatprep.subr.mxu0 0.0
    %1059 = vmatpush2.msra.mxu0 %v245
    %1060 = vmatprep.subr.mxu0 0.0
    %1061 = vmatpush2.msra.mxu0 %v244
    %1062 = vmatprep.subr.mxu0 0.0
    %1063 = vmatpush2.msra.mxu0 %v243
    %1064 = vmatprep.subr.mxu0 0.0
    %1065 = vmatpush2.msra.mxu0 %v242
    %1066 = vmatprep.mubr.f32.mxu0 %v514
    %1067 = vmatmul.mubr.f32.gmra.mxu0 %v506
    %v1068 = vpop.f32.mrf.mxu0
    %v1069 = vadd.f32 %v999, %v1068
    %v1070 = vpop.f32.mrf.mxu0
    %1071 = vdwg.mxu0
    %1072 = vmatprep.subr.mxu0 0.0
    %1073 = vmatpush1.msra.mxu0 %v273
    %1074 = vmatprep.subr.mxu0 0.0
    %1075 = vmatpush1.msra.mxu0 %v272
    %1076 = vmatprep.subr.mxu0 0.0
    %1077 = vmatpush1.msra.mxu0 %v271
    %1078 = vmatprep.subr.mxu0 0.0
    %1079 = vmatpush1.msra.mxu0 %v270
    %1080 = vmatprep.subr.mxu0 0.0
    %1081 = vmatpush1.msra.mxu0 %v269
    %1082 = vmatprep.subr.mxu0 0.0
    %1083 = vmatpush1.msra.mxu0 %v268
    %1084 = vmatprep.subr.mxu0 0.0
    %1085 = vmatpush1.msra.mxu0 %v267
    %1086 = vmatprep.subr.mxu0 0.0
    %1087 = vmatpush1.msra.mxu0 %v266
    %1088 = vmatprep.subr.mxu0 0.0
    %1089 = vmatpush1.msra.mxu0 %v265
    %1090 = vmatprep.subr.mxu0 0.0
    %1091 = vmatpush1.msra.mxu0 %v264
    %1092 = vmatprep.subr.mxu0 0.0
    %1093 = vmatpush1.msra.mxu0 %v263
    %1094 = vmatprep.subr.mxu0 0.0
    %1095 = vmatpush1.msra.mxu0 %v262
    %1096 = vmatprep.subr.mxu0 0.0
    %1097 = vmatpush1.msra.mxu0 %v261
    %1098 = vmatprep.subr.mxu0 0.0
    %1099 = vmatpush1.msra.mxu0 %v260
    %1100 = vmatprep.subr.mxu0 0.0
    %1101 = vmatpush1.msra.mxu0 %v259
    %1102 = vmatprep.subr.mxu0 0.0
    %1103 = vmatpush1.msra.mxu0 %v258
    %1104 = vmatprep.subr.mxu0 0.0
    %1105 = vmatpush2.msra.mxu0 %v289
    %1106 = vmatprep.subr.mxu0 0.0
    %1107 = vmatpush2.msra.mxu0 %v288
    %1108 = vmatprep.subr.mxu0 0.0
    %1109 = vmatpush2.msra.mxu0 %v287
    %1110 = vmatprep.subr.mxu0 0.0
    %1111 = vmatpush2.msra.mxu0 %v286
    %1112 = vmatprep.subr.mxu0 0.0
    %1113 = vmatpush2.msra.mxu0 %v285
    %1114 = vmatprep.subr.mxu0 0.0
    %1115 = vmatpush2.msra.mxu0 %v284
    %1116 = vmatprep.subr.mxu0 0.0
    %1117 = vmatpush2.msra.mxu0 %v283
    %1118 = vmatprep.subr.mxu0 0.0
    %1119 = vmatpush2.msra.mxu0 %v282
    %1120 = vmatprep.subr.mxu0 0.0
    %1121 = vmatpush2.msra.mxu0 %v281
    %1122 = vmatprep.subr.mxu0 0.0
    %1123 = vmatpush2.msra.mxu0 %v280
    %1124 = vmatprep.subr.mxu0 0.0
    %1125 = vmatpush2.msra.mxu0 %v279
    %1126 = vmatprep.subr.mxu0 0.0
    %1127 = vmatpush2.msra.mxu0 %v278
    %1128 = vmatprep.subr.mxu0 0.0
    %1129 = vmatpush2.msra.mxu0 %v277
    %1130 = vmatprep.subr.mxu0 0.0
    %1131 = vmatpush2.msra.mxu0 %v276
    %1132 = vmatprep.subr.mxu0 0.0
    %1133 = vmatpush2.msra.mxu0 %v275
    %1134 = vmatprep.subr.mxu0 0.0
    %1135 = vmatpush2.msra.mxu0 %v274
    %1136 = vmatprep.mubr.f32.mxu0 %v515
    %1137 = vmatmul.mubr.f32.gmra.mxu0 %v513
    %v1138 = vpop.f32.mrf.mxu0
    %v1139 = vadd.f32 %v1069, %v1138
    %v1140 = vpop.f32.mrf.mxu0
    %1141 = vdwg.mxu0
    %1142 = vmatprep.subr.mxu0 0.0
    %1143 = vmatpush1.msra.mxu0 %v305
    %1144 = vmatprep.subr.mxu0 0.0
    %1145 = vmatpush1.msra.mxu0 %v304
    %1146 = vmatprep.subr.mxu0 0.0
    %1147 = vmatpush1.msra.mxu0 %v303
    %1148 = vmatprep.subr.mxu0 0.0
    %1149 = vmatpush1.msra.mxu0 %v302
    %1150 = vmatprep.subr.mxu0 0.0
    %1151 = vmatpush1.msra.mxu0 %v301
    %1152 = vmatprep.subr.mxu0 0.0
    %1153 = vmatpush1.msra.mxu0 %v300
    %1154 = vmatprep.subr.mxu0 0.0
    %1155 = vmatpush1.msra.mxu0 %v299
    %1156 = vmatprep.subr.mxu0 0.0
    %1157 = vmatpush1.msra.mxu0 %v298
    %1158 = vmatprep.subr.mxu0 0.0
    %1159 = vmatpush1.msra.mxu0 %v297
    %1160 = vmatprep.subr.mxu0 0.0
    %1161 = vmatpush1.msra.mxu0 %v296
    %1162 = vmatprep.subr.mxu0 0.0
    %1163 = vmatpush1.msra.mxu0 %v295
    %1164 = vmatprep.subr.mxu0 0.0
    %1165 = vmatpush1.msra.mxu0 %v294
    %1166 = vmatprep.subr.mxu0 0.0
    %1167 = vmatpush1.msra.mxu0 %v293
    %1168 = vmatprep.subr.mxu0 0.0
    %1169 = vmatpush1.msra.mxu0 %v292
    %1170 = vmatprep.subr.mxu0 0.0
    %1171 = vmatpush1.msra.mxu0 %v291
    %1172 = vmatprep.subr.mxu0 0.0
    %1173 = vmatpush1.msra.mxu0 %v290
    %1174 = vmatprep.subr.mxu0 0.0
    %1175 = vmatpush2.msra.mxu0 %v321
    %1176 = vmatprep.subr.mxu0 0.0
    %1177 = vmatpush2.msra.mxu0 %v320
    %1178 = vmatprep.subr.mxu0 0.0
    %1179 = vmatpush2.msra.mxu0 %v319
    %1180 = vmatprep.subr.mxu0 0.0
    %1181 = vmatpush2.msra.mxu0 %v318
    %1182 = vmatprep.subr.mxu0 0.0
    %1183 = vmatpush2.msra.mxu0 %v317
    %1184 = vmatprep.subr.mxu0 0.0
    %1185 = vmatpush2.msra.mxu0 %v316
    %1186 = vmatprep.subr.mxu0 0.0
    %1187 = vmatpush2.msra.mxu0 %v315
    %1188 = vmatprep.subr.mxu0 0.0
    %1189 = vmatpush2.msra.mxu0 %v314
    %1190 = vmatprep.subr.mxu0 0.0
    %1191 = vmatpush2.msra.mxu0 %v313
    %1192 = vmatprep.subr.mxu0 0.0
    %1193 = vmatpush2.msra.mxu0 %v312
    %1194 = vmatprep.subr.mxu0 0.0
    %1195 = vmatpush2.msra.mxu0 %v311
    %1196 = vmatprep.subr.mxu0 0.0
    %1197 = vmatpush2.msra.mxu0 %v310
    %1198 = vmatprep.subr.mxu0 0.0
    %1199 = vmatpush2.msra.mxu0 %v309
    %1200 = vmatprep.subr.mxu0 0.0
    %1201 = vmatpush2.msra.mxu0 %v308
    %1202 = vmatprep.subr.mxu0 0.0
    %1203 = vmatpush2.msra.mxu0 %v307
    %1204 = vmatprep.subr.mxu0 0.0
    %1205 = vmatpush2.msra.mxu0 %v306
    %1206 = vmatprep.mubr.f32.mxu0 %v531
    %1207 = vmatmul.mubr.f32.gmra.mxu0 %v523
    %v1208 = vpop.f32.mrf.mxu0
    %v1209 = vadd.f32 %v1139, %v1208
    %v1210 = vpop.f32.mrf.mxu0
    %1211 = vdwg.mxu0
    %1212 = vmatprep.subr.mxu0 0.0
    %1213 = vmatpush1.msra.mxu0 %v337
    %1214 = vmatprep.subr.mxu0 0.0
    %1215 = vmatpush1.msra.mxu0 %v336
    %1216 = vmatprep.subr.mxu0 0.0
    %1217 = vmatpush1.msra.mxu0 %v335
    %1218 = vmatprep.subr.mxu0 0.0
    %1219 = vmatpush1.msra.mxu0 %v334
    %1220 = vmatprep.subr.mxu0 0.0
    %1221 = vmatpush1.msra.mxu0 %v333
    %1222 = vmatprep.subr.mxu0 0.0
    %1223 = vmatpush1.msra.mxu0 %v332
    %1224 = vmatprep.subr.mxu0 0.0
    %1225 = vmatpush1.msra.mxu0 %v331
    %1226 = vmatprep.subr.mxu0 0.0
    %1227 = vmatpush1.msra.mxu0 %v330
    %1228 = vmatprep.subr.mxu0 0.0
    %1229 = vmatpush1.msra.mxu0 %v329
    %1230 = vmatprep.subr.mxu0 0.0
    %1231 = vmatpush1.msra.mxu0 %v328
    %1232 = vmatprep.subr.mxu0 0.0
    %1233 = vmatpush1.msra.mxu0 %v327
    %1234 = vmatprep.subr.mxu0 0.0
    %1235 = vmatpush1.msra.mxu0 %v326
    %1236 = vmatprep.subr.mxu0 0.0
    %1237 = vmatpush1.msra.mxu0 %v325
    %1238 = vmatprep.subr.mxu0 0.0
    %1239 = vmatpush1.msra.mxu0 %v324
    %1240 = vmatprep.subr.mxu0 0.0
    %1241 = vmatpush1.msra.mxu0 %v323
    %1242 = vmatprep.subr.mxu0 0.0
    %1243 = vmatpush1.msra.mxu0 %v322
    %1244 = vmatprep.subr.mxu0 0.0
    %1245 = vmatpush2.msra.mxu0 %v353
    %1246 = vmatprep.subr.mxu0 0.0
    %1247 = vmatpush2.msra.mxu0 %v352
    %1248 = vmatprep.subr.mxu0 0.0
    %1249 = vmatpush2.msra.mxu0 %v351
    %1250 = vmatprep.subr.mxu0 0.0
    %1251 = vmatpush2.msra.mxu0 %v350
    %1252 = vmatprep.subr.mxu0 0.0
    %1253 = vmatpush2.msra.mxu0 %v349
    %1254 = vmatprep.subr.mxu0 0.0
    %1255 = vmatpush2.msra.mxu0 %v348
    %1256 = vmatprep.subr.mxu0 0.0
    %1257 = vmatpush2.msra.mxu0 %v347
    %1258 = vmatprep.subr.mxu0 0.0
    %1259 = vmatpush2.msra.mxu0 %v346
    %1260 = vmatprep.subr.mxu0 0.0
    %1261 = vmatpush2.msra.mxu0 %v345
    %1262 = vmatprep.subr.mxu0 0.0
    %1263 = vmatpush2.msra.mxu0 %v344
    %1264 = vmatprep.subr.mxu0 0.0
    %1265 = vmatpush2.msra.mxu0 %v343
    %1266 = vmatprep.subr.mxu0 0.0
    %1267 = vmatpush2.msra.mxu0 %v342
    %1268 = vmatprep.subr.mxu0 0.0
    %1269 = vmatpush2.msra.mxu0 %v341
    %1270 = vmatprep.subr.mxu0 0.0
    %1271 = vmatpush2.msra.mxu0 %v340
    %1272 = vmatprep.subr.mxu0 0.0
    %1273 = vmatpush2.msra.mxu0 %v339
    %1274 = vmatprep.subr.mxu0 0.0
    %1275 = vmatpush2.msra.mxu0 %v338
    %1276 = vmatprep.mubr.f32.mxu0 %v532
    %1277 = vmatmul.mubr.f32.gmra.mxu0 %v530
    %v1278 = vpop.f32.mrf.mxu0
    %v1279 = vadd.f32 %v1209, %v1278
    %v1280 = vpop.f32.mrf.mxu0
    %1281 = vdwg.mxu0
    %1282 = vmatprep.subr.mxu0 0.0
    %1283 = vmatpush1.msra.mxu0 %v369
    %1284 = vmatprep.subr.mxu0 0.0
    %1285 = vmatpush1.msra.mxu0 %v368
    %1286 = vmatprep.subr.mxu0 0.0
    %1287 = vmatpush1.msra.mxu0 %v367
    %1288 = vmatprep.subr.mxu0 0.0
    %1289 = vmatpush1.msra.mxu0 %v366
    %1290 = vmatprep.subr.mxu0 0.0
    %1291 = vmatpush1.msra.mxu0 %v365
    %1292 = vmatprep.subr.mxu0 0.0
    %1293 = vmatpush1.msra.mxu0 %v364
    %1294 = vmatprep.subr.mxu0 0.0
    %1295 = vmatpush1.msra.mxu0 %v363
    %1296 = vmatprep.subr.mxu0 0.0
    %1297 = vmatpush1.msra.mxu0 %v362
    %1298 = vmatprep.subr.mxu0 0.0
    %1299 = vmatpush1.msra.mxu0 %v361
    %1300 = vmatprep.subr.mxu0 0.0
    %1301 = vmatpush1.msra.mxu0 %v360
    %1302 = vmatprep.subr.mxu0 0.0
    %1303 = vmatpush1.msra.mxu0 %v359
    %1304 = vmatprep.subr.mxu0 0.0
    %1305 = vmatpush1.msra.mxu0 %v358
    %1306 = vmatprep.subr.mxu0 0.0
    %1307 = vmatpush1.msra.mxu0 %v357
    %1308 = vmatprep.subr.mxu0 0.0
    %1309 = vmatpush1.msra.mxu0 %v356
    %1310 = vmatprep.subr.mxu0 0.0
    %1311 = vmatpush1.msra.mxu0 %v355
    %1312 = vmatprep.subr.mxu0 0.0
    %1313 = vmatpush1.msra.mxu0 %v354
    %1314 = vmatprep.subr.mxu0 0.0
    %1315 = vmatpush2.msra.mxu0 %v385
    %1316 = vmatprep.subr.mxu0 0.0
    %1317 = vmatpush2.msra.mxu0 %v384
    %1318 = vmatprep.subr.mxu0 0.0
    %1319 = vmatpush2.msra.mxu0 %v383
    %1320 = vmatprep.subr.mxu0 0.0
    %1321 = vmatpush2.msra.mxu0 %v382
    %1322 = vmatprep.subr.mxu0 0.0
    %1323 = vmatpush2.msra.mxu0 %v381
    %1324 = vmatprep.subr.mxu0 0.0
    %1325 = vmatpush2.msra.mxu0 %v380
    %1326 = vmatprep.subr.mxu0 0.0
    %1327 = vmatpush2.msra.mxu0 %v379
    %1328 = vmatprep.subr.mxu0 0.0
    %1329 = vmatpush2.msra.mxu0 %v378
    %1330 = vmatprep.subr.mxu0 0.0
    %1331 = vmatpush2.msra.mxu0 %v377
    %1332 = vmatprep.subr.mxu0 0.0
    %1333 = vmatpush2.msra.mxu0 %v376
    %1334 = vmatprep.subr.mxu0 0.0
    %1335 = vmatpush2.msra.mxu0 %v375
    %1336 = vmatprep.subr.mxu0 0.0
    %1337 = vmatpush2.msra.mxu0 %v374
    %1338 = vmatprep.subr.mxu0 0.0
    %1339 = vmatpush2.msra.mxu0 %v373
    %1340 = vmatprep.subr.mxu0 0.0
    %1341 = vmatpush2.msra.mxu0 %v372
    %1342 = vmatprep.subr.mxu0 0.0
    %1343 = vmatpush2.msra.mxu0 %v371
    %1344 = vmatprep.subr.mxu0 0.0
    %1345 = vmatpush2.msra.mxu0 %v370
    %1346 = vmatprep.mubr.f32.mxu0 %v548
    %1347 = vmatmul.mubr.f32.gmra.mxu0 %v540
    %v1348 = vpop.f32.mrf.mxu0
    %v1349 = vadd.f32 %v1279, %v1348
    %v1350 = vpop.f32.mrf.mxu0
    %1351 = vdwg.mxu0
    %1352 = vmatprep.subr.mxu0 0.0
    %1353 = vmatpush1.msra.mxu0 %v401
    %1354 = vmatprep.subr.mxu0 0.0
    %1355 = vmatpush1.msra.mxu0 %v400
    %1356 = vmatprep.subr.mxu0 0.0
    %1357 = vmatpush1.msra.mxu0 %v399
    %1358 = vmatprep.subr.mxu0 0.0
    %1359 = vmatpush1.msra.mxu0 %v398
    %1360 = vmatprep.subr.mxu0 0.0
    %1361 = vmatpush1.msra.mxu0 %v397
    %1362 = vmatprep.subr.mxu0 0.0
    %1363 = vmatpush1.msra.mxu0 %v396
    %1364 = vmatprep.subr.mxu0 0.0
    %1365 = vmatpush1.msra.mxu0 %v395
    %1366 = vmatprep.subr.mxu0 0.0
    %1367 = vmatpush1.msra.mxu0 %v394
    %1368 = vmatprep.subr.mxu0 0.0
    %1369 = vmatpush1.msra.mxu0 %v393
    %1370 = vmatprep.subr.mxu0 0.0
    %1371 = vmatpush1.msra.mxu0 %v392
    %1372 = vmatprep.subr.mxu0 0.0
    %1373 = vmatpush1.msra.mxu0 %v391
    %1374 = vmatprep.subr.mxu0 0.0
    %1375 = vmatpush1.msra.mxu0 %v390
    %1376 = vmatprep.subr.mxu0 0.0
    %1377 = vmatpush1.msra.mxu0 %v389
    %1378 = vmatprep.subr.mxu0 0.0
    %1379 = vmatpush1.msra.mxu0 %v388
    %1380 = vmatprep.subr.mxu0 0.0
    %1381 = vmatpush1.msra.mxu0 %v387
    %1382 = vmatprep.subr.mxu0 0.0
    %1383 = vmatpush1.msra.mxu0 %v386
    %1384 = vmatprep.subr.mxu0 0.0
    %1385 = vmatpush2.msra.mxu0 %v417
    %1386 = vmatprep.subr.mxu0 0.0
    %1387 = vmatpush2.msra.mxu0 %v416
    %1388 = vmatprep.subr.mxu0 0.0
    %1389 = vmatpush2.msra.mxu0 %v415
    %1390 = vmatprep.subr.mxu0 0.0
    %1391 = vmatpush2.msra.mxu0 %v414
    %1392 = vmatprep.subr.mxu0 0.0
    %1393 = vmatpush2.msra.mxu0 %v413
    %1394 = vmatprep.subr.mxu0 0.0
    %1395 = vmatpush2.msra.mxu0 %v412
    %1396 = vmatprep.subr.mxu0 0.0
    %1397 = vmatpush2.msra.mxu0 %v411
    %1398 = vmatprep.subr.mxu0 0.0
    %1399 = vmatpush2.msra.mxu0 %v410
    %1400 = vmatprep.subr.mxu0 0.0
    %1401 = vmatpush2.msra.mxu0 %v409
    %1402 = vmatprep.subr.mxu0 0.0
    %1403 = vmatpush2.msra.mxu0 %v408
    %1404 = vmatprep.subr.mxu0 0.0
    %1405 = vmatpush2.msra.mxu0 %v407
    %1406 = vmatprep.subr.mxu0 0.0
    %1407 = vmatpush2.msra.mxu0 %v406
    %1408 = vmatprep.subr.mxu0 0.0
    %1409 = vmatpush2.msra.mxu0 %v405
    %1410 = vmatprep.subr.mxu0 0.0
    %1411 = vmatpush2.msra.mxu0 %v404
    %1412 = vmatprep.subr.mxu0 0.0
    %1413 = vmatpush2.msra.mxu0 %v403
    %1414 = vmatprep.subr.mxu0 0.0
    %1415 = vmatpush2.msra.mxu0 %v402
    %1416 = vmatprep.mubr.f32.mxu0 %v549
    %1417 = vmatmul.mubr.f32.gmra.mxu0 %v547
    %v1418 = vpop.f32.mrf.mxu0
    %v1419 = vadd.f32 %v1349, %v1418
    %v1420 = vpop.f32.mrf.mxu0
    %1421 = vdwg.mxu0
    %1422 = vmatprep.subr.mxu0 0.0
    %1423 = vmatpush1.msra.mxu0 %v433
    %1424 = vmatprep.subr.mxu0 0.0
    %1425 = vmatpush1.msra.mxu0 %v432
    %1426 = vmatprep.subr.mxu0 0.0
    %1427 = vmatpush1.msra.mxu0 %v431
    %1428 = vmatprep.subr.mxu0 0.0
    %1429 = vmatpush1.msra.mxu0 %v430
    %1430 = vmatprep.subr.mxu0 0.0
    %1431 = vmatpush1.msra.mxu0 %v429
    %1432 = vmatprep.subr.mxu0 0.0
    %1433 = vmatpush1.msra.mxu0 %v428
    %1434 = vmatprep.subr.mxu0 0.0
    %1435 = vmatpush1.msra.mxu0 %v427
    %1436 = vmatprep.subr.mxu0 0.0
    %1437 = vmatpush1.msra.mxu0 %v426
    %1438 = vmatprep.subr.mxu0 0.0
    %1439 = vmatpush1.msra.mxu0 %v425
    %1440 = vmatprep.subr.mxu0 0.0
    %1441 = vmatpush1.msra.mxu0 %v424
    %1442 = vmatprep.subr.mxu0 0.0
    %1443 = vmatpush1.msra.mxu0 %v423
    %1444 = vmatprep.subr.mxu0 0.0
    %1445 = vmatpush1.msra.mxu0 %v422
    %1446 = vmatprep.subr.mxu0 0.0
    %1447 = vmatpush1.msra.mxu0 %v421
    %1448 = vmatprep.subr.mxu0 0.0
    %1449 = vmatpush1.msra.mxu0 %v420
    %1450 = vmatprep.subr.mxu0 0.0
    %1451 = vmatpush1.msra.mxu0 %v419
    %1452 = vmatprep.subr.mxu0 0.0
    %1453 = vmatpush1.msra.mxu0 %v418
    %1454 = vmatprep.subr.mxu0 0.0
    %1455 = vmatpush2.msra.mxu0 0.0
    %1456 = vmatprep.subr.mxu0 0.0
    %1457 = vmatpush2.msra.mxu0 0.0
    %1458 = vmatprep.subr.mxu0 0.0
    %1459 = vmatpush2.msra.mxu0 0.0
    %1460 = vmatprep.subr.mxu0 0.0
    %1461 = vmatpush2.msra.mxu0 0.0
    %1462 = vmatprep.subr.mxu0 0.0
    %1463 = vmatpush2.msra.mxu0 0.0
    %1464 = vmatprep.subr.mxu0 0.0
    %1465 = vmatpush2.msra.mxu0 0.0
    %1466 = vmatprep.subr.mxu0 0.0
    %1467 = vmatpush2.msra.mxu0 0.0
    %1468 = vmatprep.subr.mxu0 0.0
    %1469 = vmatpush2.msra.mxu0 0.0
    %1470 = vmatprep.subr.mxu0 0.0
    %1471 = vmatpush2.msra.mxu0 0.0
    %1472 = vmatprep.subr.mxu0 0.0
    %1473 = vmatpush2.msra.mxu0 0.0
    %1474 = vmatprep.subr.mxu0 0.0
    %1475 = vmatpush2.msra.mxu0 0.0
    %1476 = vmatprep.subr.mxu0 0.0
    %1477 = vmatpush2.msra.mxu0 0.0
    %1478 = vmatprep.subr.mxu0 0.0
    %1479 = vmatpush2.msra.mxu0 0.0
    %1480 = vmatprep.subr.mxu0 0.0
    %1481 = vmatpush2.msra.mxu0 0.0
    %1482 = vmatprep.subr.mxu0 0.0
    %1483 = vmatpush2.msra.mxu0 0.0
    %1484 = vmatprep.subr.mxu0 0.0
    %1485 = vmatpush2.msra.mxu0 0.0
    %1486 = vmatprep.mubr.f32.mxu0 0.0
    %1487 = vmatmul.mubr.f32.gmra.mxu0 %v556
    %v1488 = vpop.f32.mrf.mxu0
    %v1489 = vadd.f32 %v1419, %v1488
    %v1490 = vpop.f32.mrf.mxu0
    %1491 = vdwg.mxu0
    %v1492 = vmax.f32 %v1489, 0.0
    %v1493 = vld [vmem:[%s3] sm:$0xff]
    %v1494 = vld [vmem:[%s3 + $0x8] sm:$0xff]
    %v1495 = vld [vmem:[%s3 + $0x10] sm:$0xff]
    %v1496 = vld [vmem:[%s3 + $0x18] sm:$0xff]
    %v1497 = vld [vmem:[%s3 + $0x20] sm:$0xff]
    %v1498 = vld [vmem:[%s3 + $0x28] sm:$0xff]
    %v1499 = vld [vmem:[%s3 + $0x30] sm:$0xff]
    %v1500 = vld [vmem:[%s3 + $0x38] sm:$0xff]
    %v1501 = vld [vmem:[%s3 + $0x40] sm:$0xff]
    %v1502 = vld [vmem:[%s3 + $0x48] sm:$0xff]
    %v1503 = vld [vmem:[%s3 + $0x50] sm:$0xff]
    %v1504 = vld [vmem:[%s3 + $0x58] sm:$0xff]
    %v1505 = vld [vmem:[%s3 + $0x60] sm:$0xff]
    %v1506 = vld [vmem:[%s3 + $0x68] sm:$0xff]
    %v1507 = vld [vmem:[%s3 + $0x70] sm:$0xff]
    %v1508 = vld [vmem:[%s3 + $0x78] sm:$0xff]
    %v1509 = vld [vmem:[%s4] sm:$0x1]
    %v1511 = vlaneseq
    %v1512 = vshrl.u32 %v1511, 7
    %v1513 = vsub.s32 0, %v1512
    %v1514 = vrot.slane %v1509, %v1513
    %1516 = vmatprep.subr.mxu0 0.0
    %1517 = vmatpush1.msra.mxu0 %v1508
    %1518 = vmatprep.subr.mxu0 0.0
    %1519 = vmatpush1.msra.mxu0 %v1507
    %1520 = vmatprep.subr.mxu0 0.0
    %1521 = vmatpush1.msra.mxu0 %v1506
    %1522 = vmatprep.subr.mxu0 0.0
    %1523 = vmatpush1.msra.mxu0 %v1505
    %1524 = vmatprep.subr.mxu0 0.0
    %1525 = vmatpush1.msra.mxu0 %v1504
    %1526 = vmatprep.subr.mxu0 0.0
    %1527 = vmatpush1.msra.mxu0 %v1503
    %1528 = vmatprep.subr.mxu0 0.0
    %1529 = vmatpush1.msra.mxu0 %v1502
    %1530 = vmatprep.subr.mxu0 0.0
    %1531 = vmatpush1.msra.mxu0 %v1501
    %1532 = vmatprep.subr.mxu0 0.0
    %1533 = vmatpush1.msra.mxu0 %v1500
    %1534 = vmatprep.subr.mxu0 0.0
    %1535 = vmatpush1.msra.mxu0 %v1499
    %1536 = vmatprep.subr.mxu0 0.0
    %1537 = vmatpush1.msra.mxu0 %v1498
    %1538 = vmatprep.subr.mxu0 0.0
    %1539 = vmatpush1.msra.mxu0 %v1497
    %1540 = vmatprep.subr.mxu0 0.0
    %1541 = vmatpush1.msra.mxu0 %v1496
    %1542 = vmatprep.subr.mxu0 0.0
    %1543 = vmatpush1.msra.mxu0 %v1495
    %1544 = vmatprep.subr.mxu0 0.0
    %1545 = vmatpush1.msra.mxu0 %v1494
    %1546 = vmatprep.subr.mxu0 0.0
    %1547 = vmatpush1.msra.mxu0 %v1493
    %1548 = vmatprep.subr.mxu0 0.0
    %1549 = vmatpush2.msra.mxu0 0.0
    %1550 = vmatprep.subr.mxu0 0.0
    %1551 = vmatpush2.msra.mxu0 0.0
    %1552 = vmatprep.subr.mxu0 0.0
    %1553 = vmatpush2.msra.mxu0 0.0
    %1554 = vmatprep.subr.mxu0 0.0
    %1555 = vmatpush2.msra.mxu0 0.0
    %1556 = vmatprep.subr.mxu0 0.0
    %1557 = vmatpush2.msra.mxu0 0.0
    %1558 = vmatprep.subr.mxu0 0.0
    %1559 = vmatpush2.msra.mxu0 0.0
    %1560 = vmatprep.subr.mxu0 0.0
    %1561 = vmatpush2.msra.mxu0 0.0
    %1562 = vmatprep.subr.mxu0 0.0
    %1563 = vmatpush2.msra.mxu0 0.0
    %1564 = vmatprep.subr.mxu0 0.0
    %1565 = vmatpush2.msra.mxu0 0.0
    %1566 = vmatprep.subr.mxu0 0.0
    %1567 = vmatpush2.msra.mxu0 0.0
    %1568 = vmatprep.subr.mxu0 0.0
    %1569 = vmatpush2.msra.mxu0 0.0
    %1570 = vmatprep.subr.mxu0 0.0
    %1571 = vmatpush2.msra.mxu0 0.0
    %1572 = vmatprep.subr.mxu0 0.0
    %1573 = vmatpush2.msra.mxu0 0.0
    %1574 = vmatprep.subr.mxu0 0.0
    %1575 = vmatpush2.msra.mxu0 0.0
    %1576 = vmatprep.subr.mxu0 0.0
    %1577 = vmatpush2.msra.mxu0 0.0
    %1578 = vmatprep.subr.mxu0 0.0
    %1579 = vmatpush2.msra.mxu0 0.0
    %1580 = vmatprep.mubr.f32.mxu0 0.0
    %1581 = vmatmul.mubr.f32.gmra.mxu0 %v1492
    %v1582 = vpop.f32.mrf.mxu0
    %v1583 = vadd.f32 %v1514, %v1582
    %v1584 = vpop.f32.mrf.mxu0
    %1585 = vdwg.mxu0
    %v1586 = vmax.f32 %v1583, 0.0
    %v1587 = vld [vmem:[%s5] sm:$0xff]
    %v1588 = vld [vmem:[%s5 + $0x8] sm:$0xff]
    %v1589 = vld [vmem:[%s5 + $0x10] sm:$0xff]
    %v1590 = vld [vmem:[%s5 + $0x18] sm:$0xff]
    %v1591 = vld [vmem:[%s5 + $0x20] sm:$0xff]
    %v1592 = vld [vmem:[%s5 + $0x28] sm:$0xff]
    %v1593 = vld [vmem:[%s5 + $0x30] sm:$0xff]
    %v1594 = vld [vmem:[%s5 + $0x38] sm:$0xff]
    %v1595 = vld [vmem:[%s5 + $0x40] sm:$0xff]
    %v1596 = vld [vmem:[%s5 + $0x48] sm:$0xff]
    %v1597 = vld [vmem:[%s5 + $0x50] sm:$0xff]
    %v1598 = vld [vmem:[%s5 + $0x58] sm:$0xff]
    %v1599 = vld [vmem:[%s5 + $0x60] sm:$0xff]
    %v1600 = vld [vmem:[%s5 + $0x68] sm:$0xff]
    %v1601 = vld [vmem:[%s5 + $0x70] sm:$0xff]
    %v1602 = vld [vmem:[%s5 + $0x78] sm:$0xff]
    %v1603 = vld [vmem:[%s6] sm:$0x1]
    %v1605 = vlaneseq
    %v1606 = vshrl.u32 %v1605, 7
    %v1607 = vsub.s32 0, %v1606
    %v1608 = vrot.slane %v1603, %v1607
    %1610 = vmatprep.subr.mxu0 0.0
    %1611 = vmatpush1.msra.mxu0 %v1602
    %1612 = vmatprep.subr.mxu0 0.0
    %1613 = vmatpush1.msra.mxu0 %v1601
    %1614 = vmatprep.subr.mxu0 0.0
    %1615 = vmatpush1.msra.mxu0 %v1600
    %1616 = vmatprep.subr.mxu0 0.0
    %1617 = vmatpush1.msra.mxu0 %v1599
    %1618 = vmatprep.subr.mxu0 0.0
    %1619 = vmatpush1.msra.mxu0 %v1598
    %1620 = vmatprep.subr.mxu0 0.0
    %1621 = vmatpush1.msra.mxu0 %v1597
    %1622 = vmatprep.subr.mxu0 0.0
    %1623 = vmatpush1.msra.mxu0 %v1596
    %1624 = vmatprep.subr.mxu0 0.0
    %1625 = vmatpush1.msra.mxu0 %v1595
    %1626 = vmatprep.subr.mxu0 0.0
    %1627 = vmatpush1.msra.mxu0 %v1594
    %1628 = vmatprep.subr.mxu0 0.0
    %1629 = vmatpush1.msra.mxu0 %v1593
    %1630 = vmatprep.subr.mxu0 0.0
    %1631 = vmatpush1.msra.mxu0 %v1592
    %1632 = vmatprep.subr.mxu0 0.0
    %1633 = vmatpush1.msra.mxu0 %v1591
    %1634 = vmatprep.subr.mxu0 0.0
    %1635 = vmatpush1.msra.mxu0 %v1590
    %1636 = vmatprep.subr.mxu0 0.0
    %1637 = vmatpush1.msra.mxu0 %v1589
    %1638 = vmatprep.subr.mxu0 0.0
    %1639 = vmatpush1.msra.mxu0 %v1588
    %1640 = vmatprep.subr.mxu0 0.0
    %1641 = vmatpush1.msra.mxu0 %v1587
    %1642 = vmatprep.subr.mxu0 0.0
    %1643 = vmatpush2.msra.mxu0 0.0
    %1644 = vmatprep.subr.mxu0 0.0
    %1645 = vmatpush2.msra.mxu0 0.0
    %1646 = vmatprep.subr.mxu0 0.0
    %1647 = vmatpush2.msra.mxu0 0.0
    %1648 = vmatprep.subr.mxu0 0.0
    %1649 = vmatpush2.msra.mxu0 0.0
    %1650 = vmatprep.subr.mxu0 0.0
    %1651 = vmatpush2.msra.mxu0 0.0
    %1652 = vmatprep.subr.mxu0 0.0
    %1653 = vmatpush2.msra.mxu0 0.0
    %1654 = vmatprep.subr.mxu0 0.0
    %1655 = vmatpush2.msra.mxu0 0.0
    %1656 = vmatprep.subr.mxu0 0.0
    %1657 = vmatpush2.msra.mxu0 0.0
    %1658 = vmatprep.subr.mxu0 0.0
    %1659 = vmatpush2.msra.mxu0 0.0
    %1660 = vmatprep.subr.mxu0 0.0
    %1661 = vmatpush2.msra.mxu0 0.0
    %1662 = vmatprep.subr.mxu0 0.0
    %1663 = vmatpush2.msra.mxu0 0.0
    %1664 = vmatprep.subr.mxu0 0.0
    %1665 = vmatpush2.msra.mxu0 0.0
    %1666 = vmatprep.subr.mxu0 0.0
    %1667 = vmatpush2.msra.mxu0 0.0
    %1668 = vmatprep.subr.mxu0 0.0
    %1669 = vmatpush2.msra.mxu0 0.0
    %1670 = vmatprep.subr.mxu0 0.0
    %1671 = vmatpush2.msra.mxu0 0.0
    %1672 = vmatprep.subr.mxu0 0.0
    %1673 = vmatpush2.msra.mxu0 0.0
    %1674 = vmatprep.mubr.f32.mxu0 0.0
    %1675 = vmatmul.mubr.f32.gmra.mxu0 %v1586
    %v1676 = vpop.f32.mrf.mxu0
    %v1677 = vadd.f32 %v1608, %v1676
    %v1678 = vpop.f32.mrf.mxu0
    %1679 = vdwg.mxu0
    %1680 = vst [vmem:[#allocation2] sm:$0x3] %v1677
    // Predicated region
    $region30: #{lenet_forward.9} parent=1 // pred_check
      _
    $region31: #{lenet_forward.9} parent=1 // pred_check_branch
      %1682 = sbr.rel (0) target = $region33
    $region32: #{lenet_forward.9} parent=1 // pred_region
      %s1684 = ssub.s32 32, 32
      %1685 = vsyncadd [#allocation3], %s1684
      %s1687 = sshll.u32 [#allocation2], 4
      %s1688 = int_to_ptr.vmem [resolvable:$true] %s1687
      %1690 = dma.vmem_to_hbm [thread:$0]  %s1688, 32, %s7, [#allocation3]
    $region33: #{lenet_forward.9} parent=1 // pred_fallthru
      _
    // Predicated region
    $region34: #{lenet_forward.9} parent=1 // pred_check
      _
    $region35: #{lenet_forward.9} parent=1 // pred_check_branch
      %1692 = sbr.rel (0) target = $region37
    $region36: #{lenet_forward.9} parent=1 // pred_region
      %1693 = dma.done [#allocation3], 32
    $region37: #{lenet_forward.9} parent=1 // pred_fallthru
      _
    %1694 = vsyncpa [#allocation3], 1

</llo_original>
